<compile_context>
chip_gen: v5e
topology: v5e:2x2
jax: 0.10.0
libtpu: 0.0.40
codegen_flags: <defaults>
</compile_context>

<pallas_src>
import functools
import math

import jax
import jax.numpy as jnp
from jax.experimental import pallas as pl
from jax.experimental.pallas import tpu as pltpu

BN_EPS = 1e-5
_VMEM_LIMIT = 32 * 1024 * 1024  # safe scoped-VMEM cap on v5e / v6e / v7x


def _largest_divisor_leq(n, cap):
    for d in range(min(n, cap), 0, -1):
        if n % d == 0:
            return d
    return 1


# ---------------------------------------------------------------------------
# Kernel 1: farthest point sampling (whole loop in-kernel, batch-vectorized on sublanes)
# ---------------------------------------------------------------------------
def _fps_kernel(start_ref, xyz_ref, out_ref):
    x = xyz_ref[...]                                  # (3, Bblk, N) f32, lanes = points
    _, bb, n = x.shape
    npoint = out_ref.shape[1]
    lane = jax.lax.broadcasted_iota(jnp.int32, (bb, n), 1)
    slot = jax.lax.broadcasted_iota(jnp.int32, (1, npoint), 1)

    def body(i, carry):
        distance, far, cents = carry                  # (bb,n) f32, (bb,1) i32, (bb,npoint) i32
        cents = jnp.where(slot == i, far, cents)      # centroids[:, i] = farthest
        onehot = (lane == far).astype(jnp.float32)                        # (bb, n)
        centroid = jnp.sum(x * onehot[None], axis=2, keepdims=True)       # (3, bb, 1)
        d = jnp.sum(jnp.square(x - centroid), axis=0)                     # (bb, n)
        distance = jnp.minimum(distance, d)
        m = jnp.max(distance, axis=1, keepdims=True)                      # (bb, 1)
        # First-argmax (matches torch.max tie-breaking); kept as a separate reduction rather
        # than a packed sortable key to avoid truncation-induced tie changes.
        far = jnp.min(jnp.where(distance == m, lane, n),
                      axis=1, keepdims=True).astype(jnp.int32)            # (bb, 1)
        return distance, far, cents

    far0 = start_ref[...].astype(jnp.int32)           # (bb, 1) random initial farthest points
    dist0 = jnp.full((bb, n), 1e10, jnp.float32)
    cents0 = jnp.zeros((bb, npoint), jnp.int32)
    _, _, cents = jax.lax.fori_loop(0, npoint, body, (dist0, far0, cents0))
    out_ref[...] = cents


def farthest_point_sample(center_cf, npoint, start_idx):
    """center_cf: (B, 3, N) f32, start_idx: (B,) i32 -> (B, npoint) i32 sample indices."""
    B, _, N = center_cf.shape
    bblk = _largest_divisor_leq(B, 8)                 # share each XLU reduce across <=8 batches
    xyz_t = jnp.transpose(center_cf.astype(jnp.float32), (1, 0, 2))   # (3, B, N), tiny copy
    start2d = start_idx.astype(jnp.int32).reshape(B, 1)
    return pl.pallas_call(
        _fps_kernel,
        out_shape=jax.ShapeDtypeStruct((B, npoint), jnp.int32),
        grid=(B // bblk,),
        in_specs=[
            pl.BlockSpec((bblk, 1), lambda g: (g, 0)),
            pl.BlockSpec((3, bblk, N), lambda g: (0, g, 0)),
        ],
        out_specs=pl.BlockSpec((bblk, npoint), lambda g: (g, 0)),
        compiler_params=pltpu.CompilerParams(dimension_semantics=("parallel",)),
    )(start2d, xyz_t)


# ---------------------------------------------------------------------------
# Kernel 2: fused squared-distance + ball query (first nsample in-radius indices), S-tiled
# ---------------------------------------------------------------------------
def _ball_query_kernel(new_xyz_ref, xyz_ref, idx_ref, *, radius2):
    q = new_xyz_ref[0]                                # (tS, 3) query points
    p = xyz_ref[0]                                    # (3, N) source points, lanes = N
    s, n = q.shape[0], p.shape[1]
    nsample = idx_ref.shape[2]

    d2 = jnp.zeros((s, n), jnp.float32)
    for c in range(3):                                # C=3: VPU form beats a padded MXU matmul
        diff = q[:, c:c + 1] - p[c:c + 1, :]          # (tS,1)-(1,N) -> (tS,N)
        d2 = d2 + diff * diff

    lane = jax.lax.broadcasted_iota(jnp.int32, (s, n), 1)
    key = jnp.where(d2 <= radius2, lane, n)           # out-of-radius -> sentinel N
    # Valid keys in a row are distinct, strictly increasing lane indices, so the k-th smallest
    # is simply the smallest key strictly greater than the previous selection (no key mutation).
    cols = []
    prev = None
    for k in range(nsample):
        if k == 0:
            sel = jnp.min(key, axis=1, keepdims=True)                     # (tS, 1)
        else:
            sel = jnp.min(jnp.where(key > prev, key, n), axis=1, keepdims=True)
        cols.append(sel)
        prev = sel
    first = cols[0]
    first = jnp.where(first >= n, 0, first)           # row with zero in-radius points -> index 0
    fixed = [first] + [jnp.where(c >= n, first, c) for c in cols[1:]]
    idx_ref[0] = jnp.concatenate(fixed, axis=1)       # (tS, nsample)


def _pick_ballquery_tile(S, N, budget_bytes=6 * 1024 * 1024):
    # working set ~ 2 x (tS, N) f32/i32 matrices resident at once
    for cand in (512, 256, 128, 64, 32, 16, 8):
        if cand <= S and S % cand == 0 and 2 * cand * N * 4 <= budget_bytes:
            return cand
    return S


def query_ball_point(radius, nsample, center_cf, new_center):
    """center_cf: (B,3,N); new_center: (B,S,3) -> (B, S, nsample) i32 group indices."""
    B, _, N = center_cf.shape
    S = new_center.shape[1]
    ts = _pick_ballquery_tile(S, N)
    return pl.pallas_call(
        functools.partial(_ball_query_kernel, radius2=float(radius) ** 2),
        out_shape=jax.ShapeDtypeStruct((B, S, nsample), jnp.int32),
        grid=(B, S // ts),
        in_specs=[
            pl.BlockSpec((1, ts, 3), lambda b, s: (b, s, 0)),
            pl.BlockSpec((1, 3, N), lambda b, s: (b, 0, 0)),
        ],
        out_specs=pl.BlockSpec((1, ts, nsample), lambda b, s: (b, s, 0)),
        compiler_params=pltpu.CompilerParams(
            dimension_semantics=("parallel", "parallel"),
            vmem_limit_bytes=_VMEM_LIMIT),
    )(new_center.astype(jnp.float32), center_cf.astype(jnp.float32))


# ---------------------------------------------------------------------------
# Kernel 3: fused pointwise-MLP (conv1x1 + folded BN + ReLU chain) + max over neighbours,
#           neighbour axis K folded into the block (no K grid axis, no output RMW).
# ---------------------------------------------------------------------------
def _group_mlp_max_kernel(x_ref, *refs, n_layers):
    o_ref = refs[2 * n_layers]
    x = x_ref[0]                                      # (ts, K, C0) bf16
    ts, k, c0 = x.shape
    h = x.reshape(ts * k, c0)                         # one big MXU-friendly (ts*K, C0) slab
    for i in range(n_layers):
        w = refs[2 * i][...]                          # (Cin, Cout) bf16, BN folded in
        bias = refs[2 * i + 1][...]                   # (1, Cout) f32, BN folded in
        y = jnp.dot(h, w, preferred_element_type=jnp.float32) + bias
        y = jnp.maximum(y, 0.0)                       # ReLU (f32)
        h = y.astype(jnp.bfloat16) if i + 1 < n_layers else y
    o_ref[0] = jnp.max(h.reshape(ts, k, h.shape[-1]), axis=1)   # max over neighbours


def _pick_mlp_tile(S, K, c0, widths, budget_bytes=10 * 1024 * 1024):
    cmax = max([128, c0] + list(widths))

    def est(ts):
        inp = ts * K * max(c0, 128) * 2 * 2           # bf16 input block, double-buffered
        mid = ts * K * cmax * 4 * 2                   # f32 intermediates
        out = ts * max(widths[-1], 128) * 4 * 2       # f32 output block, double-buffered
        return inp + mid + out

    for cand in (1024, 512, 256, 128, 64, 32, 16, 8):
        if cand <= S and S % cand == 0 and est(cand) <= budget_bytes:
            return cand
    return S


def group_mlp_maxpool(new_feature, weights, biases):
    """new_feature: (B,S,K,C0) -> (B,S,C_last) f32 = max_k MLP(new_feature[:, :, k, :])."""
    B, S, K, C0 = new_feature.shape
    n_layers = len(weights)
    widths = [w.shape[1] for w in weights]
    c_last = widths[-1]
    ts = _pick_mlp_tile(S, K, C0, widths)
    x = new_feature.astype(jnp.bfloat16)              # halve input DMA bytes; native layout

    in_specs = [pl.BlockSpec((1, ts, K, C0), lambda b, s: (b, s, 0, 0))]
    args = [x]
    for w, bias in zip(weights, biases):
        in_specs.append(pl.BlockSpec(w.shape, lambda b, s: (0, 0)))
        in_specs.append(pl.BlockSpec(bias.shape, lambda b, s: (0, 0)))
        args.extend([w, bias])

    return pl.pallas_call(
        functools.partial(_group_mlp_max_kernel, n_layers=n_layers),
        out_shape=jax.ShapeDtypeStruct((B, S, c_last), jnp.float32),
        grid=(B, S // ts),
        in_specs=in_specs,
        out_specs=pl.BlockSpec((1, ts, c_last), lambda b, s: (b, s, 0)),
        compiler_params=pltpu.CompilerParams(
            dimension_semantics=("parallel", "parallel"),
            vmem_limit_bytes=_VMEM_LIMIT),
    )(*args)


# ---------------------------------------------------------------------------
# Plain-JAX glue
# ---------------------------------------------------------------------------
def index_points(points, idx):
    """points: (B,N,C); idx: (B,S)->(B,S,C) or idx: (B,S,K)->(B,S,K,C)."""
    if idx.ndim == 2:
        return jnp.take_along_axis(points, idx[..., None], axis=1)
    B, S, K = idx.shape
    flat = idx.reshape(B, S * K)
    out = jnp.take_along_axis(points, flat[..., None], axis=1)
    return out.reshape(B, S, K, points.shape[-1])


def xyz2sphere(xyz, normalize=True):
    rho = jnp.sqrt(jnp.sum(jnp.square(xyz), axis=-1, keepdims=True))
    safe = jnp.where(rho == 0, 1.0, rho)
    theta = jnp.arccos(jnp.clip(xyz[..., 2:3] / safe, -1.0, 1.0))
    theta = jnp.where(rho == 0, 0.0, theta)
    phi = jnp.arctan2(xyz[..., 1:2], xyz[..., 0:1])
    if normalize:
        theta = theta / jnp.pi
        phi = phi / (2 * jnp.pi) + 0.5
    return jnp.concatenate([rho, theta, phi], axis=-1)


def _fold_bn(p):
    """Fold eval-mode BatchNorm (running stats) into the preceding 1x1 conv: y = x @ W' + b'."""
    scale = p["gamma"] / jnp.sqrt(p["var"] + BN_EPS)
    w = p["W"] * scale[None, :]
    b = (p["b"] - p["mean"]) * scale + p["beta"]
    return w, b


# ---------------------------------------------------------------------------
# SurfaceAbstractionCD forward
# ---------------------------------------------------------------------------
def make_surface_abstraction_cd(npoint, radius, nsample, feat_channel, pos_channel, mlp,
                                group_all, return_normal=True, return_polar=False):
    del feat_channel, mlp  # implied by params / inputs; kept for signature parity

    def forward(params, center_cf, normal_cf, feature_cf, fps_start):
        center = jnp.transpose(center_cf, (0, 2, 1)).astype(jnp.float32)   # (B,N,3)
        normal = jnp.transpose(normal_cf, (0, 2, 1)).astype(jnp.float32)   # (B,N,Cn)
        feature = (jnp.transpose(feature_cf, (0, 2, 1)).astype(jnp.float32)
                   if feature_cf is not None else None)
        B = center.shape[0]

        if group_all:
            new_center = jnp.zeros((B, 1, 3), jnp.float32)
            new_normal = new_center
            group_center = center[:, None]                                  # (B,1,N,3)
            group_normal = normal[:, None]
            if return_polar:
                group_center = jnp.concatenate([group_center, xyz2sphere(group_center)], -1)
            if return_normal:
                parts = [group_center, group_normal, feature[:, None]]
            else:
                parts = [group_center, feature[:, None]]
            new_feature = jnp.concatenate(parts, -1)        # (B,1,N,C) -> K=N folded in kernel
        else:
            fps_idx = farthest_point_sample(center_cf.astype(jnp.float32), npoint, fps_start)
            new_center = index_points(center, fps_idx)                      # (B,S,3)
            new_normal = index_points(normal, fps_idx)                      # (B,S,Cn)
            idx = query_ball_point(radius, nsample, center_cf.astype(jnp.float32), new_center)
            group_normal = index_points(normal, idx)                        # (B,S,K,Cn)
            group_center = index_points(center, idx)                        # (B,S,K,3)
            group_center_norm = group_center - new_center[:, :, None, :]
            if return_polar:
                group_center_norm = jnp.concatenate(
                    [group_center_norm, xyz2sphere(group_center_norm)], -1)
            if feature is not None:
                group_feature = index_points(feature, idx)
                parts = ([group_center_norm, group_normal, group_feature] if return_normal
                         else [group_center_norm, group_feature])
            else:
                parts = [group_center_norm, group_normal]
            new_feature = jnp.concatenate(parts, -1)                        # (B,S,K,C_total)

        # Fold eval-mode BN into the pointwise convs.  The first layer (loc + feat branch sum)
        # is a single matmul over the concatenated channels: bn_l0(mlp_l0(x_pos)) +
        # bn_f0(mlp_f0(x_feat)) == x_full @ [Wl'; Wf'] + (bl' + bf').
        assert params["mlp_l0"]["W"].shape[0] == pos_channel
        wl, bl = _fold_bn(params["mlp_l0"])
        wf, bf = _fold_bn(params["mlp_f0"])
        weights = [jnp.concatenate([wl, wf], axis=0)]
        biases = [bl + bf]
        for lp in params["mlp_convs"]:
            w, b = _fold_bn(lp)
            weights.append(w)
            biases.append(b)
        assert weights[0].shape[0] == new_feature.shape[-1], (
            "pos_channel + feat_channel must match the grouped feature channels")
        weights = [w.astype(jnp.bfloat16) for w in weights]                 # bf16 MXU operands
        biases = [b.reshape(1, -1).astype(jnp.float32) for b in biases]

        out_feat = group_mlp_maxpool(new_feature, weights, biases)          # (B,S,C_last)

        return (jnp.transpose(new_center, (0, 2, 1)),      # (B, 3, S)
                jnp.transpose(new_normal, (0, 2, 1)),      # (B, Cn, S)  (or (B,3,1) if group_all)
                jnp.transpose(out_feat, (0, 2, 1)))        # (B, C_last, S)

    return forward


# ---------------------------------------------------------------------------
# Deterministic parameter init (PyTorch Conv2d(k=1) uniform bounds, fresh BN stats)
# ---------------------------------------------------------------------------
class _KeyGen:
    def __init__(self, key):
        self._key = key

    def __call__(self):
        self._key, sub = jax.random.split(self._key)
        return sub


def _init_conv_bn(kg, cin, cout):
    bound = 1.0 / math.sqrt(cin)
    return {
        "W": jax.random.uniform(kg(), (cin, cout), jnp.float32, -bound, bound),
        "b": jax.random.uniform(kg(), (cout,), jnp.float32, -bound, bound),
        "gamma": jnp.ones((cout,), jnp.float32),
        "beta": jnp.zeros((cout,), jnp.float32),
        "mean": jnp.zeros((cout,), jnp.float32),   # BN running stats (eval mode)
        "var": jnp.ones((cout,), jnp.float32),
    }


def init_params(key, pos_channel, feat_channel, mlp):
    kg = _KeyGen(key)
    return {
        "mlp_l0": _init_conv_bn(kg, pos_channel, mlp[0]),
        "mlp_f0": _init_conv_bn(kg, feat_channel, mlp[0]),
        "mlp_convs": [_init_conv_bn(kg, mlp[i], mlp[i + 1]) for i in range(len(mlp) - 1)],
    }


if __name__ == "__main__":
    key = jax.random.PRNGKey(0)
    k_c, k_n, k_f, k_s, k_p = jax.random.split(key, 5)

    # Small config exercising the main (group_all=False) path: FPS + ball query + MLP + max.
    B, N = 2, 128
    npoint, radius, nsample = 64, 0.9, 16
    normal_channels, feature_channels = 10, 32
    pos_channel = 3                                   # return_polar=False
    feat_channel = normal_channels + feature_channels
    mlp = [64, 128]

    center = jax.random.normal(k_c, (B, 3, N), jnp.float32)                # channel-first
    normal = jax.random.normal(k_n, (B, normal_channels, N), jnp.float32)
    feature = jax.random.normal(k_f, (B, feature_channels, N), jnp.float32)
    # Random initial farthest point per batch (matches torch.randint in the reference FPS).
    fps_start = jax.random.randint(k_s, (B,), 0, N, dtype=jnp.int32)

    params = init_params(k_p, pos_channel, feat_channel, mlp)

    fwd = jax.jit(make_surface_abstraction_cd(
        npoint, radius, nsample, feat_channel, pos_channel, mlp,
        group_all=False, return_normal=True, return_polar=False))

    new_center, new_normal, new_feature = fwd(params, center, normal, feature, fps_start)
    jax.block_until_ready((new_center, new_normal, new_feature))

    assert new_center.shape == (B, 3, npoint)
    assert new_normal.shape == (B, normal_channels, npoint)
    assert new_feature.shape == (B, mlp[-1], npoint)
    assert bool(jnp.all(jnp.isfinite(new_feature)))
    print("KERNEL_OK")
</pallas_src>

<mosaic_0001>
module attributes {stable_mosaic.version = 11 : i64} {
  func.func @_ball_query_kernel(%arg0: i32, %arg1: i32, %arg2: memref<1x64x3xf32, #tpu.memory_space<vmem>>, %arg3: memref<1x3x128xf32, #tpu.memory_space<vmem>>, %arg4: memref<1x64x16xi32, #tpu.memory_space<vmem>>) attributes {dimension_semantics = [#tpu.dimension_semantics<parallel>, #tpu.dimension_semantics<parallel>], iteration_bounds = array<i64: 2, 1>, scalar_prefetch = 0 : i64, scratch_operands = 0 : i64, tpu.core_type = #tpu.core_type<tc>, window_params = [{transform_indices = @transform_0, window_bounds = array<i64: 1, 64, 3>}, {transform_indices = @transform_1, window_bounds = array<i64: 1, 3, 128>}, {transform_indices = @transform_2, window_bounds = array<i64: 1, 64, 16>}]} {
    %c0 = arith.constant 0 : index
    %c0_0 = arith.constant 0 : index
    %c0_1 = arith.constant 0 : index
    %0 = vector.load %arg2[%c0, %c0_0, %c0_1] : memref<1x64x3xf32, #tpu.memory_space<vmem>>, vector<1x64x3xf32>
    %1 = vector.shape_cast %0 : vector<1x64x3xf32> to vector<64x3xf32>
    %c0_2 = arith.constant 0 : index
    %c0_3 = arith.constant 0 : index
    %c0_4 = arith.constant 0 : index
    %2 = vector.load %arg3[%c0_2, %c0_3, %c0_4] : memref<1x3x128xf32, #tpu.memory_space<vmem>>, vector<1x3x128xf32>
    %3 = vector.shape_cast %2 : vector<1x3x128xf32> to vector<3x128xf32>
    %cst = arith.constant 0.000000e+00 : f32
    %4 = vector.broadcast %cst : f32 to vector<64x128xf32>
    %5 = vector.extract_strided_slice %1 {offsets = [0, 0], sizes = [64, 1], strides = [1, 1]} : vector<64x3xf32> to vector<64x1xf32>
    %6 = vector.extract_strided_slice %3 {offsets = [0, 0], sizes = [1, 128], strides = [1, 1]} : vector<3x128xf32> to vector<1x128xf32>
    %7 = vector.broadcast %5 : vector<64x1xf32> to vector<64x128xf32>
    %8 = vector.broadcast %6 : vector<1x128xf32> to vector<64x128xf32>
    %9 = arith.subf %7, %8 : vector<64x128xf32>
    %10 = arith.mulf %9, %9 : vector<64x128xf32>
    %11 = arith.addf %4, %10 : vector<64x128xf32>
    %12 = vector.extract_strided_slice %1 {offsets = [0, 1], sizes = [64, 1], strides = [1, 1]} : vector<64x3xf32> to vector<64x1xf32>
    %13 = vector.extract_strided_slice %3 {offsets = [1, 0], sizes = [1, 128], strides = [1, 1]} : vector<3x128xf32> to vector<1x128xf32>
    %14 = vector.broadcast %12 : vector<64x1xf32> to vector<64x128xf32>
    %15 = vector.broadcast %13 : vector<1x128xf32> to vector<64x128xf32>
    %16 = arith.subf %14, %15 : vector<64x128xf32>
    %17 = arith.mulf %16, %16 : vector<64x128xf32>
    %18 = arith.addf %11, %17 : vector<64x128xf32>
    %19 = vector.extract_strided_slice %1 {offsets = [0, 2], sizes = [64, 1], strides = [1, 1]} : vector<64x3xf32> to vector<64x1xf32>
    %20 = vector.extract_strided_slice %3 {offsets = [2, 0], sizes = [1, 128], strides = [1, 1]} : vector<3x128xf32> to vector<1x128xf32>
    %21 = vector.broadcast %19 : vector<64x1xf32> to vector<64x128xf32>
    %22 = vector.broadcast %20 : vector<1x128xf32> to vector<64x128xf32>
    %23 = arith.subf %21, %22 : vector<64x128xf32>
    %24 = arith.mulf %23, %23 : vector<64x128xf32>
    %25 = arith.addf %18, %24 : vector<64x128xf32>
    %26 = tpu.iota {dimensions = array<i32: 1>} : vector<64x128xi32>
    %cst_5 = arith.constant 8.100000e-01 : f32
    %27 = vector.broadcast %cst_5 : f32 to vector<64x128xf32>
    %28 = arith.cmpf ole, %25, %27 : vector<64x128xf32>
    %c128_i32 = arith.constant 128 : i32
    %29 = vector.broadcast %c128_i32 : i32 to vector<64x128xi32>
    %30 = arith.select %28, %26, %29 : vector<64x128xi1>, vector<64x128xi32>
    %cst_6 = arith.constant dense<2147483647> : vector<64xi32>
    %31 = vector.multi_reduction <minsi>, %30, %cst_6 [1] : vector<64x128xi32> to vector<64xi32>
    %32 = vector.shape_cast %31 : vector<64xi32> to vector<64x1xi32>
    %33 = vector.broadcast %32 : vector<64x1xi32> to vector<64x128xi32>
    %34 = arith.cmpi sgt, %30, %33 : vector<64x128xi32>
    %c128_i32_7 = arith.constant 128 : i32
    %35 = vector.broadcast %c128_i32_7 : i32 to vector<64x128xi32>
    %36 = arith.select %34, %30, %35 : vector<64x128xi1>, vector<64x128xi32>
    %cst_8 = arith.constant dense<2147483647> : vector<64xi32>
    %37 = vector.multi_reduction <minsi>, %36, %cst_8 [1] : vector<64x128xi32> to vector<64xi32>
    %38 = vector.shape_cast %37 : vector<64xi32> to vector<64x1xi32>
    %39 = vector.broadcast %38 : vector<64x1xi32> to vector<64x128xi32>
    %40 = arith.cmpi sgt, %30, %39 : vector<64x128xi32>
    %c128_i32_9 = arith.constant 128 : i32
    %41 = vector.broadcast %c128_i32_9 : i32 to vector<64x128xi32>
    %42 = arith.select %40, %30, %41 : vector<64x128xi1>, vector<64x128xi32>
    %cst_10 = arith.constant dense<2147483647> : vector<64xi32>
    %43 = vector.multi_reduction <minsi>, %42, %cst_10 [1] : vector<64x128xi32> to vector<64xi32>
    %44 = vector.shape_cast %43 : vector<64xi32> to vector<64x1xi32>
    %45 = vector.broadcast %44 : vector<64x1xi32> to vector<64x128xi32>
    %46 = arith.cmpi sgt, %30, %45 : vector<64x128xi32>
    %c128_i32_11 = arith.constant 128 : i32
    %47 = vector.broadcast %c128_i32_11 : i32 to vector<64x128xi32>
    %48 = arith.select %46, %30, %47 : vector<64x128xi1>, vector<64x128xi32>
    %cst_12 = arith.constant dense<2147483647> : vector<64xi32>
    %49 = vector.multi_reduction <minsi>, %48, %cst_12 [1] : vector<64x128xi32> to vector<64xi32>
    %50 = vector.shape_cast %49 : vector<64xi32> to vector<64x1xi32>
    %51 = vector.broadcast %50 : vector<64x1xi32> to vector<64x128xi32>
    %52 = arith.cmpi sgt, %30, %51 : vector<64x128xi32>
    %c128_i32_13 = arith.constant 128 : i32
    %53 = vector.broadcast %c128_i32_13 : i32 to vector<64x128xi32>
    %54 = arith.select %52, %30, %53 : vector<64x128xi1>, vector<64x128xi32>
    %cst_14 = arith.constant dense<2147483647> : vector<64xi32>
    %55 = vector.multi_reduction <minsi>, %54, %cst_14 [1] : vector<64x128xi32> to vector<64xi32>
    %56 = vector.shape_cast %55 : vector<64xi32> to vector<64x1xi32>
    %57 = vector.broadcast %56 : vector<64x1xi32> to vector<64x128xi32>
    %58 = arith.cmpi sgt, %30, %57 : vector<64x128xi32>
    %c128_i32_15 = arith.constant 128 : i32
    %59 = vector.broadcast %c128_i32_15 : i32 to vector<64x128xi32>
    %60 = arith.select %58, %30, %59 : vector<64x128xi1>, vector<64x128xi32>
    %cst_16 = arith.constant dense<2147483647> : vector<64xi32>
    %61 = vector.multi_reduction <minsi>, %60, %cst_16 [1] : vector<64x128xi32> to vector<64xi32>
    %62 = vector.shape_cast %61 : vector<64xi32> to vector<64x1xi32>
    %63 = vector.broadcast %62 : vector<64x1xi32> to vector<64x128xi32>
    %64 = arith.cmpi sgt, %30, %63 : vector<64x128xi32>
    %c128_i32_17 = arith.constant 128 : i32
    %65 = vector.broadcast %c128_i32_17 : i32 to vector<64x128xi32>
    %66 = arith.select %64, %30, %65 : vector<64x128xi1>, vector<64x128xi32>
    %cst_18 = arith.constant dense<2147483647> : vector<64xi32>
    %67 = vector.multi_reduction <minsi>, %66, %cst_18 [1] : vector<64x128xi32> to vector<64xi32>
    %68 = vector.shape_cast %67 : vector<64xi32> to vector<64x1xi32>
    %69 = vector.broadcast %68 : vector<64x1xi32> to vector<64x128xi32>
    %70 = arith.cmpi sgt, %30, %69 : vector<64x128xi32>
    %c128_i32_19 = arith.constant 128 : i32
    %71 = vector.broadcast %c128_i32_19 : i32 to vector<64x128xi32>
    %72 = arith.select %70, %30, %71 : vector<64x128xi1>, vector<64x128xi32>
    %cst_20 = arith.constant dense<2147483647> : vector<64xi32>
    %73 = vector.multi_reduction <minsi>, %72, %cst_20 [1] : vector<64x128xi32> to vector<64xi32>
    %74 = vector.shape_cast %73 : vector<64xi32> to vector<64x1xi32>
    %75 = vector.broadcast %74 : vector<64x1xi32> to vector<64x128xi32>
    %76 = arith.cmpi sgt, %30, %75 : vector<64x128xi32>
    %c128_i32_21 = arith.constant 128 : i32
    %77 = vector.broadcast %c128_i32_21 : i32 to vector<64x128xi32>
    %78 = arith.select %76, %30, %77 : vector<64x128xi1>, vector<64x128xi32>
    %cst_22 = arith.constant dense<2147483647> : vector<64xi32>
    %79 = vector.multi_reduction <minsi>, %78, %cst_22 [1] : vector<64x128xi32> to vector<64xi32>
    %80 = vector.shape_cast %79 : vector<64xi32> to vector<64x1xi32>
    %81 = vector.broadcast %80 : vector<64x1xi32> to vector<64x128xi32>
    %82 = arith.cmpi sgt, %30, %81 : vector<64x128xi32>
    %c128_i32_23 = arith.constant 128 : i32
    %83 = vector.broadcast %c128_i32_23 : i32 to vector<64x128xi32>
    %84 = arith.select %82, %30, %83 : vector<64x128xi1>, vector<64x128xi32>
    %cst_24 = arith.constant dense<2147483647> : vector<64xi32>
    %85 = vector.multi_reduction <minsi>, %84, %cst_24 [1] : vector<64x128xi32> to vector<64xi32>
    %86 = vector.shape_cast %85 : vector<64xi32> to vector<64x1xi32>
    %87 = vector.broadcast %86 : vector<64x1xi32> to vector<64x128xi32>
    %88 = arith.cmpi sgt, %30, %87 : vector<64x128xi32>
    %c128_i32_25 = arith.constant 128 : i32
    %89 = vector.broadcast %c128_i32_25 : i32 to vector<64x128xi32>
    %90 = arith.select %88, %30, %89 : vector<64x128xi1>, vector<64x128xi32>
    %cst_26 = arith.constant dense<2147483647> : vector<64xi32>
    %91 = vector.multi_reduction <minsi>, %90, %cst_26 [1] : vector<64x128xi32> to vector<64xi32>
    %92 = vector.shape_cast %91 : vector<64xi32> to vector<64x1xi32>
    %93 = vector.broadcast %92 : vector<64x1xi32> to vector<64x128xi32>
    %94 = arith.cmpi sgt, %30, %93 : vector<64x128xi32>
    %c128_i32_27 = arith.constant 128 : i32
    %95 = vector.broadcast %c128_i32_27 : i32 to vector<64x128xi32>
    %96 = arith.select %94, %30, %95 : vector<64x128xi1>, vector<64x128xi32>
    %cst_28 = arith.constant dense<2147483647> : vector<64xi32>
    %97 = vector.multi_reduction <minsi>, %96, %cst_28 [1] : vector<64x128xi32> to vector<64xi32>
    %98 = vector.shape_cast %97 : vector<64xi32> to vector<64x1xi32>
    %99 = vector.broadcast %98 : vector<64x1xi32> to vector<64x128xi32>
    %100 = arith.cmpi sgt, %30, %99 : vector<64x128xi32>
    %c128_i32_29 = arith.constant 128 : i32
    %101 = vector.broadcast %c128_i32_29 : i32 to vector<64x128xi32>
    %102 = arith.select %100, %30, %101 : vector<64x128xi1>, vector<64x128xi32>
    %cst_30 = arith.constant dense<2147483647> : vector<64xi32>
    %103 = vector.multi_reduction <minsi>, %102, %cst_30 [1] : vector<64x128xi32> to vector<64xi32>
    %104 = vector.shape_cast %103 : vector<64xi32> to vector<64x1xi32>
    %105 = vector.broadcast %104 : vector<64x1xi32> to vector<64x128xi32>
    %106 = arith.cmpi sgt, %30, %105 : vector<64x128xi32>
    %c128_i32_31 = arith.constant 128 : i32
    %107 = vector.broadcast %c128_i32_31 : i32 to vector<64x128xi32>
    %108 = arith.select %106, %30, %107 : vector<64x128xi1>, vector<64x128xi32>
    %cst_32 = arith.constant dense<2147483647> : vector<64xi32>
    %109 = vector.multi_reduction <minsi>, %108, %cst_32 [1] : vector<64x128xi32> to vector<64xi32>
    %110 = vector.shape_cast %109 : vector<64xi32> to vector<64x1xi32>
    %111 = vector.broadcast %110 : vector<64x1xi32> to vector<64x128xi32>
    %112 = arith.cmpi sgt, %30, %111 : vector<64x128xi32>
    %c128_i32_33 = arith.constant 128 : i32
    %113 = vector.broadcast %c128_i32_33 : i32 to vector<64x128xi32>
    %114 = arith.select %112, %30, %113 : vector<64x128xi1>, vector<64x128xi32>
    %cst_34 = arith.constant dense<2147483647> : vector<64xi32>
    %115 = vector.multi_reduction <minsi>, %114, %cst_34 [1] : vector<64x128xi32> to vector<64xi32>
    %116 = vector.shape_cast %115 : vector<64xi32> to vector<64x1xi32>
    %117 = vector.broadcast %116 : vector<64x1xi32> to vector<64x128xi32>
    %118 = arith.cmpi sgt, %30, %117 : vector<64x128xi32>
    %c128_i32_35 = arith.constant 128 : i32
    %119 = vector.broadcast %c128_i32_35 : i32 to vector<64x128xi32>
    %120 = arith.select %118, %30, %119 : vector<64x128xi1>, vector<64x128xi32>
    %cst_36 = arith.constant dense<2147483647> : vector<64xi32>
    %121 = vector.multi_reduction <minsi>, %120, %cst_36 [1] : vector<64x128xi32> to vector<64xi32>
    %122 = vector.shape_cast %121 : vector<64xi32> to vector<64x1xi32>
    %c128_i32_37 = arith.constant 128 : i32
    %123 = vector.broadcast %c128_i32_37 : i32 to vector<64x1xi32>
    %124 = arith.cmpi sge, %32, %123 : vector<64x1xi32>
    %c0_i32 = arith.constant 0 : i32
    %125 = vector.broadcast %c0_i32 : i32 to vector<64x1xi32>
    %126 = arith.select %124, %125, %32 : vector<64x1xi1>, vector<64x1xi32>
    %c128_i32_38 = arith.constant 128 : i32
    %127 = vector.broadcast %c128_i32_38 : i32 to vector<64x1xi32>
    %128 = arith.cmpi sge, %38, %127 : vector<64x1xi32>
    %129 = arith.select %128, %126, %38 : vector<64x1xi1>, vector<64x1xi32>
    %c128_i32_39 = arith.constant 128 : i32
    %130 = vector.broadcast %c128_i32_39 : i32 to vector<64x1xi32>
    %131 = arith.cmpi sge, %44, %130 : vector<64x1xi32>
    %132 = arith.select %131, %126, %44 : vector<64x1xi1>, vector<64x1xi32>
    %c128_i32_40 = arith.constant 128 : i32
    %133 = vector.broadcast %c128_i32_40 : i32 to vector<64x1xi32>
    %134 = arith.cmpi sge, %50, %133 : vector<64x1xi32>
    %135 = arith.select %134, %126, %50 : vector<64x1xi1>, vector<64x1xi32>
    %c128_i32_41 = arith.constant 128 : i32
    %136 = vector.broadcast %c128_i32_41 : i32 to vector<64x1xi32>
    %137 = arith.cmpi sge, %56, %136 : vector<64x1xi32>
    %138 = arith.select %137, %126, %56 : vector<64x1xi1>, vector<64x1xi32>
    %c128_i32_42 = arith.constant 128 : i32
    %139 = vector.broadcast %c128_i32_42 : i32 to vector<64x1xi32>
    %140 = arith.cmpi sge, %62, %139 : vector<64x1xi32>
    %141 = arith.select %140, %126, %62 : vector<64x1xi1>, vector<64x1xi32>
    %c128_i32_43 = arith.constant 128 : i32
    %142 = vector.broadcast %c128_i32_43 : i32 to vector<64x1xi32>
    %143 = arith.cmpi sge, %68, %142 : vector<64x1xi32>
    %144 = arith.select %143, %126, %68 : vector<64x1xi1>, vector<64x1xi32>
    %c128_i32_44 = arith.constant 128 : i32
    %145 = vector.broadcast %c128_i32_44 : i32 to vector<64x1xi32>
    %146 = arith.cmpi sge, %74, %145 : vector<64x1xi32>
    %147 = arith.select %146, %126, %74 : vector<64x1xi1>, vector<64x1xi32>
    %c128_i32_45 = arith.constant 128 : i32
    %148 = vector.broadcast %c128_i32_45 : i32 to vector<64x1xi32>
    %149 = arith.cmpi sge, %80, %148 : vector<64x1xi32>
    %150 = arith.select %149, %126, %80 : vector<64x1xi1>, vector<64x1xi32>
    %c128_i32_46 = arith.constant 128 : i32
    %151 = vector.broadcast %c128_i32_46 : i32 to vector<64x1xi32>
    %152 = arith.cmpi sge, %86, %151 : vector<64x1xi32>
    %153 = arith.select %152, %126, %86 : vector<64x1xi1>, vector<64x1xi32>
    %c128_i32_47 = arith.constant 128 : i32
    %154 = vector.broadcast %c128_i32_47 : i32 to vector<64x1xi32>
    %155 = arith.cmpi sge, %92, %154 : vector<64x1xi32>
    %156 = arith.select %155, %126, %92 : vector<64x1xi1>, vector<64x1xi32>
    %c128_i32_48 = arith.constant 128 : i32
    %157 = vector.broadcast %c128_i32_48 : i32 to vector<64x1xi32>
    %158 = arith.cmpi sge, %98, %157 : vector<64x1xi32>
    %159 = arith.select %158, %126, %98 : vector<64x1xi1>, vector<64x1xi32>
    %c128_i32_49 = arith.constant 128 : i32
    %160 = vector.broadcast %c128_i32_49 : i32 to vector<64x1xi32>
    %161 = arith.cmpi sge, %104, %160 : vector<64x1xi32>
    %162 = arith.select %161, %126, %104 : vector<64x1xi1>, vector<64x1xi32>
    %c128_i32_50 = arith.constant 128 : i32
    %163 = vector.broadcast %c128_i32_50 : i32 to vector<64x1xi32>
    %164 = arith.cmpi sge, %110, %163 : vector<64x1xi32>
    %165 = arith.select %164, %126, %110 : vector<64x1xi1>, vector<64x1xi32>
    %c128_i32_51 = arith.constant 128 : i32
    %166 = vector.broadcast %c128_i32_51 : i32 to vector<64x1xi32>
    %167 = arith.cmpi sge, %116, %166 : vector<64x1xi32>
    %168 = arith.select %167, %126, %116 : vector<64x1xi1>, vector<64x1xi32>
    %c128_i32_52 = arith.constant 128 : i32
    %169 = vector.broadcast %c128_i32_52 : i32 to vector<64x1xi32>
    %170 = arith.cmpi sge, %122, %169 : vector<64x1xi32>
    %171 = arith.select %170, %126, %122 : vector<64x1xi1>, vector<64x1xi32>
    %172 = tpu.concatenate %126, %129, %132, %135, %138, %141, %144, %147, %150, %153, %156, %159, %162, %165, %168, %171 in 1 : vector<64x1xi32>, vector<64x1xi32>, vector<64x1xi32>, vector<64x1xi32>, vector<64x1xi32>, vector<64x1xi32>, vector<64x1xi32>, vector<64x1xi32>, vector<64x1xi32>, vector<64x1xi32>, vector<64x1xi32>, vector<64x1xi32>, vector<64x1xi32>, vector<64x1xi32>, vector<64x1xi32>, vector<64x1xi32> -> vector<64x16xi32>
    %c0_53 = arith.constant 0 : index
    %c0_54 = arith.constant 0 : index
    %c0_55 = arith.constant 0 : index
    %173 = vector.load %arg4[%c0_53, %c0_54, %c0_55] : memref<1x64x16xi32, #tpu.memory_space<vmem>>, vector<1x64x16xi32>
    %174 = vector.shape_cast %173 : vector<1x64x16xi32> to vector<64x16xi32>
    %175 = vector.shape_cast %172 : vector<64x16xi32> to vector<1x64x16xi32>
    tpu.vector_store %arg4[%c0_53, %c0_54, %c0_55], %175 {strides = array<i32>} : memref<1x64x16xi32, #tpu.memory_space<vmem>>, vector<1x64x16xi32>,
    return
  }
  func.func @transform_0(%arg0: i32, %arg1: i32) -> (i32, i32, i32) {
    %c0_i32 = arith.constant 0 : i32
    %c0_i32_0 = arith.constant 0 : i32
    return %arg0, %arg1, %c0_i32 : i32, i32, i32
  }
  func.func @transform_1(%arg0: i32, %arg1: i32) -> (i32, i32, i32) {
    %c0_i32 = arith.constant 0 : i32
    %c0_i32_0 = arith.constant 0 : i32
    %c0_i32_1 = arith.constant 0 : i32
    return %arg0, %c0_i32, %c0_i32_0 : i32, i32, i32
  }
  func.func @transform_2(%arg0: i32, %arg1: i32) -> (i32, i32, i32) {
    %c0_i32 = arith.constant 0 : i32
    %c0_i32_0 = arith.constant 0 : i32
    return %arg0, %arg1, %c0_i32 : i32, i32, i32
  }
}

module attributes {stable_mosaic.version = 11 : i64} {
  func.func @_fps_kernel(%arg0: i32, %arg1: memref<2x1xi32, #tpu.memory_space<vmem>>, %arg2: memref<3x2x128xf32, #tpu.memory_space<vmem>>, %arg3: memref<2x64xi32, #tpu.memory_space<vmem>>) attributes {dimension_semantics = [#tpu.dimension_semantics<parallel>], iteration_bounds = array<i64: 1>, scalar_prefetch = 0 : i64, scratch_operands = 0 : i64, tpu.core_type = #tpu.core_type<tc>, window_params = [{transform_indices = @transform_0, window_bounds = array<i64: 2, 1>}, {transform_indices = @transform_1, window_bounds = array<i64: 3, 2, 128>}, {transform_indices = @transform_2, window_bounds = array<i64: 2, 64>}]} {
    %c0 = arith.constant 0 : index
    %c0_0 = arith.constant 0 : index
    %c0_1 = arith.constant 0 : index
    %0 = vector.load %arg2[%c0, %c0_0, %c0_1] : memref<3x2x128xf32, #tpu.memory_space<vmem>>, vector<3x2x128xf32>
    %1 = tpu.iota {dimensions = array<i32: 1>} : vector<2x128xi32>
    %2 = tpu.iota {dimensions = array<i32: 1>} : vector<1x64xi32>
    %c0_2 = arith.constant 0 : index
    %c0_3 = arith.constant 0 : index
    %3 = vector.load %arg1[%c0_2, %c0_3] : memref<2x1xi32, #tpu.memory_space<vmem>>, vector<2x1xi32>
    %cst = arith.constant 1.000000e+10 : f32
    %4 = vector.broadcast %cst : f32 to vector<2x128xf32>
    %c0_i32 = arith.constant 0 : i32
    %5 = vector.broadcast %c0_i32 : i32 to vector<2x64xi32>
    %c0_i32_4 = arith.constant 0 : i32
    %c64_i32 = arith.constant 64 : i32
    %6 = arith.addi %c0_i32_4, %c64_i32 : i32
    %c1_i32 = arith.constant 1 : i32
    %7:3 = scf.for %arg4 = %c0_i32_4 to %6 step %c1_i32 iter_args(%arg5 = %4, %arg6 = %3, %arg7 = %5) -> (vector<2x128xf32>, vector<2x1xi32>, vector<2x64xi32>)  : i32 {
      %9 = vector.broadcast %arg4 : i32 to vector<1x64xi32>
      %10 = arith.cmpi eq, %2, %9 : vector<1x64xi32>
      %11 = vector.shape_cast %10 : vector<1x64xi1> to vector<1x64xi1>
      %12 = vector.broadcast %11 : vector<1x64xi1> to vector<2x64xi1>
      %13 = vector.shape_cast %arg6 : vector<2x1xi32> to vector<2x1xi32>
      %14 = vector.broadcast %13 : vector<2x1xi32> to vector<2x64xi32>
      %15 = arith.select %12, %14, %arg7 : vector<2x64xi1>, vector<2x64xi32>
      %16 = vector.broadcast %arg6 : vector<2x1xi32> to vector<2x128xi32>
      %17 = arith.cmpi eq, %1, %16 : vector<2x128xi32>
      %18 = arith.extui %17 : vector<2x128xi1> to vector<2x128xi32>
      %19 = arith.sitofp %18 : vector<2x128xi32> to vector<2x128xf32>
      %20 = vector.shape_cast %19 : vector<2x128xf32> to vector<1x2x128xf32>
      %21 = vector.broadcast %20 : vector<1x2x128xf32> to vector<3x2x128xf32>
      %22 = arith.mulf %0, %21 : vector<3x2x128xf32>
      %cst_8 = arith.constant dense<0.000000e+00> : vector<3x2xf32>
      %23 = vector.multi_reduction <add>, %22, %cst_8 [2] : vector<3x2x128xf32> to vector<3x2xf32>
      %24 = vector.shape_cast %23 : vector<3x2xf32> to vector<3x2x1xf32>
      %25 = vector.broadcast %24 : vector<3x2x1xf32> to vector<3x2x128xf32>
      %26 = arith.subf %0, %25 : vector<3x2x128xf32>
      %27 = arith.mulf %26, %26 : vector<3x2x128xf32>
      %cst_9 = arith.constant dense<0.000000e+00> : vector<2x128xf32>
      %28 = vector.multi_reduction <add>, %27, %cst_9 [0] : vector<3x2x128xf32> to vector<2x128xf32>
      %29 = arith.minimumf %arg5, %28 : vector<2x128xf32>
      %cst_10 = arith.constant dense<0xFF800000> : vector<2xf32>
      %30 = vector.multi_reduction <maximumf>, %29, %cst_10 [1] : vector<2x128xf32> to vector<2xf32>
      %31 = vector.shape_cast %30 : vector<2xf32> to vector<2x1xf32>
      %32 = vector.broadcast %31 : vector<2x1xf32> to vector<2x128xf32>
      %33 = arith.cmpf oeq, %29, %32 : vector<2x128xf32>
      %c128_i32 = arith.constant 128 : i32
      %34 = vector.broadcast %c128_i32 : i32 to vector<2x128xi32>
      %35 = arith.select %33, %1, %34 : vector<2x128xi1>, vector<2x128xi32>
      %cst_11 = arith.constant dense<2147483647> : vector<2xi32>
      %36 = vector.multi_reduction <minsi>, %35, %cst_11 [1] : vector<2x128xi32> to vector<2xi32>
      %37 = vector.shape_cast %36 : vector<2xi32> to vector<2x1xi32>
      scf.yield %29, %37, %15 : vector<2x128xf32>, vector<2x1xi32>, vector<2x64xi32>
    }
    %c64_i32_5 = arith.constant 64 : i32
    %c0_6 = arith.constant 0 : index
    %c0_7 = arith.constant 0 : index
    %8 = vector.load %arg3[%c0_6, %c0_7] : memref<2x64xi32, #tpu.memory_space<vmem>>, vector<2x64xi32>
    tpu.vector_store %arg3[%c0_6, %c0_7], %7#2 {strides = array<i32>} : memref<2x64xi32, #tpu.memory_space<vmem>>, vector<2x64xi32>,
    return
  }
  func.func @transform_0(%arg0: i32) -> (i32, i32) {
    %c0_i32 = arith.constant 0 : i32
    %c0_i32_0 = arith.constant 0 : i32
    return %arg0, %c0_i32 : i32, i32
  }
  func.func @transform_1(%arg0: i32) -> (i32, i32, i32) {
    %c0_i32 = arith.constant 0 : i32
    %c0_i32_0 = arith.constant 0 : i32
    %c0_i32_1 = arith.constant 0 : i32
    return %c0_i32, %arg0, %c0_i32_0 : i32, i32, i32
  }
  func.func @transform_2(%arg0: i32) -> (i32, i32) {
    %c0_i32 = arith.constant 0 : i32
    %c0_i32_0 = arith.constant 0 : i32
    return %arg0, %c0_i32 : i32, i32
  }
}

module attributes {stable_mosaic.version = 11 : i64} {
  func.func @_group_mlp_max_kernel(%arg0: i32, %arg1: i32, %arg2: memref<1x64x16x45xbf16, #tpu.memory_space<vmem>>, %arg3: memref<45x64xbf16, #tpu.memory_space<vmem>>, %arg4: memref<1x64xf32, #tpu.memory_space<vmem>>, %arg5: memref<64x128xbf16, #tpu.memory_space<vmem>>, %arg6: memref<1x128xf32, #tpu.memory_space<vmem>>, %arg7: memref<1x64x128xf32, #tpu.memory_space<vmem>>) attributes {dimension_semantics = [#tpu.dimension_semantics<parallel>, #tpu.dimension_semantics<parallel>], iteration_bounds = array<i64: 2, 1>, scalar_prefetch = 0 : i64, scratch_operands = 0 : i64, tpu.core_type = #tpu.core_type<tc>, window_params = [{transform_indices = @transform_0, window_bounds = array<i64: 1, 64, 16, 45>}, {pipeline_mode = #tpu.pipeline_mode<synchronous>, transform_indices = @transform_1, window_bounds = array<i64: 45, 64>}, {pipeline_mode = #tpu.pipeline_mode<synchronous>, transform_indices = @transform_2, window_bounds = array<i64: 1, 64>}, {pipeline_mode = #tpu.pipeline_mode<synchronous>, transform_indices = @transform_3, window_bounds = array<i64: 64, 128>}, {pipeline_mode = #tpu.pipeline_mode<synchronous>, transform_indices = @transform_4, window_bounds = array<i64: 1, 128>}, {transform_indices = @transform_5, window_bounds = array<i64: 1, 64, 128>}]} {
    %c0 = arith.constant 0 : index
    %c0_0 = arith.constant 0 : index
    %c0_1 = arith.constant 0 : index
    %c0_2 = arith.constant 0 : index
    %0 = vector.load %arg2[%c0, %c0_0, %c0_1, %c0_2] : memref<1x64x16x45xbf16, #tpu.memory_space<vmem>>, vector<1x64x16x45xbf16>
    %1 = vector.shape_cast %0 : vector<1x64x16x45xbf16> to vector<64x16x45xbf16>
    %2 = vector.shape_cast %1 : vector<64x16x45xbf16> to vector<1024x45xbf16>
    %c0_3 = arith.constant 0 : index
    %c0_4 = arith.constant 0 : index
    %3 = vector.load %arg3[%c0_3, %c0_4] : memref<45x64xbf16, #tpu.memory_space<vmem>>, vector<45x64xbf16>
    %c0_5 = arith.constant 0 : index
    %c0_6 = arith.constant 0 : index
    %4 = vector.load %arg4[%c0_5, %c0_6] : memref<1x64xf32, #tpu.memory_space<vmem>>, vector<1x64xf32>
    %cst = arith.constant dense<0.000000e+00> : vector<1024x64xf32>
    %5 = tpu.matmul %2, %3, %cst {dimension_numbers = #tpu.dot_dimension_numbers<[1], [0], [0], [1], [0, 0, 1, 1], [], []>} : vector<1024x45xbf16>, vector<45x64xbf16>, vector<1024x64xf32> -> vector<1024x64xf32>
    %6 = vector.broadcast %4 : vector<1x64xf32> to vector<1024x64xf32>
    %7 = arith.addf %5, %6 : vector<1024x64xf32>
    %cst_7 = arith.constant 0.000000e+00 : f32
    %8 = vector.broadcast %cst_7 : f32 to vector<1024x64xf32>
    %9 = arith.maximumf %7, %8 : vector<1024x64xf32>
    %10 = arith.truncf %9 : vector<1024x64xf32> to vector<1024x64xbf16>
    %c0_8 = arith.constant 0 : index
    %c0_9 = arith.constant 0 : index
    %11 = vector.load %arg5[%c0_8, %c0_9] : memref<64x128xbf16, #tpu.memory_space<vmem>>, vector<64x128xbf16>
    %c0_10 = arith.constant 0 : index
    %c0_11 = arith.constant 0 : index
    %12 = vector.load %arg6[%c0_10, %c0_11] : memref<1x128xf32, #tpu.memory_space<vmem>>, vector<1x128xf32>
    %cst_12 = arith.constant dense<0.000000e+00> : vector<1024x128xf32>
    %13 = tpu.matmul %10, %11, %cst_12 {dimension_numbers = #tpu.dot_dimension_numbers<[1], [0], [0], [1], [0, 0, 1, 1], [], []>} : vector<1024x64xbf16>, vector<64x128xbf16>, vector<1024x128xf32> -> vector<1024x128xf32>
    %14 = vector.broadcast %12 : vector<1x128xf32> to vector<1024x128xf32>
    %15 = arith.addf %13, %14 : vector<1024x128xf32>
    %cst_13 = arith.constant 0.000000e+00 : f32
    %16 = vector.broadcast %cst_13 : f32 to vector<1024x128xf32>
    %17 = arith.maximumf %15, %16 : vector<1024x128xf32>
    %18 = vector.shape_cast %17 : vector<1024x128xf32> to vector<64x16x128xf32>
    %cst_14 = arith.constant dense<0xFF800000> : vector<64x128xf32>
    %19 = vector.multi_reduction <maximumf>, %18, %cst_14 [1] : vector<64x16x128xf32> to vector<64x128xf32>
    %c0_15 = arith.constant 0 : index
    %c0_16 = arith.constant 0 : index
    %c0_17 = arith.constant 0 : index
    %20 = vector.load %arg7[%c0_15, %c0_16, %c0_17] : memref<1x64x128xf32, #tpu.memory_space<vmem>>, vector<1x64x128xf32>
    %21 = vector.shape_cast %20 : vector<1x64x128xf32> to vector<64x128xf32>
    %22 = vector.shape_cast %19 : vector<64x128xf32> to vector<1x64x128xf32>
    tpu.vector_store %arg7[%c0_15, %c0_16, %c0_17], %22 {strides = array<i32>} : memref<1x64x128xf32, #tpu.memory_space<vmem>>, vector<1x64x128xf32>,
    return
  }
  func.func @transform_0(%arg0: i32, %arg1: i32) -> (i32, i32, i32, i32) {
    %c0_i32 = arith.constant 0 : i32
    %c0_i32_0 = arith.constant 0 : i32
    %c0_i32_1 = arith.constant 0 : i32
    return %arg0, %arg1, %c0_i32, %c0_i32_0 : i32, i32, i32, i32
  }
  func.func @transform_1(%arg0: i32, %arg1: i32) -> (i32, i32) {
    %c0_i32 = arith.constant 0 : i32
    %c0_i32_0 = arith.constant 0 : i32
    %c0_i32_1 = arith.constant 0 : i32
    return %c0_i32, %c0_i32_0 : i32, i32
  }
  func.func @transform_2(%arg0: i32, %arg1: i32) -> (i32, i32) {
    %c0_i32 = arith.constant 0 : i32
    %c0_i32_0 = arith.constant 0 : i32
    %c0_i32_1 = arith.constant 0 : i32
    return %c0_i32, %c0_i32_0 : i32, i32
  }
  func.func @transform_3(%arg0: i32, %arg1: i32) -> (i32, i32) {
    %c0_i32 = arith.constant 0 : i32
    %c0_i32_0 = arith.constant 0 : i32
    %c0_i32_1 = arith.constant 0 : i32
    return %c0_i32, %c0_i32_0 : i32, i32
  }
  func.func @transform_4(%arg0: i32, %arg1: i32) -> (i32, i32) {
    %c0_i32 = arith.constant 0 : i32
    %c0_i32_0 = arith.constant 0 : i32
    %c0_i32_1 = arith.constant 0 : i32
    return %c0_i32, %c0_i32_0 : i32, i32
  }
  func.func @transform_5(%arg0: i32, %arg1: i32) -> (i32, i32, i32) {
    %c0_i32 = arith.constant 0 : i32
    %c0_i32_0 = arith.constant 0 : i32
    return %arg0, %arg1, %c0_i32 : i32, i32, i32
  }
}

</mosaic_0001>

<llo_original>
// kernel: forward.3
$region0: #{forward.3}
  #allocation0 [shape = 'u32[]', space=smem, size = 0x4, offset = 0x4, fixed_abs, tag = 'smem constant byte address 0x4 - core index']
  #allocation1 [shape = 'u32[72,128]{1,0:T(1,128)}', space=vmem, size = 0x9000, scoped, tag = 'internal scratch']
  %s0 = inlined_call_operand.vmem [shape: s32[2,1], index: 0, kind: input, shape index: {}]
  %s1 = inlined_call_operand.vmem [shape: f32[3,2,128], index: 1, kind: input, shape index: {}]
  %s2 = inlined_call_operand.vmem [shape: s32[2,64], index: 2, kind: output, shape index: {}]
  %s3 = sld [smem:[#allocation0]]
  $region25: #{forward.3} parent=0
    _
  %s5 = ssub.s32 1, %s3
  %s6 = scalar_select 0, %s5, %s3
  // Predicated region
  $region2: #{forward.3} parent=0 // pred_check
    _
  $region3: #{forward.3} parent=0 // pred_check_branch
    %8 = sbr.rel (0) target = $region5
  $region4: #{forward.3} parent=0 // pred_region
    _
  $region5: #{forward.3} parent=0 // pred_fallthru
    _
  // Predicated region
  $region6: #{forward.3} parent=0 // pred_check
    _
  $region7: #{forward.3} parent=0 // pred_check_branch
    %10 = sbr.rel (0) target = $region9
  $region8: #{forward.3} parent=0 // pred_region
    _
  $region9: #{forward.3} parent=0 // pred_fallthru
    _
  %v11 = vld [vmem:[%s1] sm:$0x3]
  %v12 = vld [vmem:[%s1 + $0x2] sm:$0x3]
  %v13 = vld [vmem:[%s1 + $0x4] sm:$0x3]
  %v14 = vlaneseq
  %v15 = vand.u32 %v14, 127
  %v16 = vld [vmem:[%s0] sm:$0x3]
  loop: start=0, step=1, limit=64
  $region10: #{forward.3} parent=0 // loop_pre_header
    _
  $region11: #{forward.3} parent=0 // loop_header
    %s18 = sphi 0, %s22
    %p19 = scmp.ge.s32.totalorder %s18, 64
    %v23 = vphi 1e+10, %v61
    %v24 = vphi %v16, %v81
    %v25 = vphi 0, %v33
  $region12: #{forward.3} parent=0 // loop_header_branch
    %21 = sbr.rel (%p19) target = $region16
  $region13: #{forward.3} parent=0 // loop_body
    %v26 = vstv %s18
    %vm27 = vcmp.eq.s32.totalorder %v15, %v26
    %v28 = vsel %vm27, 1, 0
    %vm29 = vcmp.eq.s32.totalorder %v28, 1
    %30 = vset.pattern.permute.xlu0 0
    %31 = vperm.xlu0 %30, %v24
    %v32 = vpop.permute.xlu0 %31
    %v33 = vsel %vm29, %v32, %v25
    %vm34 = vcmp.eq.s32.totalorder %v15, %v32
    %v35 = vsel %vm34, 1, 0
    %v36 = vcvt.s32.f32 %v35
    %v37 = vmul.f32 %v11, %v36
    %v38 = vmul.f32 %v12, %v36
    %v39 = vmul.f32 %v13, %v36
    %vm40 = vcmask 1041408
    %v41 = vsel %vm40, %v37, 0.0
    %42 = vadd.xlane.f32.xlu0 %v41
    %v43 = vpop.xlane.xlu0 %42
    %v44 = vsel %vm40, %v38, 0.0
    %45 = vadd.xlane.f32.xlu0 %v44
    %v46 = vpop.xlane.xlu0 %45
    %v47 = vsel %vm40, %v39, 0.0
    %48 = vadd.xlane.f32.xlu0 %v47
    %v49 = vpop.xlane.xlu0 %48
    %v50 = vsub.f32 %v11, %v43
    %v51 = vsub.f32 %v12, %v46
    %v52 = vsub.f32 %v13, %v49
    %v53 = vmul.f32 %v50, %v50
    %v54 = vmul.f32 %v51, %v51
    %v55 = vmul.f32 %v52, %v52
    %v56 = vsel %vm40, %v53, 0.0
    %v57 = vsel %vm40, %v54, 0.0
    %v58 = vadd.f32 %v56, %v57
    %v59 = vsel %vm40, %v55, 0.0
    %v60 = vadd.f32 %v58, %v59
    %v61 = vmin.f32 %v23, %v60
    %v62 = vsel %vm40, %v61, -inf
    %63 = vmax.xlane.f32.xlu0 %v62
    %v64 = vpop.xlane.xlu0 %63
    %vm65 = vcmp.eq.f32.partialorder %v61, %v64
    %v66 = vsel %vm65, %v15, 128
    %v67 = vsel %vm40, %v66, 2147483647
    %v68 = vand.u32 %v67, 65535
    %v69 = vshra.s32 %v67, 16
    %v70 = vcvt.s32.f32 %v68
    %v71 = vcvt.s32.f32 %v69
    %72 = vmin.xlane.f32.xlu0 %v71
    %v73 = vpop.xlane.xlu0 %72
    %vm74 = vcmp.eq.f32.partialorder %v71, %v73
    %v75 = vsel %vm74, %v70, inf
    %76 = vmin.xlane.f32.xlu0 %v75
    %v77 = vpop.xlane.xlu0 %76
    %v78 = vcvt.f32.s32 %v77
    %v79 = vcvt.f32.s32 %v73
    %v80 = vshll.u32 %v79, 16
    %v81 = vadd.s32 %v80, %v78
  $region14: #{forward.3} parent=0 // loop_footer
    %s22 = sadd.s32 1, %s18
  $region15: #{forward.3} parent=0 // loop_footer_branch
    %17 = sbr.rel target = $region11
  $region16: #{forward.3} parent=0 // loop_exit
    _
  %vm82 = vcmask 517120
  %83 = vst.msk [vmem:[%s2] sm:$0x3] %vm82, %v25
  // Predicated region
  $region17: #{forward.3} parent=0 // pred_check
    _
  $region18: #{forward.3} parent=0 // pred_check_branch
    %85 = sbr.rel (0) target = $region20
  $region19: #{forward.3} parent=0 // pred_region
    _
  $region20: #{forward.3} parent=0 // pred_fallthru
    _
  // Predicated region
  $region21: #{forward.3} parent=0 // pred_check
    _
  $region22: #{forward.3} parent=0 // pred_check_branch
    %87 = sbr.rel (0) target = $region24
  $region23: #{forward.3} parent=0 // pred_region
    _
  $region24: #{forward.3} parent=0 // pred_fallthru
    _

// kernel: forward.4
$region0: #{forward.4}
  #allocation0 [shape = 'u32[]', space=smem, size = 0x4, offset = 0x4, fixed_abs, tag = 'smem constant byte address 0x4 - core index']
  #allocation1 [shape = 'u32[72,128]{1,0:T(1,128)}', space=vmem, size = 0x9000, scoped, tag = 'internal scratch']
  %s0 = inlined_call_operand.vmem [shape: f32[2,64,3], index: 0, kind: input, shape index: {}]
  %s1 = inlined_call_operand.vmem [shape: f32[2,3,128], index: 1, kind: input, shape index: {}]
  %s2 = inlined_call_operand.vmem [shape: s32[2,64,16], index: 2, kind: output, shape index: {}]
  %s3 = sld [smem:[#allocation0]]
  $region41: #{forward.4} parent=0
    _
  %s5 = ssub.s32 1, %s3
  %s6 = scalar_select 0, %s5, %s3
  loop: start=0, step=1, limit=4
  $region2: #{forward.4} parent=0 // loop_pre_header
    _
  $region3: #{forward.4} parent=0 // loop_header
    %s8 = sphi 0, %s12
    %p9 = scmp.ge.s32.totalorder %s8, 4
    %s15 = sphi 0, %s27
    %s16 = sphi 0, %s23
    %s17 = sphi 0, %s15
    %s18 = sphi 0, %s16
    %s19 = sphi 0, %s17
    %s20 = sphi 0, %s18
    %s32 = sphi 0, %s34
    %s35 = sphi 0, %s32
    %s36 = sphi 0, %s35
    %s52 = sphi 0, %s36
    %s58 = sphi 0, %s60
    %s61 = sphi 0, %s58
    %s62 = sphi 0, %s61
    %s78 = sphi 0, %s62
    %s86 = sphi 0, %s88
    %s89 = sphi 0, %s86
    %s90 = sphi 0, %s89
    %s106 = sphi 0, %s90
  $region4: #{forward.4} parent=0 // loop_header_branch
    %11 = sbr.rel (%p9) target = $region8
  $region5: #{forward.4} parent=0 // loop_body
    %s13 = ssub.s32 %s8, 1
    %s14 = ssub.s32 %s8, 2
    %s21 = sadd.s32 1, %s16
    %p22 = scmp.ge.s32.totalorder %s21, 1
    %s23 = scalar_select %p22, 0, %s21
    %s24 = sadd.s32 1, %s15
    %s25 = scalar_select %p22, %s24, %s15
    %p26 = scmp.ge.s32.totalorder %s25, 2
    %s27 = scalar_select %p26, 0, %s25
    %s28 = ssub.s32 %s15, %s27
    %s29 = ssub.s32 %s16, %s23
    %s30 = sor.u32 %s28, %s29
    %p31 = scmp.eq.s32.totalorder %s30, 0
    %s33 = sadd.s32 %s32, 1
    %s34 = scalar_select %p31, %s32, %s33
    %p37 = pneg %p31
    %p38 = scmp.eq.s32.totalorder %s8, 1
    %p39 = por %p37, %p38
    %p40 = scmp.ne.s32.totalorder %s32, %s35
    %p41 = scmp.eq.s32.totalorder %s8, 0
    %p42 = por %p40, %p41
    %p43 = scmp.ne.s32.totalorder %s32, %s35
    %p44 = scmp.eq.s32.totalorder %s13, 1
    %p45 = por %p43, %p44
    %p46 = scmp.ne.s32.totalorder %s35, %s36
    %p47 = scmp.eq.s32.totalorder %s13, 0
    %p48 = por %p46, %p47
    %p49 = scmp.ne.s32.totalorder %s35, %s36
    %p50 = scmp.eq.s32.totalorder %s14, 1
    %p51 = por %p49, %p50
    %p53 = scmp.ne.s32.totalorder %s36, %s52
    %p54 = scmp.eq.s32.totalorder %s14, 0
    %p55 = por %p53, %p54
    %s56 = ssub.s32 %s15, %s27
    %p57 = scmp.eq.s32.totalorder %s56, 0
    %s59 = sadd.s32 %s58, 1
    %s60 = scalar_select %p57, %s58, %s59
    %p63 = pneg %p57
    %p64 = scmp.eq.s32.totalorder %s8, 1
    %p65 = por %p63, %p64
    %p66 = scmp.ne.s32.totalorder %s58, %s61
    %p67 = scmp.eq.s32.totalorder %s8, 0
    %p68 = por %p66, %p67
    %p69 = scmp.ne.s32.totalorder %s58, %s61
    %p70 = scmp.eq.s32.totalorder %s13, 1
    %p71 = por %p69, %p70
    %p72 = scmp.ne.s32.totalorder %s61, %s62
    %p73 = scmp.eq.s32.totalorder %s13, 0
    %p74 = por %p72, %p73
    %p75 = scmp.ne.s32.totalorder %s61, %s62
    %p76 = scmp.eq.s32.totalorder %s14, 1
    %p77 = por %p75, %p76
    %p79 = scmp.ne.s32.totalorder %s62, %s78
    %p80 = scmp.eq.s32.totalorder %s14, 0
    %p81 = por %p79, %p80
    %s82 = ssub.s32 %s15, %s27
    %s83 = ssub.s32 %s16, %s23
    %s84 = sor.u32 %s82, %s83
    %p85 = scmp.eq.s32.totalorder %s84, 0
    %s87 = sadd.s32 %s86, 1
    %s88 = scalar_select %p85, %s86, %s87
    %p91 = pneg %p85
    %p92 = scmp.eq.s32.totalorder %s8, 1
    %p93 = por %p91, %p92
    %p94 = scmp.ne.s32.totalorder %s86, %s89
    %p95 = scmp.eq.s32.totalorder %s8, 0
    %p96 = por %p94, %p95
    %p97 = scmp.ne.s32.totalorder %s86, %s89
    %p98 = scmp.eq.s32.totalorder %s13, 1
    %p99 = por %p97, %p98
    %p100 = scmp.ne.s32.totalorder %s89, %s90
    %p101 = scmp.eq.s32.totalorder %s13, 0
    %p102 = por %p100, %p101
    %p103 = scmp.ne.s32.totalorder %s89, %s90
    %p104 = scmp.eq.s32.totalorder %s14, 1
    %p105 = por %p103, %p104
    %p107 = scmp.ne.s32.totalorder %s90, %s106
    %p108 = scmp.eq.s32.totalorder %s14, 0
    %p109 = por %p107, %p108
    %p110 = scmp.le.s32.totalorder 1, %s8
    %p111 = scmp.lt.s32.totalorder %s8, 3
    %p112 = pnand %p110, %p111
    %p113 = pneg %p112
    // Predicated region
    $region9: #{forward.4} parent=5 // pred_check
      _
    $region10: #{forward.4} parent=5 // pred_check_branch
      %115 = sbr.rel (%p112) target = $region12
    $region11: #{forward.4} parent=5 // pred_region
      %s116 = ssub.s32 %s8, 1
    $region12: #{forward.4} parent=5 // pred_fallthru
      _
    %p117 = scmp.lt.s32.totalorder %s8, 2
    // Predicated region
    $region13: #{forward.4} parent=5 // pred_check
      %p118 = pneg %p117
    $region14: #{forward.4} parent=5 // pred_check_branch
      %120 = sbr.rel (%p118) target = $region16
    $region15: #{forward.4} parent=5 // pred_region
      // Predicated region
      $region17: #{forward.4} parent=15 // pred_check
        %p121 = pneg %p42
      $region18: #{forward.4} parent=15 // pred_check_branch
        %123 = sbr.rel (%p121) target = $region20
      $region19: #{forward.4} parent=15 // pred_region
        %s124 = smul.u32 8, %s16
        %p125 = scmp.lt.s32.totalorder %s15, 1
        %s126 = scalar_select %p125, %s15, 1
        %p127 = scmp.lt.s32.totalorder %s124, 7
        %s128 = scalar_select %p127, %s124, 7
        %s129 = smul.addr %s126, 8
        %s130 = sadd.s32 %s128, %s129
        %s131 = smul.addr %s130, 8
        %s132 = scalar_lea.vmem %s0, %s131
        %s133 = smul.u32 8, %s16
      $region20: #{forward.4} parent=15 // pred_fallthru
        _
      // Predicated region
      $region21: #{forward.4} parent=15 // pred_check
        %p134 = pneg %p68
      $region22: #{forward.4} parent=15 // pred_check_branch
        %136 = sbr.rel (%p134) target = $region24
      $region23: #{forward.4} parent=15 // pred_region
        %p137 = scmp.lt.s32.totalorder %s15, 1
        %s138 = scalar_select %p137, %s15, 1
        %s139 = smul.addr %s138, 4
        %s140 = scalar_lea.vmem %s1, %s139
      $region24: #{forward.4} parent=15 // pred_fallthru
        _
    $region16: #{forward.4} parent=5 // pred_fallthru
      _
    %p141 = scmp.le.s32.totalorder 1, %s8
    %p142 = scmp.lt.s32.totalorder %s8, 3
    %p143 = pnand %p141, %p142
    %p144 = pneg %p143
    // Predicated region
    $region25: #{forward.4} parent=5 // pred_check
      _
    $region26: #{forward.4} parent=5 // pred_check_branch
      %146 = sbr.rel (%p143) target = $region28
    $region27: #{forward.4} parent=5 // pred_region
      %s147 = ssub.s32 %s8, 1
      %s148 = smul.u32 8, %s18
      %p149 = scmp.lt.s32.totalorder %s17, 1
      %s150 = scalar_select %p149, %s17, 1
      %p151 = scmp.lt.s32.totalorder %s148, 7
      %s152 = scalar_select %p151, %s148, 7
      %s153 = smul.addr %s150, 8
      %s154 = sadd.s32 %s152, %s153
      %s155 = smul.addr %s154, 8
      %s156 = scalar_lea.vmem %s0, %s155
      %p157 = pneg %p48
      %p158 = pneg %p45
      %p159 = scmp.lt.s32.totalorder %s17, 1
      %s160 = scalar_select %p159, %s17, 1
      %s161 = smul.addr %s160, 4
      %s162 = scalar_lea.vmem %s1, %s161
      %p163 = pneg %p74
      %p164 = pneg %p71
      %p165 = pneg %p102
      %p166 = pneg %p99
      %s167 = smul.u32 8, %s18
      %p168 = scmp.lt.s32.totalorder %s17, 1
      %s169 = scalar_select %p168, %s17, 1
      %p170 = scmp.lt.s32.totalorder %s167, 7
      %s171 = scalar_select %p170, %s167, 7
      %s172 = smul.addr %s169, 8
      %s173 = sadd.s32 %s171, %s172
      %s174 = smul.addr %s173, 8
      %s175 = scalar_lea.vmem %s2, %s174
      %s176 = smul.u32 8, %s18
      %p177 = scmp.lt.s32.totalorder %s17, 1
      %s178 = scalar_select %p177, %s17, 1
      %p179 = scmp.lt.s32.totalorder %s176, 7
      %s180 = scalar_select %p179, %s176, 7
      %s181 = smul.addr %s178, 8
      %s182 = sadd.s32 %s180, %s181
      %s183 = smul.addr %s182, 8
      %s184 = scalar_lea.vmem %s0, %s183
      %s185 = smul.u32 8, %s18
      %p186 = scmp.lt.s32.totalorder %s17, 1
      %s187 = scalar_select %p186, %s17, 1
      %s188 = smul.addr %s187, 4
      %s189 = scalar_lea.vmem %s1, %s188
      %s190 = smul.u32 8, %s18
      %p191 = scmp.lt.s32.totalorder %s17, 1
      %s192 = scalar_select %p191, %s17, 1
      %p193 = scmp.lt.s32.totalorder %s190, 7
      %s194 = scalar_select %p193, %s190, 7
      %s195 = smul.addr %s192, 8
      %s196 = sadd.s32 %s194, %s195
      %s197 = smul.addr %s196, 8
      %s198 = scalar_lea.vmem %s2, %s197
      %s199 = smul.u32 8, %s18
      %v200 = vld [vmem:[%s184] sm:$0xff]
      %v201 = vld [vmem:[%s184 + $0x8] sm:$0xff]
      %v202 = vld [vmem:[%s184 + $0x10] sm:$0xff]
      %v203 = vld [vmem:[%s184 + $0x18] sm:$0xff]
      %v204 = vld [vmem:[%s184 + $0x20] sm:$0xff]
      %v205 = vld [vmem:[%s184 + $0x28] sm:$0xff]
      %v206 = vld [vmem:[%s184 + $0x30] sm:$0xff]
      %v207 = vld [vmem:[%s184 + $0x38] sm:$0xff]
      %v208 = vld [vmem:[%s189] sm:$0x7]
      %210 = vset.pattern.permute.xlu0 0
      %211 = vperm.xlu0 %210, %v200
      %v212 = vpop.permute.xlu0 %211
      %215 = vset.pattern.permute.xlu0 0
      %216 = vperm.xlu0 %215, %v201
      %v217 = vpop.permute.xlu0 %216
      %220 = vset.pattern.permute.xlu0 0
      %221 = vperm.xlu0 %220, %v202
      %v222 = vpop.permute.xlu0 %221
      %225 = vset.pattern.permute.xlu0 0
      %226 = vperm.xlu0 %225, %v203
      %v227 = vpop.permute.xlu0 %226
      %230 = vset.pattern.permute.xlu0 0
      %231 = vperm.xlu0 %230, %v204
      %v232 = vpop.permute.xlu0 %231
      %235 = vset.pattern.permute.xlu0 0
      %236 = vperm.xlu0 %235, %v205
      %v237 = vpop.permute.xlu0 %236
      %240 = vset.pattern.permute.xlu0 0
      %241 = vperm.xlu0 %240, %v206
      %v242 = vpop.permute.xlu0 %241
      %245 = vset.pattern.permute.xlu0 0
      %246 = vperm.xlu0 %245, %v207
      %v247 = vpop.permute.xlu0 %246
      %v249 = vperm.slane %v208, 0
      %v250 = vsub.f32 %v212, %v249
      %v251 = vsub.f32 %v217, %v249
      %v252 = vsub.f32 %v222, %v249
      %v253 = vsub.f32 %v227, %v249
      %v254 = vsub.f32 %v232, %v249
      %v255 = vsub.f32 %v237, %v249
      %v256 = vsub.f32 %v242, %v249
      %v257 = vsub.f32 %v247, %v249
      %v258 = vmul.f32 %v250, %v250
      %v259 = vmul.f32 %v251, %v251
      %v260 = vmul.f32 %v252, %v252
      %v261 = vmul.f32 %v253, %v253
      %v262 = vmul.f32 %v254, %v254
      %v263 = vmul.f32 %v255, %v255
      %v264 = vmul.f32 %v256, %v256
      %v265 = vmul.f32 %v257, %v257
      %v266 = vadd.f32 %v258, 0.0
      %v267 = vadd.f32 %v259, 0.0
      %v268 = vadd.f32 %v260, 0.0
      %v269 = vadd.f32 %v261, 0.0
      %v270 = vadd.f32 %v262, 0.0
      %v271 = vadd.f32 %v263, 0.0
      %v272 = vadd.f32 %v264, 0.0
      %v273 = vadd.f32 %v265, 0.0
      %274 = vset.pattern.permute.xlu0 1
      %275 = vperm.xlu0 %274, %v200
      %v276 = vpop.permute.xlu0 %275
      %278 = vset.pattern.permute.xlu0 1
      %279 = vperm.xlu0 %278, %v201
      %v280 = vpop.permute.xlu0 %279
      %282 = vset.pattern.permute.xlu0 1
      %283 = vperm.xlu0 %282, %v202
      %v284 = vpop.permute.xlu0 %283
      %286 = vset.pattern.permute.xlu0 1
      %287 = vperm.xlu0 %286, %v203
      %v288 = vpop.permute.xlu0 %287
      %290 = vset.pattern.permute.xlu0 1
      %291 = vperm.xlu0 %290, %v204
      %v292 = vpop.permute.xlu0 %291
      %294 = vset.pattern.permute.xlu0 1
      %295 = vperm.xlu0 %294, %v205
      %v296 = vpop.permute.xlu0 %295
      %298 = vset.pattern.permute.xlu0 1
      %299 = vperm.xlu0 %298, %v206
      %v300 = vpop.permute.xlu0 %299
      %302 = vset.pattern.permute.xlu0 1
      %303 = vperm.xlu0 %302, %v207
      %v304 = vpop.permute.xlu0 %303
      %v306 = vperm.slane %v208, 1
      %v307 = vsub.f32 %v276, %v306
      %v308 = vsub.f32 %v280, %v306
      %v309 = vsub.f32 %v284, %v306
      %v310 = vsub.f32 %v288, %v306
      %v311 = vsub.f32 %v292, %v306
      %v312 = vsub.f32 %v296, %v306
      %v313 = vsub.f32 %v300, %v306
      %v314 = vsub.f32 %v304, %v306
      %v315 = vmul.f32 %v307, %v307
      %v316 = vmul.f32 %v308, %v308
      %v317 = vmul.f32 %v309, %v309
      %v318 = vmul.f32 %v310, %v310
      %v319 = vmul.f32 %v311, %v311
      %v320 = vmul.f32 %v312, %v312
      %v321 = vmul.f32 %v313, %v313
      %v322 = vmul.f32 %v314, %v314
      %v323 = vadd.f32 %v266, %v315
      %v324 = vadd.f32 %v267, %v316
      %v325 = vadd.f32 %v268, %v317
      %v326 = vadd.f32 %v269, %v318
      %v327 = vadd.f32 %v270, %v319
      %v328 = vadd.f32 %v271, %v320
      %v329 = vadd.f32 %v272, %v321
      %v330 = vadd.f32 %v273, %v322
      %331 = vset.pattern.permute.xlu0 2
      %332 = vperm.xlu0 %331, %v200
      %v333 = vpop.permute.xlu0 %332
      %335 = vset.pattern.permute.xlu0 2
      %336 = vperm.xlu0 %335, %v201
      %v337 = vpop.permute.xlu0 %336
      %339 = vset.pattern.permute.xlu0 2
      %340 = vperm.xlu0 %339, %v202
      %v341 = vpop.permute.xlu0 %340
      %343 = vset.pattern.permute.xlu0 2
      %344 = vperm.xlu0 %343, %v203
      %v345 = vpop.permute.xlu0 %344
      %347 = vset.pattern.permute.xlu0 2
      %348 = vperm.xlu0 %347, %v204
      %v349 = vpop.permute.xlu0 %348
      %351 = vset.pattern.permute.xlu0 2
      %352 = vperm.xlu0 %351, %v205
      %v353 = vpop.permute.xlu0 %352
      %355 = vset.pattern.permute.xlu0 2
      %356 = vperm.xlu0 %355, %v206
      %v357 = vpop.permute.xlu0 %356
      %359 = vset.pattern.permute.xlu0 2
      %360 = vperm.xlu0 %359, %v207
      %v361 = vpop.permute.xlu0 %360
      %v363 = vperm.slane %v208, 2
      %v364 = vsub.f32 %v333, %v363
      %v365 = vsub.f32 %v337, %v363
      %v366 = vsub.f32 %v341, %v363
      %v367 = vsub.f32 %v345, %v363
      %v368 = vsub.f32 %v349, %v363
      %v369 = vsub.f32 %v353, %v363
      %v370 = vsub.f32 %v357, %v363
      %v371 = vsub.f32 %v361, %v363
      %v372 = vmul.f32 %v364, %v364
      %v373 = vmul.f32 %v365, %v365
      %v374 = vmul.f32 %v366, %v366
      %v375 = vmul.f32 %v367, %v367
      %v376 = vmul.f32 %v368, %v368
      %v377 = vmul.f32 %v369, %v369
      %v378 = vmul.f32 %v370, %v370
      %v379 = vmul.f32 %v371, %v371
      %v380 = vadd.f32 %v323, %v372
      %v381 = vadd.f32 %v324, %v373
      %v382 = vadd.f32 %v325, %v374
      %v383 = vadd.f32 %v326, %v375
      %v384 = vadd.f32 %v327, %v376
      %v385 = vadd.f32 %v328, %v377
      %v386 = vadd.f32 %v329, %v378
      %v387 = vadd.f32 %v330, %v379
      %v388 = vlaneseq
      %v389 = vand.u32 %v388, 127
      %vm390 = vcmp.le.f32.partialorder %v380, 0.81
      %vm391 = vcmp.le.f32.partialorder %v381, 0.81
      %vm392 = vcmp.le.f32.partialorder %v382, 0.81
      %vm393 = vcmp.le.f32.partialorder %v383, 0.81
      %vm394 = vcmp.le.f32.partialorder %v384, 0.81
      %vm395 = vcmp.le.f32.partialorder %v385, 0.81
      %vm396 = vcmp.le.f32.partialorder %v386, 0.81
      %vm397 = vcmp.le.f32.partialorder %v387, 0.81
      %v398 = vsel %vm390, %v389, 128
      %v399 = vsel %vm391, %v389, 128
      %v400 = vsel %vm392, %v389, 128
      %v401 = vsel %vm393, %v389, 128
      %v402 = vsel %vm394, %v389, 128
      %v403 = vsel %vm395, %v389, 128
      %v404 = vsel %vm396, %v389, 128
      %v405 = vsel %vm397, %v389, 128
      %v406 = vand.u32 %v398, 65535
      %v407 = vshra.s32 %v398, 16
      %v408 = vcvt.s32.f32 %v406
      %v409 = vcvt.s32.f32 %v407
      %410 = vmin.xlane.f32.xlu0 %v409
      %v411 = vpop.xlane.xlu0 %410
      %vm412 = vcmp.eq.f32.partialorder %v409, %v411
      %v413 = vsel %vm412, %v408, inf
      %414 = vmin.xlane.f32.xlu0 %v413
      %v415 = vpop.xlane.xlu0 %414
      %v416 = vcvt.f32.s32 %v415
      %v417 = vcvt.f32.s32 %v411
      %v418 = vshll.u32 %v417, 16
      %v419 = vadd.s32 %v418, %v416
      %v420 = vand.u32 %v399, 65535
      %v421 = vshra.s32 %v399, 16
      %v422 = vcvt.s32.f32 %v420
      %v423 = vcvt.s32.f32 %v421
      %424 = vmin.xlane.f32.xlu0 %v423
      %v425 = vpop.xlane.xlu0 %424
      %vm426 = vcmp.eq.f32.partialorder %v423, %v425
      %v427 = vsel %vm426, %v422, inf
      %428 = vmin.xlane.f32.xlu0 %v427
      %v429 = vpop.xlane.xlu0 %428
      %v430 = vcvt.f32.s32 %v429
      %v431 = vcvt.f32.s32 %v425
      %v432 = vshll.u32 %v431, 16
      %v433 = vadd.s32 %v432, %v430
      %v434 = vand.u32 %v400, 65535
      %v435 = vshra.s32 %v400, 16
      %v436 = vcvt.s32.f32 %v434
      %v437 = vcvt.s32.f32 %v435
      %438 = vmin.xlane.f32.xlu0 %v437
      %v439 = vpop.xlane.xlu0 %438
      %vm440 = vcmp.eq.f32.partialorder %v437, %v439
      %v441 = vsel %vm440, %v436, inf
      %442 = vmin.xlane.f32.xlu0 %v441
      %v443 = vpop.xlane.xlu0 %442
      %v444 = vcvt.f32.s32 %v443
      %v445 = vcvt.f32.s32 %v439
      %v446 = vshll.u32 %v445, 16
      %v447 = vadd.s32 %v446, %v444
      %v448 = vand.u32 %v401, 65535
      %v449 = vshra.s32 %v401, 16
      %v450 = vcvt.s32.f32 %v448
      %v451 = vcvt.s32.f32 %v449
      %452 = vmin.xlane.f32.xlu0 %v451
      %v453 = vpop.xlane.xlu0 %452
      %vm454 = vcmp.eq.f32.partialorder %v451, %v453
      %v455 = vsel %vm454, %v450, inf
      %456 = vmin.xlane.f32.xlu0 %v455
      %v457 = vpop.xlane.xlu0 %456
      %v458 = vcvt.f32.s32 %v457
      %v459 = vcvt.f32.s32 %v453
      %v460 = vshll.u32 %v459, 16
      %v461 = vadd.s32 %v460, %v458
      %v462 = vand.u32 %v402, 65535
      %v463 = vshra.s32 %v402, 16
      %v464 = vcvt.s32.f32 %v462
      %v465 = vcvt.s32.f32 %v463
      %466 = vmin.xlane.f32.xlu0 %v465
      %v467 = vpop.xlane.xlu0 %466
      %vm468 = vcmp.eq.f32.partialorder %v465, %v467
      %v469 = vsel %vm468, %v464, inf
      %470 = vmin.xlane.f32.xlu0 %v469
      %v471 = vpop.xlane.xlu0 %470
      %v472 = vcvt.f32.s32 %v471
      %v473 = vcvt.f32.s32 %v467
      %v474 = vshll.u32 %v473, 16
      %v475 = vadd.s32 %v474, %v472
      %v476 = vand.u32 %v403, 65535
      %v477 = vshra.s32 %v403, 16
      %v478 = vcvt.s32.f32 %v476
      %v479 = vcvt.s32.f32 %v477
      %480 = vmin.xlane.f32.xlu0 %v479
      %v481 = vpop.xlane.xlu0 %480
      %vm482 = vcmp.eq.f32.partialorder %v479, %v481
      %v483 = vsel %vm482, %v478, inf
      %484 = vmin.xlane.f32.xlu0 %v483
      %v485 = vpop.xlane.xlu0 %484
      %v486 = vcvt.f32.s32 %v485
      %v487 = vcvt.f32.s32 %v481
      %v488 = vshll.u32 %v487, 16
      %v489 = vadd.s32 %v488, %v486
      %v490 = vand.u32 %v404, 65535
      %v491 = vshra.s32 %v404, 16
      %v492 = vcvt.s32.f32 %v490
      %v493 = vcvt.s32.f32 %v491
      %494 = vmin.xlane.f32.xlu0 %v493
      %v495 = vpop.xlane.xlu0 %494
      %vm496 = vcmp.eq.f32.partialorder %v493, %v495
      %v497 = vsel %vm496, %v492, inf
      %498 = vmin.xlane.f32.xlu0 %v497
      %v499 = vpop.xlane.xlu0 %498
      %v500 = vcvt.f32.s32 %v499
      %v501 = vcvt.f32.s32 %v495
      %v502 = vshll.u32 %v501, 16
      %v503 = vadd.s32 %v502, %v500
      %v504 = vand.u32 %v405, 65535
      %v505 = vshra.s32 %v405, 16
      %v506 = vcvt.s32.f32 %v504
      %v507 = vcvt.s32.f32 %v505
      %508 = vmin.xlane.f32.xlu0 %v507
      %v509 = vpop.xlane.xlu0 %508
      %vm510 = vcmp.eq.f32.partialorder %v507, %v509
      %v511 = vsel %vm510, %v506, inf
      %512 = vmin.xlane.f32.xlu0 %v511
      %v513 = vpop.xlane.xlu0 %512
      %v514 = vcvt.f32.s32 %v513
      %v515 = vcvt.f32.s32 %v509
      %v516 = vshll.u32 %v515, 16
      %v517 = vadd.s32 %v516, %v514
      %vm518 = vcmp.gt.s32.totalorder %v398, %v419
      %vm519 = vcmp.gt.s32.totalorder %v399, %v433
      %vm520 = vcmp.gt.s32.totalorder %v400, %v447
      %vm521 = vcmp.gt.s32.totalorder %v401, %v461
      %vm522 = vcmp.gt.s32.totalorder %v402, %v475
      %vm523 = vcmp.gt.s32.totalorder %v403, %v489
      %vm524 = vcmp.gt.s32.totalorder %v404, %v503
      %vm525 = vcmp.gt.s32.totalorder %v405, %v517
      %v526 = vsel %vm518, %v398, 128
      %v527 = vsel %vm519, %v399, 128
      %v528 = vsel %vm520, %v400, 128
      %v529 = vsel %vm521, %v401, 128
      %v530 = vsel %vm522, %v402, 128
      %v531 = vsel %vm523, %v403, 128
      %v532 = vsel %vm524, %v404, 128
      %v533 = vsel %vm525, %v405, 128
      %v534 = vand.u32 %v526, 65535
      %v535 = vshra.s32 %v526, 16
      %v536 = vcvt.s32.f32 %v534
      %v537 = vcvt.s32.f32 %v535
      %538 = vmin.xlane.f32.xlu0 %v537
      %v539 = vpop.xlane.xlu0 %538
      %vm540 = vcmp.eq.f32.partialorder %v537, %v539
      %v541 = vsel %vm540, %v536, inf
      %542 = vmin.xlane.f32.xlu0 %v541
      %v543 = vpop.xlane.xlu0 %542
      %v544 = vcvt.f32.s32 %v543
      %v545 = vcvt.f32.s32 %v539
      %v546 = vshll.u32 %v545, 16
      %v547 = vadd.s32 %v546, %v544
      %v548 = vand.u32 %v527, 65535
      %v549 = vshra.s32 %v527, 16
      %v550 = vcvt.s32.f32 %v548
      %v551 = vcvt.s32.f32 %v549
      %552 = vmin.xlane.f32.xlu0 %v551
      %v553 = vpop.xlane.xlu0 %552
      %vm554 = vcmp.eq.f32.partialorder %v551, %v553
      %v555 = vsel %vm554, %v550, inf
      %556 = vmin.xlane.f32.xlu0 %v555
      %v557 = vpop.xlane.xlu0 %556
      %v558 = vcvt.f32.s32 %v557
      %v559 = vcvt.f32.s32 %v553
      %v560 = vshll.u32 %v559, 16
      %v561 = vadd.s32 %v560, %v558
      %v562 = vand.u32 %v528, 65535
      %v563 = vshra.s32 %v528, 16
      %v564 = vcvt.s32.f32 %v562
      %v565 = vcvt.s32.f32 %v563
      %566 = vmin.xlane.f32.xlu0 %v565
      %v567 = vpop.xlane.xlu0 %566
      %vm568 = vcmp.eq.f32.partialorder %v565, %v567
      %v569 = vsel %vm568, %v564, inf
      %570 = vmin.xlane.f32.xlu0 %v569
      %v571 = vpop.xlane.xlu0 %570
      %v572 = vcvt.f32.s32 %v571
      %v573 = vcvt.f32.s32 %v567
      %v574 = vshll.u32 %v573, 16
      %v575 = vadd.s32 %v574, %v572
      %v576 = vand.u32 %v529, 65535
      %v577 = vshra.s32 %v529, 16
      %v578 = vcvt.s32.f32 %v576
      %v579 = vcvt.s32.f32 %v577
      %580 = vmin.xlane.f32.xlu0 %v579
      %v581 = vpop.xlane.xlu0 %580
      %vm582 = vcmp.eq.f32.partialorder %v579, %v581
      %v583 = vsel %vm582, %v578, inf
      %584 = vmin.xlane.f32.xlu0 %v583
      %v585 = vpop.xlane.xlu0 %584
      %v586 = vcvt.f32.s32 %v585
      %v587 = vcvt.f32.s32 %v581
      %v588 = vshll.u32 %v587, 16
      %v589 = vadd.s32 %v588, %v586
      %v590 = vand.u32 %v530, 65535
      %v591 = vshra.s32 %v530, 16
      %v592 = vcvt.s32.f32 %v590
      %v593 = vcvt.s32.f32 %v591
      %594 = vmin.xlane.f32.xlu0 %v593
      %v595 = vpop.xlane.xlu0 %594
      %vm596 = vcmp.eq.f32.partialorder %v593, %v595
      %v597 = vsel %vm596, %v592, inf
      %598 = vmin.xlane.f32.xlu0 %v597
      %v599 = vpop.xlane.xlu0 %598
      %v600 = vcvt.f32.s32 %v599
      %v601 = vcvt.f32.s32 %v595
      %v602 = vshll.u32 %v601, 16
      %v603 = vadd.s32 %v602, %v600
      %v604 = vand.u32 %v531, 65535
      %v605 = vshra.s32 %v531, 16
      %v606 = vcvt.s32.f32 %v604
      %v607 = vcvt.s32.f32 %v605
      %608 = vmin.xlane.f32.xlu0 %v607
      %v609 = vpop.xlane.xlu0 %608
      %vm610 = vcmp.eq.f32.partialorder %v607, %v609
      %v611 = vsel %vm610, %v606, inf
      %612 = vmin.xlane.f32.xlu0 %v611
      %v613 = vpop.xlane.xlu0 %612
      %v614 = vcvt.f32.s32 %v613
      %v615 = vcvt.f32.s32 %v609
      %v616 = vshll.u32 %v615, 16
      %v617 = vadd.s32 %v616, %v614
      %v618 = vand.u32 %v532, 65535
      %v619 = vshra.s32 %v532, 16
      %v620 = vcvt.s32.f32 %v618
      %v621 = vcvt.s32.f32 %v619
      %622 = vmin.xlane.f32.xlu0 %v621
      %v623 = vpop.xlane.xlu0 %622
      %vm624 = vcmp.eq.f32.partialorder %v621, %v623
      %v625 = vsel %vm624, %v620, inf
      %626 = vmin.xlane.f32.xlu0 %v625
      %v627 = vpop.xlane.xlu0 %626
      %v628 = vcvt.f32.s32 %v627
      %v629 = vcvt.f32.s32 %v623
      %v630 = vshll.u32 %v629, 16
      %v631 = vadd.s32 %v630, %v628
      %v632 = vand.u32 %v533, 65535
      %v633 = vshra.s32 %v533, 16
      %v634 = vcvt.s32.f32 %v632
      %v635 = vcvt.s32.f32 %v633
      %636 = vmin.xlane.f32.xlu0 %v635
      %v637 = vpop.xlane.xlu0 %636
      %vm638 = vcmp.eq.f32.partialorder %v635, %v637
      %v639 = vsel %vm638, %v634, inf
      %640 = vmin.xlane.f32.xlu0 %v639
      %v641 = vpop.xlane.xlu0 %640
      %v642 = vcvt.f32.s32 %v641
      %v643 = vcvt.f32.s32 %v637
      %v644 = vshll.u32 %v643, 16
      %v645 = vadd.s32 %v644, %v642
      %vm646 = vcmp.gt.s32.totalorder %v398, %v547
      %vm647 = vcmp.gt.s32.totalorder %v399, %v561
      %vm648 = vcmp.gt.s32.totalorder %v400, %v575
      %vm649 = vcmp.gt.s32.totalorder %v401, %v589
      %vm650 = vcmp.gt.s32.totalorder %v402, %v603
      %vm651 = vcmp.gt.s32.totalorder %v403, %v617
      %vm652 = vcmp.gt.s32.totalorder %v404, %v631
      %vm653 = vcmp.gt.s32.totalorder %v405, %v645
      %v654 = vsel %vm646, %v398, 128
      %v655 = vsel %vm647, %v399, 128
      %v656 = vsel %vm648, %v400, 128
      %v657 = vsel %vm649, %v401, 128
      %v658 = vsel %vm650, %v402, 128
      %v659 = vsel %vm651, %v403, 128
      %v660 = vsel %vm652, %v404, 128
      %v661 = vsel %vm653, %v405, 128
      %v662 = vand.u32 %v654, 65535
      %v663 = vshra.s32 %v654, 16
      %v664 = vcvt.s32.f32 %v662
      %v665 = vcvt.s32.f32 %v663
      %666 = vmin.xlane.f32.xlu0 %v665
      %v667 = vpop.xlane.xlu0 %666
      %vm668 = vcmp.eq.f32.partialorder %v665, %v667
      %v669 = vsel %vm668, %v664, inf
      %670 = vmin.xlane.f32.xlu0 %v669
      %v671 = vpop.xlane.xlu0 %670
      %v672 = vcvt.f32.s32 %v671
      %v673 = vcvt.f32.s32 %v667
      %v674 = vshll.u32 %v673, 16
      %v675 = vadd.s32 %v674, %v672
      %v676 = vand.u32 %v655, 65535
      %v677 = vshra.s32 %v655, 16
      %v678 = vcvt.s32.f32 %v676
      %v679 = vcvt.s32.f32 %v677
      %680 = vmin.xlane.f32.xlu0 %v679
      %v681 = vpop.xlane.xlu0 %680
      %vm682 = vcmp.eq.f32.partialorder %v679, %v681
      %v683 = vsel %vm682, %v678, inf
      %684 = vmin.xlane.f32.xlu0 %v683
      %v685 = vpop.xlane.xlu0 %684
      %v686 = vcvt.f32.s32 %v685
      %v687 = vcvt.f32.s32 %v681
      %v688 = vshll.u32 %v687, 16
      %v689 = vadd.s32 %v688, %v686
      %v690 = vand.u32 %v656, 65535
      %v691 = vshra.s32 %v656, 16
      %v692 = vcvt.s32.f32 %v690
      %v693 = vcvt.s32.f32 %v691
      %694 = vmin.xlane.f32.xlu0 %v693
      %v695 = vpop.xlane.xlu0 %694
      %vm696 = vcmp.eq.f32.partialorder %v693, %v695
      %v697 = vsel %vm696, %v692, inf
      %698 = vmin.xlane.f32.xlu0 %v697
      %v699 = vpop.xlane.xlu0 %698
      %v700 = vcvt.f32.s32 %v699
      %v701 = vcvt.f32.s32 %v695
      %v702 = vshll.u32 %v701, 16
      %v703 = vadd.s32 %v702, %v700
      %v704 = vand.u32 %v657, 65535
      %v705 = vshra.s32 %v657, 16
      %v706 = vcvt.s32.f32 %v704
      %v707 = vcvt.s32.f32 %v705
      %708 = vmin.xlane.f32.xlu0 %v707
      %v709 = vpop.xlane.xlu0 %708
      %vm710 = vcmp.eq.f32.partialorder %v707, %v709
      %v711 = vsel %vm710, %v706, inf
      %712 = vmin.xlane.f32.xlu0 %v711
      %v713 = vpop.xlane.xlu0 %712
      %v714 = vcvt.f32.s32 %v713
      %v715 = vcvt.f32.s32 %v709
      %v716 = vshll.u32 %v715, 16
      %v717 = vadd.s32 %v716, %v714
      %v718 = vand.u32 %v658, 65535
      %v719 = vshra.s32 %v658, 16
      %v720 = vcvt.s32.f32 %v718
      %v721 = vcvt.s32.f32 %v719
      %722 = vmin.xlane.f32.xlu0 %v721
      %v723 = vpop.xlane.xlu0 %722
      %vm724 = vcmp.eq.f32.partialorder %v721, %v723
      %v725 = vsel %vm724, %v720, inf
      %726 = vmin.xlane.f32.xlu0 %v725
      %v727 = vpop.xlane.xlu0 %726
      %v728 = vcvt.f32.s32 %v727
      %v729 = vcvt.f32.s32 %v723
      %v730 = vshll.u32 %v729, 16
      %v731 = vadd.s32 %v730, %v728
      %v732 = vand.u32 %v659, 65535
      %v733 = vshra.s32 %v659, 16
      %v734 = vcvt.s32.f32 %v732
      %v735 = vcvt.s32.f32 %v733
      %736 = vmin.xlane.f32.xlu0 %v735
      %v737 = vpop.xlane.xlu0 %736
      %vm738 = vcmp.eq.f32.partialorder %v735, %v737
      %v739 = vsel %vm738, %v734, inf
      %740 = vmin.xlane.f32.xlu0 %v739
      %v741 = vpop.xlane.xlu0 %740
      %v742 = vcvt.f32.s32 %v741
      %v743 = vcvt.f32.s32 %v737
      %v744 = vshll.u32 %v743, 16
      %v745 = vadd.s32 %v744, %v742
      %v746 = vand.u32 %v660, 65535
      %v747 = vshra.s32 %v660, 16
      %v748 = vcvt.s32.f32 %v746
      %v749 = vcvt.s32.f32 %v747
      %750 = vmin.xlane.f32.xlu0 %v749
      %v751 = vpop.xlane.xlu0 %750
      %vm752 = vcmp.eq.f32.partialorder %v749, %v751
      %v753 = vsel %vm752, %v748, inf
      %754 = vmin.xlane.f32.xlu0 %v753
      %v755 = vpop.xlane.xlu0 %754
      %v756 = vcvt.f32.s32 %v755
      %v757 = vcvt.f32.s32 %v751
      %v758 = vshll.u32 %v757, 16
      %v759 = vadd.s32 %v758, %v756
      %v760 = vand.u32 %v661, 65535
      %v761 = vshra.s32 %v661, 16
      %v762 = vcvt.s32.f32 %v760
      %v763 = vcvt.s32.f32 %v761
      %764 = vmin.xlane.f32.xlu0 %v763
      %v765 = vpop.xlane.xlu0 %764
      %vm766 = vcmp.eq.f32.partialorder %v763, %v765
      %v767 = vsel %vm766, %v762, inf
      %768 = vmin.xlane.f32.xlu0 %v767
      %v769 = vpop.xlane.xlu0 %768
      %v770 = vcvt.f32.s32 %v769
      %v771 = vcvt.f32.s32 %v765
      %v772 = vshll.u32 %v771, 16
      %v773 = vadd.s32 %v772, %v770
      %vm774 = vcmp.gt.s32.totalorder %v398, %v675
      %vm775 = vcmp.gt.s32.totalorder %v399, %v689
      %vm776 = vcmp.gt.s32.totalorder %v400, %v703
      %vm777 = vcmp.gt.s32.totalorder %v401, %v717
      %vm778 = vcmp.gt.s32.totalorder %v402, %v731
      %vm779 = vcmp.gt.s32.totalorder %v403, %v745
      %vm780 = vcmp.gt.s32.totalorder %v404, %v759
      %vm781 = vcmp.gt.s32.totalorder %v405, %v773
      %v782 = vsel %vm774, %v398, 128
      %v783 = vsel %vm775, %v399, 128
      %v784 = vsel %vm776, %v400, 128
      %v785 = vsel %vm777, %v401, 128
      %v786 = vsel %vm778, %v402, 128
      %v787 = vsel %vm779, %v403, 128
      %v788 = vsel %vm780, %v404, 128
      %v789 = vsel %vm781, %v405, 128
      %v790 = vand.u32 %v782, 65535
      %v791 = vshra.s32 %v782, 16
      %v792 = vcvt.s32.f32 %v790
      %v793 = vcvt.s32.f32 %v791
      %794 = vmin.xlane.f32.xlu0 %v793
      %v795 = vpop.xlane.xlu0 %794
      %vm796 = vcmp.eq.f32.partialorder %v793, %v795
      %v797 = vsel %vm796, %v792, inf
      %798 = vmin.xlane.f32.xlu0 %v797
      %v799 = vpop.xlane.xlu0 %798
      %v800 = vcvt.f32.s32 %v799
      %v801 = vcvt.f32.s32 %v795
      %v802 = vshll.u32 %v801, 16
      %v803 = vadd.s32 %v802, %v800
      %v804 = vand.u32 %v783, 65535
      %v805 = vshra.s32 %v783, 16
      %v806 = vcvt.s32.f32 %v804
      %v807 = vcvt.s32.f32 %v805
      %808 = vmin.xlane.f32.xlu0 %v807
      %v809 = vpop.xlane.xlu0 %808
      %vm810 = vcmp.eq.f32.partialorder %v807, %v809
      %v811 = vsel %vm810, %v806, inf
      %812 = vmin.xlane.f32.xlu0 %v811
      %v813 = vpop.xlane.xlu0 %812
      %v814 = vcvt.f32.s32 %v813
      %v815 = vcvt.f32.s32 %v809
      %v816 = vshll.u32 %v815, 16
      %v817 = vadd.s32 %v816, %v814
      %v818 = vand.u32 %v784, 65535
      %v819 = vshra.s32 %v784, 16
      %v820 = vcvt.s32.f32 %v818
      %v821 = vcvt.s32.f32 %v819
      %822 = vmin.xlane.f32.xlu0 %v821
      %v823 = vpop.xlane.xlu0 %822
      %vm824 = vcmp.eq.f32.partialorder %v821, %v823
      %v825 = vsel %vm824, %v820, inf
      %826 = vmin.xlane.f32.xlu0 %v825
      %v827 = vpop.xlane.xlu0 %826
      %v828 = vcvt.f32.s32 %v827
      %v829 = vcvt.f32.s32 %v823
      %v830 = vshll.u32 %v829, 16
      %v831 = vadd.s32 %v830, %v828
      %v832 = vand.u32 %v785, 65535
      %v833 = vshra.s32 %v785, 16
      %v834 = vcvt.s32.f32 %v832
      %v835 = vcvt.s32.f32 %v833
      %836 = vmin.xlane.f32.xlu0 %v835
      %v837 = vpop.xlane.xlu0 %836
      %vm838 = vcmp.eq.f32.partialorder %v835, %v837
      %v839 = vsel %vm838, %v834, inf
      %840 = vmin.xlane.f32.xlu0 %v839
      %v841 = vpop.xlane.xlu0 %840
      %v842 = vcvt.f32.s32 %v841
      %v843 = vcvt.f32.s32 %v837
      %v844 = vshll.u32 %v843, 16
      %v845 = vadd.s32 %v844, %v842
      %v846 = vand.u32 %v786, 65535
      %v847 = vshra.s32 %v786, 16
      %v848 = vcvt.s32.f32 %v846
      %v849 = vcvt.s32.f32 %v847
      %850 = vmin.xlane.f32.xlu0 %v849
      %v851 = vpop.xlane.xlu0 %850
      %vm852 = vcmp.eq.f32.partialorder %v849, %v851
      %v853 = vsel %vm852, %v848, inf
      %854 = vmin.xlane.f32.xlu0 %v853
      %v855 = vpop.xlane.xlu0 %854
      %v856 = vcvt.f32.s32 %v855
      %v857 = vcvt.f32.s32 %v851
      %v858 = vshll.u32 %v857, 16
      %v859 = vadd.s32 %v858, %v856
      %v860 = vand.u32 %v787, 65535
      %v861 = vshra.s32 %v787, 16
      %v862 = vcvt.s32.f32 %v860
      %v863 = vcvt.s32.f32 %v861
      %864 = vmin.xlane.f32.xlu0 %v863
      %v865 = vpop.xlane.xlu0 %864
      %vm866 = vcmp.eq.f32.partialorder %v863, %v865
      %v867 = vsel %vm866, %v862, inf
      %868 = vmin.xlane.f32.xlu0 %v867
      %v869 = vpop.xlane.xlu0 %868
      %v870 = vcvt.f32.s32 %v869
      %v871 = vcvt.f32.s32 %v865
      %v872 = vshll.u32 %v871, 16
      %v873 = vadd.s32 %v872, %v870
      %v874 = vand.u32 %v788, 65535
      %v875 = vshra.s32 %v788, 16
      %v876 = vcvt.s32.f32 %v874
      %v877 = vcvt.s32.f32 %v875
      %878 = vmin.xlane.f32.xlu0 %v877
      %v879 = vpop.xlane.xlu0 %878
      %vm880 = vcmp.eq.f32.partialorder %v877, %v879
      %v881 = vsel %vm880, %v876, inf
      %882 = vmin.xlane.f32.xlu0 %v881
      %v883 = vpop.xlane.xlu0 %882
      %v884 = vcvt.f32.s32 %v883
      %v885 = vcvt.f32.s32 %v879
      %v886 = vshll.u32 %v885, 16
      %v887 = vadd.s32 %v886, %v884
      %v888 = vand.u32 %v789, 65535
      %v889 = vshra.s32 %v789, 16
      %v890 = vcvt.s32.f32 %v888
      %v891 = vcvt.s32.f32 %v889
      %892 = vmin.xlane.f32.xlu0 %v891
      %v893 = vpop.xlane.xlu0 %892
      %vm894 = vcmp.eq.f32.partialorder %v891, %v893
      %v895 = vsel %vm894, %v890, inf
      %896 = vmin.xlane.f32.xlu0 %v895
      %v897 = vpop.xlane.xlu0 %896
      %v898 = vcvt.f32.s32 %v897
      %v899 = vcvt.f32.s32 %v893
      %v900 = vshll.u32 %v899, 16
      %v901 = vadd.s32 %v900, %v898
      %vm902 = vcmp.gt.s32.totalorder %v398, %v803
      %vm903 = vcmp.gt.s32.totalorder %v399, %v817
      %vm904 = vcmp.gt.s32.totalorder %v400, %v831
      %vm905 = vcmp.gt.s32.totalorder %v401, %v845
      %vm906 = vcmp.gt.s32.totalorder %v402, %v859
      %vm907 = vcmp.gt.s32.totalorder %v403, %v873
      %vm908 = vcmp.gt.s32.totalorder %v404, %v887
      %vm909 = vcmp.gt.s32.totalorder %v405, %v901
      %v910 = vsel %vm902, %v398, 128
      %v911 = vsel %vm903, %v399, 128
      %v912 = vsel %vm904, %v400, 128
      %v913 = vsel %vm905, %v401, 128
      %v914 = vsel %vm906, %v402, 128
      %v915 = vsel %vm907, %v403, 128
      %v916 = vsel %vm908, %v404, 128
      %v917 = vsel %vm909, %v405, 128
      %v918 = vand.u32 %v910, 65535
      %v919 = vshra.s32 %v910, 16
      %v920 = vcvt.s32.f32 %v918
      %v921 = vcvt.s32.f32 %v919
      %922 = vmin.xlane.f32.xlu0 %v921
      %v923 = vpop.xlane.xlu0 %922
      %vm924 = vcmp.eq.f32.partialorder %v921, %v923
      %v925 = vsel %vm924, %v920, inf
      %926 = vmin.xlane.f32.xlu0 %v925
      %v927 = vpop.xlane.xlu0 %926
      %v928 = vcvt.f32.s32 %v927
      %v929 = vcvt.f32.s32 %v923
      %v930 = vshll.u32 %v929, 16
      %v931 = vadd.s32 %v930, %v928
      %v932 = vand.u32 %v911, 65535
      %v933 = vshra.s32 %v911, 16
      %v934 = vcvt.s32.f32 %v932
      %v935 = vcvt.s32.f32 %v933
      %936 = vmin.xlane.f32.xlu0 %v935
      %v937 = vpop.xlane.xlu0 %936
      %vm938 = vcmp.eq.f32.partialorder %v935, %v937
      %v939 = vsel %vm938, %v934, inf
      %940 = vmin.xlane.f32.xlu0 %v939
      %v941 = vpop.xlane.xlu0 %940
      %v942 = vcvt.f32.s32 %v941
      %v943 = vcvt.f32.s32 %v937
      %v944 = vshll.u32 %v943, 16
      %v945 = vadd.s32 %v944, %v942
      %v946 = vand.u32 %v912, 65535
      %v947 = vshra.s32 %v912, 16
      %v948 = vcvt.s32.f32 %v946
      %v949 = vcvt.s32.f32 %v947
      %950 = vmin.xlane.f32.xlu0 %v949
      %v951 = vpop.xlane.xlu0 %950
      %vm952 = vcmp.eq.f32.partialorder %v949, %v951
      %v953 = vsel %vm952, %v948, inf
      %954 = vmin.xlane.f32.xlu0 %v953
      %v955 = vpop.xlane.xlu0 %954
      %v956 = vcvt.f32.s32 %v955
      %v957 = vcvt.f32.s32 %v951
      %v958 = vshll.u32 %v957, 16
      %v959 = vadd.s32 %v958, %v956
      %v960 = vand.u32 %v913, 65535
      %v961 = vshra.s32 %v913, 16
      %v962 = vcvt.s32.f32 %v960
      %v963 = vcvt.s32.f32 %v961
      %964 = vmin.xlane.f32.xlu0 %v963
      %v965 = vpop.xlane.xlu0 %964
      %vm966 = vcmp.eq.f32.partialorder %v963, %v965
      %v967 = vsel %vm966, %v962, inf
      %968 = vmin.xlane.f32.xlu0 %v967
      %v969 = vpop.xlane.xlu0 %968
      %v970 = vcvt.f32.s32 %v969
      %v971 = vcvt.f32.s32 %v965
      %v972 = vshll.u32 %v971, 16
      %v973 = vadd.s32 %v972, %v970
      %v974 = vand.u32 %v914, 65535
      %v975 = vshra.s32 %v914, 16
      %v976 = vcvt.s32.f32 %v974
      %v977 = vcvt.s32.f32 %v975
      %978 = vmin.xlane.f32.xlu0 %v977
      %v979 = vpop.xlane.xlu0 %978
      %vm980 = vcmp.eq.f32.partialorder %v977, %v979
      %v981 = vsel %vm980, %v976, inf
      %982 = vmin.xlane.f32.xlu0 %v981
      %v983 = vpop.xlane.xlu0 %982
      %v984 = vcvt.f32.s32 %v983
      %v985 = vcvt.f32.s32 %v979
      %v986 = vshll.u32 %v985, 16
      %v987 = vadd.s32 %v986, %v984
      %v988 = vand.u32 %v915, 65535
      %v989 = vshra.s32 %v915, 16
      %v990 = vcvt.s32.f32 %v988
      %v991 = vcvt.s32.f32 %v989
      %992 = vmin.xlane.f32.xlu0 %v991
      %v993 = vpop.xlane.xlu0 %992
      %vm994 = vcmp.eq.f32.partialorder %v991, %v993
      %v995 = vsel %vm994, %v990, inf
      %996 = vmin.xlane.f32.xlu0 %v995
      %v997 = vpop.xlane.xlu0 %996
      %v998 = vcvt.f32.s32 %v997
      %v999 = vcvt.f32.s32 %v993
      %v1000 = vshll.u32 %v999, 16
      %v1001 = vadd.s32 %v1000, %v998
      %v1002 = vand.u32 %v916, 65535
      %v1003 = vshra.s32 %v916, 16
      %v1004 = vcvt.s32.f32 %v1002
      %v1005 = vcvt.s32.f32 %v1003
      %1006 = vmin.xlane.f32.xlu0 %v1005
      %v1007 = vpop.xlane.xlu0 %1006
      %vm1008 = vcmp.eq.f32.partialorder %v1005, %v1007
      %v1009 = vsel %vm1008, %v1004, inf
      %1010 = vmin.xlane.f32.xlu0 %v1009
      %v1011 = vpop.xlane.xlu0 %1010
      %v1012 = vcvt.f32.s32 %v1011
      %v1013 = vcvt.f32.s32 %v1007
      %v1014 = vshll.u32 %v1013, 16
      %v1015 = vadd.s32 %v1014, %v1012
      %v1016 = vand.u32 %v917, 65535
      %v1017 = vshra.s32 %v917, 16
      %v1018 = vcvt.s32.f32 %v1016
      %v1019 = vcvt.s32.f32 %v1017
      %1020 = vmin.xlane.f32.xlu0 %v1019
      %v1021 = vpop.xlane.xlu0 %1020
      %vm1022 = vcmp.eq.f32.partialorder %v1019, %v1021
      %v1023 = vsel %vm1022, %v1018, inf
      %1024 = vmin.xlane.f32.xlu0 %v1023
      %v1025 = vpop.xlane.xlu0 %1024
      %v1026 = vcvt.f32.s32 %v1025
      %v1027 = vcvt.f32.s32 %v1021
      %v1028 = vshll.u32 %v1027, 16
      %v1029 = vadd.s32 %v1028, %v1026
      %vm1030 = vcmp.gt.s32.totalorder %v398, %v931
      %vm1031 = vcmp.gt.s32.totalorder %v399, %v945
      %vm1032 = vcmp.gt.s32.totalorder %v400, %v959
      %vm1033 = vcmp.gt.s32.totalorder %v401, %v973
      %vm1034 = vcmp.gt.s32.totalorder %v402, %v987
      %vm1035 = vcmp.gt.s32.totalorder %v403, %v1001
      %vm1036 = vcmp.gt.s32.totalorder %v404, %v1015
      %vm1037 = vcmp.gt.s32.totalorder %v405, %v1029
      %v1038 = vsel %vm1030, %v398, 128
      %v1039 = vsel %vm1031, %v399, 128
      %v1040 = vsel %vm1032, %v400, 128
      %v1041 = vsel %vm1033, %v401, 128
      %v1042 = vsel %vm1034, %v402, 128
      %v1043 = vsel %vm1035, %v403, 128
      %v1044 = vsel %vm1036, %v404, 128
      %v1045 = vsel %vm1037, %v405, 128
      %v1046 = vand.u32 %v1038, 65535
      %v1047 = vshra.s32 %v1038, 16
      %v1048 = vcvt.s32.f32 %v1046
      %v1049 = vcvt.s32.f32 %v1047
      %1050 = vmin.xlane.f32.xlu0 %v1049
      %v1051 = vpop.xlane.xlu0 %1050
      %vm1052 = vcmp.eq.f32.partialorder %v1049, %v1051
      %v1053 = vsel %vm1052, %v1048, inf
      %1054 = vmin.xlane.f32.xlu0 %v1053
      %v1055 = vpop.xlane.xlu0 %1054
      %v1056 = vcvt.f32.s32 %v1055
      %v1057 = vcvt.f32.s32 %v1051
      %v1058 = vshll.u32 %v1057, 16
      %v1059 = vadd.s32 %v1058, %v1056
      %v1060 = vand.u32 %v1039, 65535
      %v1061 = vshra.s32 %v1039, 16
      %v1062 = vcvt.s32.f32 %v1060
      %v1063 = vcvt.s32.f32 %v1061
      %1064 = vmin.xlane.f32.xlu0 %v1063
      %v1065 = vpop.xlane.xlu0 %1064
      %vm1066 = vcmp.eq.f32.partialorder %v1063, %v1065
      %v1067 = vsel %vm1066, %v1062, inf
      %1068 = vmin.xlane.f32.xlu0 %v1067
      %v1069 = vpop.xlane.xlu0 %1068
      %v1070 = vcvt.f32.s32 %v1069
      %v1071 = vcvt.f32.s32 %v1065
      %v1072 = vshll.u32 %v1071, 16
      %v1073 = vadd.s32 %v1072, %v1070
      %v1074 = vand.u32 %v1040, 65535
      %v1075 = vshra.s32 %v1040, 16
      %v1076 = vcvt.s32.f32 %v1074
      %v1077 = vcvt.s32.f32 %v1075
      %1078 = vmin.xlane.f32.xlu0 %v1077
      %v1079 = vpop.xlane.xlu0 %1078
      %vm1080 = vcmp.eq.f32.partialorder %v1077, %v1079
      %v1081 = vsel %vm1080, %v1076, inf
      %1082 = vmin.xlane.f32.xlu0 %v1081
      %v1083 = vpop.xlane.xlu0 %1082
      %v1084 = vcvt.f32.s32 %v1083
      %v1085 = vcvt.f32.s32 %v1079
      %v1086 = vshll.u32 %v1085, 16
      %v1087 = vadd.s32 %v1086, %v1084
      %v1088 = vand.u32 %v1041, 65535
      %v1089 = vshra.s32 %v1041, 16
      %v1090 = vcvt.s32.f32 %v1088
      %v1091 = vcvt.s32.f32 %v1089
      %1092 = vmin.xlane.f32.xlu0 %v1091
      %v1093 = vpop.xlane.xlu0 %1092
      %vm1094 = vcmp.eq.f32.partialorder %v1091, %v1093
      %v1095 = vsel %vm1094, %v1090, inf
      %1096 = vmin.xlane.f32.xlu0 %v1095
      %v1097 = vpop.xlane.xlu0 %1096
      %v1098 = vcvt.f32.s32 %v1097
      %v1099 = vcvt.f32.s32 %v1093
      %v1100 = vshll.u32 %v1099, 16
      %v1101 = vadd.s32 %v1100, %v1098
      %v1102 = vand.u32 %v1042, 65535
      %v1103 = vshra.s32 %v1042, 16
      %v1104 = vcvt.s32.f32 %v1102
      %v1105 = vcvt.s32.f32 %v1103
      %1106 = vmin.xlane.f32.xlu0 %v1105
      %v1107 = vpop.xlane.xlu0 %1106
      %vm1108 = vcmp.eq.f32.partialorder %v1105, %v1107
      %v1109 = vsel %vm1108, %v1104, inf
      %1110 = vmin.xlane.f32.xlu0 %v1109
      %v1111 = vpop.xlane.xlu0 %1110
      %v1112 = vcvt.f32.s32 %v1111
      %v1113 = vcvt.f32.s32 %v1107
      %v1114 = vshll.u32 %v1113, 16
      %v1115 = vadd.s32 %v1114, %v1112
      %v1116 = vand.u32 %v1043, 65535
      %v1117 = vshra.s32 %v1043, 16
      %v1118 = vcvt.s32.f32 %v1116
      %v1119 = vcvt.s32.f32 %v1117
      %1120 = vmin.xlane.f32.xlu0 %v1119
      %v1121 = vpop.xlane.xlu0 %1120
      %vm1122 = vcmp.eq.f32.partialorder %v1119, %v1121
      %v1123 = vsel %vm1122, %v1118, inf
      %1124 = vmin.xlane.f32.xlu0 %v1123
      %v1125 = vpop.xlane.xlu0 %1124
      %v1126 = vcvt.f32.s32 %v1125
      %v1127 = vcvt.f32.s32 %v1121
      %v1128 = vshll.u32 %v1127, 16
      %v1129 = vadd.s32 %v1128, %v1126
      %v1130 = vand.u32 %v1044, 65535
      %v1131 = vshra.s32 %v1044, 16
      %v1132 = vcvt.s32.f32 %v1130
      %v1133 = vcvt.s32.f32 %v1131
      %1134 = vmin.xlane.f32.xlu0 %v1133
      %v1135 = vpop.xlane.xlu0 %1134
      %vm1136 = vcmp.eq.f32.partialorder %v1133, %v1135
      %v1137 = vsel %vm1136, %v1132, inf
      %1138 = vmin.xlane.f32.xlu0 %v1137
      %v1139 = vpop.xlane.xlu0 %1138
      %v1140 = vcvt.f32.s32 %v1139
      %v1141 = vcvt.f32.s32 %v1135
      %v1142 = vshll.u32 %v1141, 16
      %v1143 = vadd.s32 %v1142, %v1140
      %v1144 = vand.u32 %v1045, 65535
      %v1145 = vshra.s32 %v1045, 16
      %v1146 = vcvt.s32.f32 %v1144
      %v1147 = vcvt.s32.f32 %v1145
      %1148 = vmin.xlane.f32.xlu0 %v1147
      %v1149 = vpop.xlane.xlu0 %1148
      %vm1150 = vcmp.eq.f32.partialorder %v1147, %v1149
      %v1151 = vsel %vm1150, %v1146, inf
      %1152 = vmin.xlane.f32.xlu0 %v1151
      %v1153 = vpop.xlane.xlu0 %1152
      %v1154 = vcvt.f32.s32 %v1153
      %v1155 = vcvt.f32.s32 %v1149
      %v1156 = vshll.u32 %v1155, 16
      %v1157 = vadd.s32 %v1156, %v1154
      %vm1158 = vcmp.gt.s32.totalorder %v398, %v1059
      %vm1159 = vcmp.gt.s32.totalorder %v399, %v1073
      %vm1160 = vcmp.gt.s32.totalorder %v400, %v1087
      %vm1161 = vcmp.gt.s32.totalorder %v401, %v1101
      %vm1162 = vcmp.gt.s32.totalorder %v402, %v1115
      %vm1163 = vcmp.gt.s32.totalorder %v403, %v1129
      %vm1164 = vcmp.gt.s32.totalorder %v404, %v1143
      %vm1165 = vcmp.gt.s32.totalorder %v405, %v1157
      %v1166 = vsel %vm1158, %v398, 128
      %v1167 = vsel %vm1159, %v399, 128
      %v1168 = vsel %vm1160, %v400, 128
      %v1169 = vsel %vm1161, %v401, 128
      %v1170 = vsel %vm1162, %v402, 128
      %v1171 = vsel %vm1163, %v403, 128
      %v1172 = vsel %vm1164, %v404, 128
      %v1173 = vsel %vm1165, %v405, 128
      %v1174 = vand.u32 %v1166, 65535
      %v1175 = vshra.s32 %v1166, 16
      %v1176 = vcvt.s32.f32 %v1174
      %v1177 = vcvt.s32.f32 %v1175
      %1178 = vmin.xlane.f32.xlu0 %v1177
      %v1179 = vpop.xlane.xlu0 %1178
      %vm1180 = vcmp.eq.f32.partialorder %v1177, %v1179
      %v1181 = vsel %vm1180, %v1176, inf
      %1182 = vmin.xlane.f32.xlu0 %v1181
      %v1183 = vpop.xlane.xlu0 %1182
      %v1184 = vcvt.f32.s32 %v1183
      %v1185 = vcvt.f32.s32 %v1179
      %v1186 = vshll.u32 %v1185, 16
      %v1187 = vadd.s32 %v1186, %v1184
      %v1188 = vand.u32 %v1167, 65535
      %v1189 = vshra.s32 %v1167, 16
      %v1190 = vcvt.s32.f32 %v1188
      %v1191 = vcvt.s32.f32 %v1189
      %1192 = vmin.xlane.f32.xlu0 %v1191
      %v1193 = vpop.xlane.xlu0 %1192
      %vm1194 = vcmp.eq.f32.partialorder %v1191, %v1193
      %v1195 = vsel %vm1194, %v1190, inf
      %1196 = vmin.xlane.f32.xlu0 %v1195
      %v1197 = vpop.xlane.xlu0 %1196
      %v1198 = vcvt.f32.s32 %v1197
      %v1199 = vcvt.f32.s32 %v1193
      %v1200 = vshll.u32 %v1199, 16
      %v1201 = vadd.s32 %v1200, %v1198
      %v1202 = vand.u32 %v1168, 65535
      %v1203 = vshra.s32 %v1168, 16
      %v1204 = vcvt.s32.f32 %v1202
      %v1205 = vcvt.s32.f32 %v1203
      %1206 = vmin.xlane.f32.xlu0 %v1205
      %v1207 = vpop.xlane.xlu0 %1206
      %vm1208 = vcmp.eq.f32.partialorder %v1205, %v1207
      %v1209 = vsel %vm1208, %v1204, inf
      %1210 = vmin.xlane.f32.xlu0 %v1209
      %v1211 = vpop.xlane.xlu0 %1210
      %v1212 = vcvt.f32.s32 %v1211
      %v1213 = vcvt.f32.s32 %v1207
      %v1214 = vshll.u32 %v1213, 16
      %v1215 = vadd.s32 %v1214, %v1212
      %v1216 = vand.u32 %v1169, 65535
      %v1217 = vshra.s32 %v1169, 16
      %v1218 = vcvt.s32.f32 %v1216
      %v1219 = vcvt.s32.f32 %v1217
      %1220 = vmin.xlane.f32.xlu0 %v1219
      %v1221 = vpop.xlane.xlu0 %1220
      %vm1222 = vcmp.eq.f32.partialorder %v1219, %v1221
      %v1223 = vsel %vm1222, %v1218, inf
      %1224 = vmin.xlane.f32.xlu0 %v1223
      %v1225 = vpop.xlane.xlu0 %1224
      %v1226 = vcvt.f32.s32 %v1225
      %v1227 = vcvt.f32.s32 %v1221
      %v1228 = vshll.u32 %v1227, 16
      %v1229 = vadd.s32 %v1228, %v1226
      %v1230 = vand.u32 %v1170, 65535
      %v1231 = vshra.s32 %v1170, 16
      %v1232 = vcvt.s32.f32 %v1230
      %v1233 = vcvt.s32.f32 %v1231
      %1234 = vmin.xlane.f32.xlu0 %v1233
      %v1235 = vpop.xlane.xlu0 %1234
      %vm1236 = vcmp.eq.f32.partialorder %v1233, %v1235
      %v1237 = vsel %vm1236, %v1232, inf
      %1238 = vmin.xlane.f32.xlu0 %v1237
      %v1239 = vpop.xlane.xlu0 %1238
      %v1240 = vcvt.f32.s32 %v1239
      %v1241 = vcvt.f32.s32 %v1235
      %v1242 = vshll.u32 %v1241, 16
      %v1243 = vadd.s32 %v1242, %v1240
      %v1244 = vand.u32 %v1171, 65535
      %v1245 = vshra.s32 %v1171, 16
      %v1246 = vcvt.s32.f32 %v1244
      %v1247 = vcvt.s32.f32 %v1245
      %1248 = vmin.xlane.f32.xlu0 %v1247
      %v1249 = vpop.xlane.xlu0 %1248
      %vm1250 = vcmp.eq.f32.partialorder %v1247, %v1249
      %v1251 = vsel %vm1250, %v1246, inf
      %1252 = vmin.xlane.f32.xlu0 %v1251
      %v1253 = vpop.xlane.xlu0 %1252
      %v1254 = vcvt.f32.s32 %v1253
      %v1255 = vcvt.f32.s32 %v1249
      %v1256 = vshll.u32 %v1255, 16
      %v1257 = vadd.s32 %v1256, %v1254
      %v1258 = vand.u32 %v1172, 65535
      %v1259 = vshra.s32 %v1172, 16
      %v1260 = vcvt.s32.f32 %v1258
      %v1261 = vcvt.s32.f32 %v1259
      %1262 = vmin.xlane.f32.xlu0 %v1261
      %v1263 = vpop.xlane.xlu0 %1262
      %vm1264 = vcmp.eq.f32.partialorder %v1261, %v1263
      %v1265 = vsel %vm1264, %v1260, inf
      %1266 = vmin.xlane.f32.xlu0 %v1265
      %v1267 = vpop.xlane.xlu0 %1266
      %v1268 = vcvt.f32.s32 %v1267
      %v1269 = vcvt.f32.s32 %v1263
      %v1270 = vshll.u32 %v1269, 16
      %v1271 = vadd.s32 %v1270, %v1268
      %v1272 = vand.u32 %v1173, 65535
      %v1273 = vshra.s32 %v1173, 16
      %v1274 = vcvt.s32.f32 %v1272
      %v1275 = vcvt.s32.f32 %v1273
      %1276 = vmin.xlane.f32.xlu0 %v1275
      %v1277 = vpop.xlane.xlu0 %1276
      %vm1278 = vcmp.eq.f32.partialorder %v1275, %v1277
      %v1279 = vsel %vm1278, %v1274, inf
      %1280 = vmin.xlane.f32.xlu0 %v1279
      %v1281 = vpop.xlane.xlu0 %1280
      %v1282 = vcvt.f32.s32 %v1281
      %v1283 = vcvt.f32.s32 %v1277
      %v1284 = vshll.u32 %v1283, 16
      %v1285 = vadd.s32 %v1284, %v1282
      %vm1286 = vcmp.gt.s32.totalorder %v398, %v1187
      %vm1287 = vcmp.gt.s32.totalorder %v399, %v1201
      %vm1288 = vcmp.gt.s32.totalorder %v400, %v1215
      %vm1289 = vcmp.gt.s32.totalorder %v401, %v1229
      %vm1290 = vcmp.gt.s32.totalorder %v402, %v1243
      %vm1291 = vcmp.gt.s32.totalorder %v403, %v1257
      %vm1292 = vcmp.gt.s32.totalorder %v404, %v1271
      %vm1293 = vcmp.gt.s32.totalorder %v405, %v1285
      %v1294 = vsel %vm1286, %v398, 128
      %v1295 = vsel %vm1287, %v399, 128
      %v1296 = vsel %vm1288, %v400, 128
      %v1297 = vsel %vm1289, %v401, 128
      %v1298 = vsel %vm1290, %v402, 128
      %v1299 = vsel %vm1291, %v403, 128
      %v1300 = vsel %vm1292, %v404, 128
      %v1301 = vsel %vm1293, %v405, 128
      %v1302 = vand.u32 %v1294, 65535
      %v1303 = vshra.s32 %v1294, 16
      %v1304 = vcvt.s32.f32 %v1302
      %v1305 = vcvt.s32.f32 %v1303
      %1306 = vmin.xlane.f32.xlu0 %v1305
      %v1307 = vpop.xlane.xlu0 %1306
      %vm1308 = vcmp.eq.f32.partialorder %v1305, %v1307
      %v1309 = vsel %vm1308, %v1304, inf
      %1310 = vmin.xlane.f32.xlu0 %v1309
      %v1311 = vpop.xlane.xlu0 %1310
      %v1312 = vcvt.f32.s32 %v1311
      %v1313 = vcvt.f32.s32 %v1307
      %v1314 = vshll.u32 %v1313, 16
      %v1315 = vadd.s32 %v1314, %v1312
      %v1316 = vand.u32 %v1295, 65535
      %v1317 = vshra.s32 %v1295, 16
      %v1318 = vcvt.s32.f32 %v1316
      %v1319 = vcvt.s32.f32 %v1317
      %1320 = vmin.xlane.f32.xlu0 %v1319
      %v1321 = vpop.xlane.xlu0 %1320
      %vm1322 = vcmp.eq.f32.partialorder %v1319, %v1321
      %v1323 = vsel %vm1322, %v1318, inf
      %1324 = vmin.xlane.f32.xlu0 %v1323
      %v1325 = vpop.xlane.xlu0 %1324
      %v1326 = vcvt.f32.s32 %v1325
      %v1327 = vcvt.f32.s32 %v1321
      %v1328 = vshll.u32 %v1327, 16
      %v1329 = vadd.s32 %v1328, %v1326
      %v1330 = vand.u32 %v1296, 65535
      %v1331 = vshra.s32 %v1296, 16
      %v1332 = vcvt.s32.f32 %v1330
      %v1333 = vcvt.s32.f32 %v1331
      %1334 = vmin.xlane.f32.xlu0 %v1333
      %v1335 = vpop.xlane.xlu0 %1334
      %vm1336 = vcmp.eq.f32.partialorder %v1333, %v1335
      %v1337 = vsel %vm1336, %v1332, inf
      %1338 = vmin.xlane.f32.xlu0 %v1337
      %v1339 = vpop.xlane.xlu0 %1338
      %v1340 = vcvt.f32.s32 %v1339
      %v1341 = vcvt.f32.s32 %v1335
      %v1342 = vshll.u32 %v1341, 16
      %v1343 = vadd.s32 %v1342, %v1340
      %v1344 = vand.u32 %v1297, 65535
      %v1345 = vshra.s32 %v1297, 16
      %v1346 = vcvt.s32.f32 %v1344
      %v1347 = vcvt.s32.f32 %v1345
      %1348 = vmin.xlane.f32.xlu0 %v1347
      %v1349 = vpop.xlane.xlu0 %1348
      %vm1350 = vcmp.eq.f32.partialorder %v1347, %v1349
      %v1351 = vsel %vm1350, %v1346, inf
      %1352 = vmin.xlane.f32.xlu0 %v1351
      %v1353 = vpop.xlane.xlu0 %1352
      %v1354 = vcvt.f32.s32 %v1353
      %v1355 = vcvt.f32.s32 %v1349
      %v1356 = vshll.u32 %v1355, 16
      %v1357 = vadd.s32 %v1356, %v1354
      %v1358 = vand.u32 %v1298, 65535
      %v1359 = vshra.s32 %v1298, 16
      %v1360 = vcvt.s32.f32 %v1358
      %v1361 = vcvt.s32.f32 %v1359
      %1362 = vmin.xlane.f32.xlu0 %v1361
      %v1363 = vpop.xlane.xlu0 %1362
      %vm1364 = vcmp.eq.f32.partialorder %v1361, %v1363
      %v1365 = vsel %vm1364, %v1360, inf
      %1366 = vmin.xlane.f32.xlu0 %v1365
      %v1367 = vpop.xlane.xlu0 %1366
      %v1368 = vcvt.f32.s32 %v1367
      %v1369 = vcvt.f32.s32 %v1363
      %v1370 = vshll.u32 %v1369, 16
      %v1371 = vadd.s32 %v1370, %v1368
      %v1372 = vand.u32 %v1299, 65535
      %v1373 = vshra.s32 %v1299, 16
      %v1374 = vcvt.s32.f32 %v1372
      %v1375 = vcvt.s32.f32 %v1373
      %1376 = vmin.xlane.f32.xlu0 %v1375
      %v1377 = vpop.xlane.xlu0 %1376
      %vm1378 = vcmp.eq.f32.partialorder %v1375, %v1377
      %v1379 = vsel %vm1378, %v1374, inf
      %1380 = vmin.xlane.f32.xlu0 %v1379
      %v1381 = vpop.xlane.xlu0 %1380
      %v1382 = vcvt.f32.s32 %v1381
      %v1383 = vcvt.f32.s32 %v1377
      %v1384 = vshll.u32 %v1383, 16
      %v1385 = vadd.s32 %v1384, %v1382
      %v1386 = vand.u32 %v1300, 65535
      %v1387 = vshra.s32 %v1300, 16
      %v1388 = vcvt.s32.f32 %v1386
      %v1389 = vcvt.s32.f32 %v1387
      %1390 = vmin.xlane.f32.xlu0 %v1389
      %v1391 = vpop.xlane.xlu0 %1390
      %vm1392 = vcmp.eq.f32.partialorder %v1389, %v1391
      %v1393 = vsel %vm1392, %v1388, inf
      %1394 = vmin.xlane.f32.xlu0 %v1393
      %v1395 = vpop.xlane.xlu0 %1394
      %v1396 = vcvt.f32.s32 %v1395
      %v1397 = vcvt.f32.s32 %v1391
      %v1398 = vshll.u32 %v1397, 16
      %v1399 = vadd.s32 %v1398, %v1396
      %v1400 = vand.u32 %v1301, 65535
      %v1401 = vshra.s32 %v1301, 16
      %v1402 = vcvt.s32.f32 %v1400
      %v1403 = vcvt.s32.f32 %v1401
      %1404 = vmin.xlane.f32.xlu0 %v1403
      %v1405 = vpop.xlane.xlu0 %1404
      %vm1406 = vcmp.eq.f32.partialorder %v1403, %v1405
      %v1407 = vsel %vm1406, %v1402, inf
      %1408 = vmin.xlane.f32.xlu0 %v1407
      %v1409 = vpop.xlane.xlu0 %1408
      %v1410 = vcvt.f32.s32 %v1409
      %v1411 = vcvt.f32.s32 %v1405
      %v1412 = vshll.u32 %v1411, 16
      %v1413 = vadd.s32 %v1412, %v1410
      %vm1414 = vcmp.gt.s32.totalorder %v398, %v1315
      %vm1415 = vcmp.gt.s32.totalorder %v399, %v1329
      %vm1416 = vcmp.gt.s32.totalorder %v400, %v1343
      %vm1417 = vcmp.gt.s32.totalorder %v401, %v1357
      %vm1418 = vcmp.gt.s32.totalorder %v402, %v1371
      %vm1419 = vcmp.gt.s32.totalorder %v403, %v1385
      %vm1420 = vcmp.gt.s32.totalorder %v404, %v1399
      %vm1421 = vcmp.gt.s32.totalorder %v405, %v1413
      %v1422 = vsel %vm1414, %v398, 128
      %v1423 = vsel %vm1415, %v399, 128
      %v1424 = vsel %vm1416, %v400, 128
      %v1425 = vsel %vm1417, %v401, 128
      %v1426 = vsel %vm1418, %v402, 128
      %v1427 = vsel %vm1419, %v403, 128
      %v1428 = vsel %vm1420, %v404, 128
      %v1429 = vsel %vm1421, %v405, 128
      %v1430 = vand.u32 %v1422, 65535
      %v1431 = vshra.s32 %v1422, 16
      %v1432 = vcvt.s32.f32 %v1430
      %v1433 = vcvt.s32.f32 %v1431
      %1434 = vmin.xlane.f32.xlu0 %v1433
      %v1435 = vpop.xlane.xlu0 %1434
      %vm1436 = vcmp.eq.f32.partialorder %v1433, %v1435
      %v1437 = vsel %vm1436, %v1432, inf
      %1438 = vmin.xlane.f32.xlu0 %v1437
      %v1439 = vpop.xlane.xlu0 %1438
      %v1440 = vcvt.f32.s32 %v1439
      %v1441 = vcvt.f32.s32 %v1435
      %v1442 = vshll.u32 %v1441, 16
      %v1443 = vadd.s32 %v1442, %v1440
      %v1444 = vand.u32 %v1423, 65535
      %v1445 = vshra.s32 %v1423, 16
      %v1446 = vcvt.s32.f32 %v1444
      %v1447 = vcvt.s32.f32 %v1445
      %1448 = vmin.xlane.f32.xlu0 %v1447
      %v1449 = vpop.xlane.xlu0 %1448
      %vm1450 = vcmp.eq.f32.partialorder %v1447, %v1449
      %v1451 = vsel %vm1450, %v1446, inf
      %1452 = vmin.xlane.f32.xlu0 %v1451
      %v1453 = vpop.xlane.xlu0 %1452
      %v1454 = vcvt.f32.s32 %v1453
      %v1455 = vcvt.f32.s32 %v1449
      %v1456 = vshll.u32 %v1455, 16
      %v1457 = vadd.s32 %v1456, %v1454
      %v1458 = vand.u32 %v1424, 65535
      %v1459 = vshra.s32 %v1424, 16
      %v1460 = vcvt.s32.f32 %v1458
      %v1461 = vcvt.s32.f32 %v1459
      %1462 = vmin.xlane.f32.xlu0 %v1461
      %v1463 = vpop.xlane.xlu0 %1462
      %vm1464 = vcmp.eq.f32.partialorder %v1461, %v1463
      %v1465 = vsel %vm1464, %v1460, inf
      %1466 = vmin.xlane.f32.xlu0 %v1465
      %v1467 = vpop.xlane.xlu0 %1466
      %v1468 = vcvt.f32.s32 %v1467
      %v1469 = vcvt.f32.s32 %v1463
      %v1470 = vshll.u32 %v1469, 16
      %v1471 = vadd.s32 %v1470, %v1468
      %v1472 = vand.u32 %v1425, 65535
      %v1473 = vshra.s32 %v1425, 16
      %v1474 = vcvt.s32.f32 %v1472
      %v1475 = vcvt.s32.f32 %v1473
      %1476 = vmin.xlane.f32.xlu0 %v1475
      %v1477 = vpop.xlane.xlu0 %1476
      %vm1478 = vcmp.eq.f32.partialorder %v1475, %v1477
      %v1479 = vsel %vm1478, %v1474, inf
      %1480 = vmin.xlane.f32.xlu0 %v1479
      %v1481 = vpop.xlane.xlu0 %1480
      %v1482 = vcvt.f32.s32 %v1481
      %v1483 = vcvt.f32.s32 %v1477
      %v1484 = vshll.u32 %v1483, 16
      %v1485 = vadd.s32 %v1484, %v1482
      %v1486 = vand.u32 %v1426, 65535
      %v1487 = vshra.s32 %v1426, 16
      %v1488 = vcvt.s32.f32 %v1486
      %v1489 = vcvt.s32.f32 %v1487
      %1490 = vmin.xlane.f32.xlu0 %v1489
      %v1491 = vpop.xlane.xlu0 %1490
      %vm1492 = vcmp.eq.f32.partialorder %v1489, %v1491
      %v1493 = vsel %vm1492, %v1488, inf
      %1494 = vmin.xlane.f32.xlu0 %v1493
      %v1495 = vpop.xlane.xlu0 %1494
      %v1496 = vcvt.f32.s32 %v1495
      %v1497 = vcvt.f32.s32 %v1491
      %v1498 = vshll.u32 %v1497, 16
      %v1499 = vadd.s32 %v1498, %v1496
      %v1500 = vand.u32 %v1427, 65535
      %v1501 = vshra.s32 %v1427, 16
      %v1502 = vcvt.s32.f32 %v1500
      %v1503 = vcvt.s32.f32 %v1501
      %1504 = vmin.xlane.f32.xlu0 %v1503
      %v1505 = vpop.xlane.xlu0 %1504
      %vm1506 = vcmp.eq.f32.partialorder %v1503, %v1505
      %v1507 = vsel %vm1506, %v1502, inf
      %1508 = vmin.xlane.f32.xlu0 %v1507
      %v1509 = vpop.xlane.xlu0 %1508
      %v1510 = vcvt.f32.s32 %v1509
      %v1511 = vcvt.f32.s32 %v1505
      %v1512 = vshll.u32 %v1511, 16
      %v1513 = vadd.s32 %v1512, %v1510
      %v1514 = vand.u32 %v1428, 65535
      %v1515 = vshra.s32 %v1428, 16
      %v1516 = vcvt.s32.f32 %v1514
      %v1517 = vcvt.s32.f32 %v1515
      %1518 = vmin.xlane.f32.xlu0 %v1517
      %v1519 = vpop.xlane.xlu0 %1518
      %vm1520 = vcmp.eq.f32.partialorder %v1517, %v1519
      %v1521 = vsel %vm1520, %v1516, inf
      %1522 = vmin.xlane.f32.xlu0 %v1521
      %v1523 = vpop.xlane.xlu0 %1522
      %v1524 = vcvt.f32.s32 %v1523
      %v1525 = vcvt.f32.s32 %v1519
      %v1526 = vshll.u32 %v1525, 16
      %v1527 = vadd.s32 %v1526, %v1524
      %v1528 = vand.u32 %v1429, 65535
      %v1529 = vshra.s32 %v1429, 16
      %v1530 = vcvt.s32.f32 %v1528
      %v1531 = vcvt.s32.f32 %v1529
      %1532 = vmin.xlane.f32.xlu0 %v1531
      %v1533 = vpop.xlane.xlu0 %1532
      %vm1534 = vcmp.eq.f32.partialorder %v1531, %v1533
      %v1535 = vsel %vm1534, %v1530, inf
      %1536 = vmin.xlane.f32.xlu0 %v1535
      %v1537 = vpop.xlane.xlu0 %1536
      %v1538 = vcvt.f32.s32 %v1537
      %v1539 = vcvt.f32.s32 %v1533
      %v1540 = vshll.u32 %v1539, 16
      %v1541 = vadd.s32 %v1540, %v1538
      %vm1542 = vcmp.gt.s32.totalorder %v398, %v1443
      %vm1543 = vcmp.gt.s32.totalorder %v399, %v1457
      %vm1544 = vcmp.gt.s32.totalorder %v400, %v1471
      %vm1545 = vcmp.gt.s32.totalorder %v401, %v1485
      %vm1546 = vcmp.gt.s32.totalorder %v402, %v1499
      %vm1547 = vcmp.gt.s32.totalorder %v403, %v1513
      %vm1548 = vcmp.gt.s32.totalorder %v404, %v1527
      %vm1549 = vcmp.gt.s32.totalorder %v405, %v1541
      %v1550 = vsel %vm1542, %v398, 128
      %v1551 = vsel %vm1543, %v399, 128
      %v1552 = vsel %vm1544, %v400, 128
      %v1553 = vsel %vm1545, %v401, 128
      %v1554 = vsel %vm1546, %v402, 128
      %v1555 = vsel %vm1547, %v403, 128
      %v1556 = vsel %vm1548, %v404, 128
      %v1557 = vsel %vm1549, %v405, 128
      %v1558 = vand.u32 %v1550, 65535
      %v1559 = vshra.s32 %v1550, 16
      %v1560 = vcvt.s32.f32 %v1558
      %v1561 = vcvt.s32.f32 %v1559
      %1562 = vmin.xlane.f32.xlu0 %v1561
      %v1563 = vpop.xlane.xlu0 %1562
      %vm1564 = vcmp.eq.f32.partialorder %v1561, %v1563
      %v1565 = vsel %vm1564, %v1560, inf
      %1566 = vmin.xlane.f32.xlu0 %v1565
      %v1567 = vpop.xlane.xlu0 %1566
      %v1568 = vcvt.f32.s32 %v1567
      %v1569 = vcvt.f32.s32 %v1563
      %v1570 = vshll.u32 %v1569, 16
      %v1571 = vadd.s32 %v1570, %v1568
      %v1572 = vand.u32 %v1551, 65535
      %v1573 = vshra.s32 %v1551, 16
      %v1574 = vcvt.s32.f32 %v1572
      %v1575 = vcvt.s32.f32 %v1573
      %1576 = vmin.xlane.f32.xlu0 %v1575
      %v1577 = vpop.xlane.xlu0 %1576
      %vm1578 = vcmp.eq.f32.partialorder %v1575, %v1577
      %v1579 = vsel %vm1578, %v1574, inf
      %1580 = vmin.xlane.f32.xlu0 %v1579
      %v1581 = vpop.xlane.xlu0 %1580
      %v1582 = vcvt.f32.s32 %v1581
      %v1583 = vcvt.f32.s32 %v1577
      %v1584 = vshll.u32 %v1583, 16
      %v1585 = vadd.s32 %v1584, %v1582
      %v1586 = vand.u32 %v1552, 65535
      %v1587 = vshra.s32 %v1552, 16
      %v1588 = vcvt.s32.f32 %v1586
      %v1589 = vcvt.s32.f32 %v1587
      %1590 = vmin.xlane.f32.xlu0 %v1589
      %v1591 = vpop.xlane.xlu0 %1590
      %vm1592 = vcmp.eq.f32.partialorder %v1589, %v1591
      %v1593 = vsel %vm1592, %v1588, inf
      %1594 = vmin.xlane.f32.xlu0 %v1593
      %v1595 = vpop.xlane.xlu0 %1594
      %v1596 = vcvt.f32.s32 %v1595
      %v1597 = vcvt.f32.s32 %v1591
      %v1598 = vshll.u32 %v1597, 16
      %v1599 = vadd.s32 %v1598, %v1596
      %v1600 = vand.u32 %v1553, 65535
      %v1601 = vshra.s32 %v1553, 16
      %v1602 = vcvt.s32.f32 %v1600
      %v1603 = vcvt.s32.f32 %v1601
      %1604 = vmin.xlane.f32.xlu0 %v1603
      %v1605 = vpop.xlane.xlu0 %1604
      %vm1606 = vcmp.eq.f32.partialorder %v1603, %v1605
      %v1607 = vsel %vm1606, %v1602, inf
      %1608 = vmin.xlane.f32.xlu0 %v1607
      %v1609 = vpop.xlane.xlu0 %1608
      %v1610 = vcvt.f32.s32 %v1609
      %v1611 = vcvt.f32.s32 %v1605
      %v1612 = vshll.u32 %v1611, 16
      %v1613 = vadd.s32 %v1612, %v1610
      %v1614 = vand.u32 %v1554, 65535
      %v1615 = vshra.s32 %v1554, 16
      %v1616 = vcvt.s32.f32 %v1614
      %v1617 = vcvt.s32.f32 %v1615
      %1618 = vmin.xlane.f32.xlu0 %v1617
      %v1619 = vpop.xlane.xlu0 %1618
      %vm1620 = vcmp.eq.f32.partialorder %v1617, %v1619
      %v1621 = vsel %vm1620, %v1616, inf
      %1622 = vmin.xlane.f32.xlu0 %v1621
      %v1623 = vpop.xlane.xlu0 %1622
      %v1624 = vcvt.f32.s32 %v1623
      %v1625 = vcvt.f32.s32 %v1619
      %v1626 = vshll.u32 %v1625, 16
      %v1627 = vadd.s32 %v1626, %v1624
      %v1628 = vand.u32 %v1555, 65535
      %v1629 = vshra.s32 %v1555, 16
      %v1630 = vcvt.s32.f32 %v1628
      %v1631 = vcvt.s32.f32 %v1629
      %1632 = vmin.xlane.f32.xlu0 %v1631
      %v1633 = vpop.xlane.xlu0 %1632
      %vm1634 = vcmp.eq.f32.partialorder %v1631, %v1633
      %v1635 = vsel %vm1634, %v1630, inf
      %1636 = vmin.xlane.f32.xlu0 %v1635
      %v1637 = vpop.xlane.xlu0 %1636
      %v1638 = vcvt.f32.s32 %v1637
      %v1639 = vcvt.f32.s32 %v1633
      %v1640 = vshll.u32 %v1639, 16
      %v1641 = vadd.s32 %v1640, %v1638
      %v1642 = vand.u32 %v1556, 65535
      %v1643 = vshra.s32 %v1556, 16
      %v1644 = vcvt.s32.f32 %v1642
      %v1645 = vcvt.s32.f32 %v1643
      %1646 = vmin.xlane.f32.xlu0 %v1645
      %v1647 = vpop.xlane.xlu0 %1646
      %vm1648 = vcmp.eq.f32.partialorder %v1645, %v1647
      %v1649 = vsel %vm1648, %v1644, inf
      %1650 = vmin.xlane.f32.xlu0 %v1649
      %v1651 = vpop.xlane.xlu0 %1650
      %v1652 = vcvt.f32.s32 %v1651
      %v1653 = vcvt.f32.s32 %v1647
      %v1654 = vshll.u32 %v1653, 16
      %v1655 = vadd.s32 %v1654, %v1652
      %v1656 = vand.u32 %v1557, 65535
      %v1657 = vshra.s32 %v1557, 16
      %v1658 = vcvt.s32.f32 %v1656
      %v1659 = vcvt.s32.f32 %v1657
      %1660 = vmin.xlane.f32.xlu0 %v1659
      %v1661 = vpop.xlane.xlu0 %1660
      %vm1662 = vcmp.eq.f32.partialorder %v1659, %v1661
      %v1663 = vsel %vm1662, %v1658, inf
      %1664 = vmin.xlane.f32.xlu0 %v1663
      %v1665 = vpop.xlane.xlu0 %1664
      %v1666 = vcvt.f32.s32 %v1665
      %v1667 = vcvt.f32.s32 %v1661
      %v1668 = vshll.u32 %v1667, 16
      %v1669 = vadd.s32 %v1668, %v1666
      %vm1670 = vcmp.gt.s32.totalorder %v398, %v1571
      %vm1671 = vcmp.gt.s32.totalorder %v399, %v1585
      %vm1672 = vcmp.gt.s32.totalorder %v400, %v1599
      %vm1673 = vcmp.gt.s32.totalorder %v401, %v1613
      %vm1674 = vcmp.gt.s32.totalorder %v402, %v1627
      %vm1675 = vcmp.gt.s32.totalorder %v403, %v1641
      %vm1676 = vcmp.gt.s32.totalorder %v404, %v1655
      %vm1677 = vcmp.gt.s32.totalorder %v405, %v1669
      %v1678 = vsel %vm1670, %v398, 128
      %v1679 = vsel %vm1671, %v399, 128
      %v1680 = vsel %vm1672, %v400, 128
      %v1681 = vsel %vm1673, %v401, 128
      %v1682 = vsel %vm1674, %v402, 128
      %v1683 = vsel %vm1675, %v403, 128
      %v1684 = vsel %vm1676, %v404, 128
      %v1685 = vsel %vm1677, %v405, 128
      %v1686 = vand.u32 %v1678, 65535
      %v1687 = vshra.s32 %v1678, 16
      %v1688 = vcvt.s32.f32 %v1686
      %v1689 = vcvt.s32.f32 %v1687
      %1690 = vmin.xlane.f32.xlu0 %v1689
      %v1691 = vpop.xlane.xlu0 %1690
      %vm1692 = vcmp.eq.f32.partialorder %v1689, %v1691
      %v1693 = vsel %vm1692, %v1688, inf
      %1694 = vmin.xlane.f32.xlu0 %v1693
      %v1695 = vpop.xlane.xlu0 %1694
      %v1696 = vcvt.f32.s32 %v1695
      %v1697 = vcvt.f32.s32 %v1691
      %v1698 = vshll.u32 %v1697, 16
      %v1699 = vadd.s32 %v1698, %v1696
      %v1700 = vand.u32 %v1679, 65535
      %v1701 = vshra.s32 %v1679, 16
      %v1702 = vcvt.s32.f32 %v1700
      %v1703 = vcvt.s32.f32 %v1701
      %1704 = vmin.xlane.f32.xlu0 %v1703
      %v1705 = vpop.xlane.xlu0 %1704
      %vm1706 = vcmp.eq.f32.partialorder %v1703, %v1705
      %v1707 = vsel %vm1706, %v1702, inf
      %1708 = vmin.xlane.f32.xlu0 %v1707
      %v1709 = vpop.xlane.xlu0 %1708
      %v1710 = vcvt.f32.s32 %v1709
      %v1711 = vcvt.f32.s32 %v1705
      %v1712 = vshll.u32 %v1711, 16
      %v1713 = vadd.s32 %v1712, %v1710
      %v1714 = vand.u32 %v1680, 65535
      %v1715 = vshra.s32 %v1680, 16
      %v1716 = vcvt.s32.f32 %v1714
      %v1717 = vcvt.s32.f32 %v1715
      %1718 = vmin.xlane.f32.xlu0 %v1717
      %v1719 = vpop.xlane.xlu0 %1718
      %vm1720 = vcmp.eq.f32.partialorder %v1717, %v1719
      %v1721 = vsel %vm1720, %v1716, inf
      %1722 = vmin.xlane.f32.xlu0 %v1721
      %v1723 = vpop.xlane.xlu0 %1722
      %v1724 = vcvt.f32.s32 %v1723
      %v1725 = vcvt.f32.s32 %v1719
      %v1726 = vshll.u32 %v1725, 16
      %v1727 = vadd.s32 %v1726, %v1724
      %v1728 = vand.u32 %v1681, 65535
      %v1729 = vshra.s32 %v1681, 16
      %v1730 = vcvt.s32.f32 %v1728
      %v1731 = vcvt.s32.f32 %v1729
      %1732 = vmin.xlane.f32.xlu0 %v1731
      %v1733 = vpop.xlane.xlu0 %1732
      %vm1734 = vcmp.eq.f32.partialorder %v1731, %v1733
      %v1735 = vsel %vm1734, %v1730, inf
      %1736 = vmin.xlane.f32.xlu0 %v1735
      %v1737 = vpop.xlane.xlu0 %1736
      %v1738 = vcvt.f32.s32 %v1737
      %v1739 = vcvt.f32.s32 %v1733
      %v1740 = vshll.u32 %v1739, 16
      %v1741 = vadd.s32 %v1740, %v1738
      %v1742 = vand.u32 %v1682, 65535
      %v1743 = vshra.s32 %v1682, 16
      %v1744 = vcvt.s32.f32 %v1742
      %v1745 = vcvt.s32.f32 %v1743
      %1746 = vmin.xlane.f32.xlu0 %v1745
      %v1747 = vpop.xlane.xlu0 %1746
      %vm1748 = vcmp.eq.f32.partialorder %v1745, %v1747
      %v1749 = vsel %vm1748, %v1744, inf
      %1750 = vmin.xlane.f32.xlu0 %v1749
      %v1751 = vpop.xlane.xlu0 %1750
      %v1752 = vcvt.f32.s32 %v1751
      %v1753 = vcvt.f32.s32 %v1747
      %v1754 = vshll.u32 %v1753, 16
      %v1755 = vadd.s32 %v1754, %v1752
      %v1756 = vand.u32 %v1683, 65535
      %v1757 = vshra.s32 %v1683, 16
      %v1758 = vcvt.s32.f32 %v1756
      %v1759 = vcvt.s32.f32 %v1757
      %1760 = vmin.xlane.f32.xlu0 %v1759
      %v1761 = vpop.xlane.xlu0 %1760
      %vm1762 = vcmp.eq.f32.partialorder %v1759, %v1761
      %v1763 = vsel %vm1762, %v1758, inf
      %1764 = vmin.xlane.f32.xlu0 %v1763
      %v1765 = vpop.xlane.xlu0 %1764
      %v1766 = vcvt.f32.s32 %v1765
      %v1767 = vcvt.f32.s32 %v1761
      %v1768 = vshll.u32 %v1767, 16
      %v1769 = vadd.s32 %v1768, %v1766
      %v1770 = vand.u32 %v1684, 65535
      %v1771 = vshra.s32 %v1684, 16
      %v1772 = vcvt.s32.f32 %v1770
      %v1773 = vcvt.s32.f32 %v1771
      %1774 = vmin.xlane.f32.xlu0 %v1773
      %v1775 = vpop.xlane.xlu0 %1774
      %vm1776 = vcmp.eq.f32.partialorder %v1773, %v1775
      %v1777 = vsel %vm1776, %v1772, inf
      %1778 = vmin.xlane.f32.xlu0 %v1777
      %v1779 = vpop.xlane.xlu0 %1778
      %v1780 = vcvt.f32.s32 %v1779
      %v1781 = vcvt.f32.s32 %v1775
      %v1782 = vshll.u32 %v1781, 16
      %v1783 = vadd.s32 %v1782, %v1780
      %v1784 = vand.u32 %v1685, 65535
      %v1785 = vshra.s32 %v1685, 16
      %v1786 = vcvt.s32.f32 %v1784
      %v1787 = vcvt.s32.f32 %v1785
      %1788 = vmin.xlane.f32.xlu0 %v1787
      %v1789 = vpop.xlane.xlu0 %1788
      %vm1790 = vcmp.eq.f32.partialorder %v1787, %v1789
      %v1791 = vsel %vm1790, %v1786, inf
      %1792 = vmin.xlane.f32.xlu0 %v1791
      %v1793 = vpop.xlane.xlu0 %1792
      %v1794 = vcvt.f32.s32 %v1793
      %v1795 = vcvt.f32.s32 %v1789
      %v1796 = vshll.u32 %v1795, 16
      %v1797 = vadd.s32 %v1796, %v1794
      %vm1798 = vcmp.gt.s32.totalorder %v398, %v1699
      %vm1799 = vcmp.gt.s32.totalorder %v399, %v1713
      %vm1800 = vcmp.gt.s32.totalorder %v400, %v1727
      %vm1801 = vcmp.gt.s32.totalorder %v401, %v1741
      %vm1802 = vcmp.gt.s32.totalorder %v402, %v1755
      %vm1803 = vcmp.gt.s32.totalorder %v403, %v1769
      %vm1804 = vcmp.gt.s32.totalorder %v404, %v1783
      %vm1805 = vcmp.gt.s32.totalorder %v405, %v1797
      %v1806 = vsel %vm1798, %v398, 128
      %v1807 = vsel %vm1799, %v399, 128
      %v1808 = vsel %vm1800, %v400, 128
      %v1809 = vsel %vm1801, %v401, 128
      %v1810 = vsel %vm1802, %v402, 128
      %v1811 = vsel %vm1803, %v403, 128
      %v1812 = vsel %vm1804, %v404, 128
      %v1813 = vsel %vm1805, %v405, 128
      %v1814 = vand.u32 %v1806, 65535
      %v1815 = vshra.s32 %v1806, 16
      %v1816 = vcvt.s32.f32 %v1814
      %v1817 = vcvt.s32.f32 %v1815
      %1818 = vmin.xlane.f32.xlu0 %v1817
      %v1819 = vpop.xlane.xlu0 %1818
      %vm1820 = vcmp.eq.f32.partialorder %v1817, %v1819
      %v1821 = vsel %vm1820, %v1816, inf
      %1822 = vmin.xlane.f32.xlu0 %v1821
      %v1823 = vpop.xlane.xlu0 %1822
      %v1824 = vcvt.f32.s32 %v1823
      %v1825 = vcvt.f32.s32 %v1819
      %v1826 = vshll.u32 %v1825, 16
      %v1827 = vadd.s32 %v1826, %v1824
      %v1828 = vand.u32 %v1807, 65535
      %v1829 = vshra.s32 %v1807, 16
      %v1830 = vcvt.s32.f32 %v1828
      %v1831 = vcvt.s32.f32 %v1829
      %1832 = vmin.xlane.f32.xlu0 %v1831
      %v1833 = vpop.xlane.xlu0 %1832
      %vm1834 = vcmp.eq.f32.partialorder %v1831, %v1833
      %v1835 = vsel %vm1834, %v1830, inf
      %1836 = vmin.xlane.f32.xlu0 %v1835
      %v1837 = vpop.xlane.xlu0 %1836
      %v1838 = vcvt.f32.s32 %v1837
      %v1839 = vcvt.f32.s32 %v1833
      %v1840 = vshll.u32 %v1839, 16
      %v1841 = vadd.s32 %v1840, %v1838
      %v1842 = vand.u32 %v1808, 65535
      %v1843 = vshra.s32 %v1808, 16
      %v1844 = vcvt.s32.f32 %v1842
      %v1845 = vcvt.s32.f32 %v1843
      %1846 = vmin.xlane.f32.xlu0 %v1845
      %v1847 = vpop.xlane.xlu0 %1846
      %vm1848 = vcmp.eq.f32.partialorder %v1845, %v1847
      %v1849 = vsel %vm1848, %v1844, inf
      %1850 = vmin.xlane.f32.xlu0 %v1849
      %v1851 = vpop.xlane.xlu0 %1850
      %v1852 = vcvt.f32.s32 %v1851
      %v1853 = vcvt.f32.s32 %v1847
      %v1854 = vshll.u32 %v1853, 16
      %v1855 = vadd.s32 %v1854, %v1852
      %v1856 = vand.u32 %v1809, 65535
      %v1857 = vshra.s32 %v1809, 16
      %v1858 = vcvt.s32.f32 %v1856
      %v1859 = vcvt.s32.f32 %v1857
      %1860 = vmin.xlane.f32.xlu0 %v1859
      %v1861 = vpop.xlane.xlu0 %1860
      %vm1862 = vcmp.eq.f32.partialorder %v1859, %v1861
      %v1863 = vsel %vm1862, %v1858, inf
      %1864 = vmin.xlane.f32.xlu0 %v1863
      %v1865 = vpop.xlane.xlu0 %1864
      %v1866 = vcvt.f32.s32 %v1865
      %v1867 = vcvt.f32.s32 %v1861
      %v1868 = vshll.u32 %v1867, 16
      %v1869 = vadd.s32 %v1868, %v1866
      %v1870 = vand.u32 %v1810, 65535
      %v1871 = vshra.s32 %v1810, 16
      %v1872 = vcvt.s32.f32 %v1870
      %v1873 = vcvt.s32.f32 %v1871
      %1874 = vmin.xlane.f32.xlu0 %v1873
      %v1875 = vpop.xlane.xlu0 %1874
      %vm1876 = vcmp.eq.f32.partialorder %v1873, %v1875
      %v1877 = vsel %vm1876, %v1872, inf
      %1878 = vmin.xlane.f32.xlu0 %v1877
      %v1879 = vpop.xlane.xlu0 %1878
      %v1880 = vcvt.f32.s32 %v1879
      %v1881 = vcvt.f32.s32 %v1875
      %v1882 = vshll.u32 %v1881, 16
      %v1883 = vadd.s32 %v1882, %v1880
      %v1884 = vand.u32 %v1811, 65535
      %v1885 = vshra.s32 %v1811, 16
      %v1886 = vcvt.s32.f32 %v1884
      %v1887 = vcvt.s32.f32 %v1885
      %1888 = vmin.xlane.f32.xlu0 %v1887
      %v1889 = vpop.xlane.xlu0 %1888
      %vm1890 = vcmp.eq.f32.partialorder %v1887, %v1889
      %v1891 = vsel %vm1890, %v1886, inf
      %1892 = vmin.xlane.f32.xlu0 %v1891
      %v1893 = vpop.xlane.xlu0 %1892
      %v1894 = vcvt.f32.s32 %v1893
      %v1895 = vcvt.f32.s32 %v1889
      %v1896 = vshll.u32 %v1895, 16
      %v1897 = vadd.s32 %v1896, %v1894
      %v1898 = vand.u32 %v1812, 65535
      %v1899 = vshra.s32 %v1812, 16
      %v1900 = vcvt.s32.f32 %v1898
      %v1901 = vcvt.s32.f32 %v1899
      %1902 = vmin.xlane.f32.xlu0 %v1901
      %v1903 = vpop.xlane.xlu0 %1902
      %vm1904 = vcmp.eq.f32.partialorder %v1901, %v1903
      %v1905 = vsel %vm1904, %v1900, inf
      %1906 = vmin.xlane.f32.xlu0 %v1905
      %v1907 = vpop.xlane.xlu0 %1906
      %v1908 = vcvt.f32.s32 %v1907
      %v1909 = vcvt.f32.s32 %v1903
      %v1910 = vshll.u32 %v1909, 16
      %v1911 = vadd.s32 %v1910, %v1908
      %v1912 = vand.u32 %v1813, 65535
      %v1913 = vshra.s32 %v1813, 16
      %v1914 = vcvt.s32.f32 %v1912
      %v1915 = vcvt.s32.f32 %v1913
      %1916 = vmin.xlane.f32.xlu0 %v1915
      %v1917 = vpop.xlane.xlu0 %1916
      %vm1918 = vcmp.eq.f32.partialorder %v1915, %v1917
      %v1919 = vsel %vm1918, %v1914, inf
      %1920 = vmin.xlane.f32.xlu0 %v1919
      %v1921 = vpop.xlane.xlu0 %1920
      %v1922 = vcvt.f32.s32 %v1921
      %v1923 = vcvt.f32.s32 %v1917
      %v1924 = vshll.u32 %v1923, 16
      %v1925 = vadd.s32 %v1924, %v1922
      %vm1926 = vcmp.gt.s32.totalorder %v398, %v1827
      %vm1927 = vcmp.gt.s32.totalorder %v399, %v1841
      %vm1928 = vcmp.gt.s32.totalorder %v400, %v1855
      %vm1929 = vcmp.gt.s32.totalorder %v401, %v1869
      %vm1930 = vcmp.gt.s32.totalorder %v402, %v1883
      %vm1931 = vcmp.gt.s32.totalorder %v403, %v1897
      %vm1932 = vcmp.gt.s32.totalorder %v404, %v1911
      %vm1933 = vcmp.gt.s32.totalorder %v405, %v1925
      %v1934 = vsel %vm1926, %v398, 128
      %v1935 = vsel %vm1927, %v399, 128
      %v1936 = vsel %vm1928, %v400, 128
      %v1937 = vsel %vm1929, %v401, 128
      %v1938 = vsel %vm1930, %v402, 128
      %v1939 = vsel %vm1931, %v403, 128
      %v1940 = vsel %vm1932, %v404, 128
      %v1941 = vsel %vm1933, %v405, 128
      %v1942 = vand.u32 %v1934, 65535
      %v1943 = vshra.s32 %v1934, 16
      %v1944 = vcvt.s32.f32 %v1942
      %v1945 = vcvt.s32.f32 %v1943
      %1946 = vmin.xlane.f32.xlu0 %v1945
      %v1947 = vpop.xlane.xlu0 %1946
      %vm1948 = vcmp.eq.f32.partialorder %v1945, %v1947
      %v1949 = vsel %vm1948, %v1944, inf
      %1950 = vmin.xlane.f32.xlu0 %v1949
      %v1951 = vpop.xlane.xlu0 %1950
      %v1952 = vcvt.f32.s32 %v1951
      %v1953 = vcvt.f32.s32 %v1947
      %v1954 = vshll.u32 %v1953, 16
      %v1955 = vadd.s32 %v1954, %v1952
      %v1956 = vand.u32 %v1935, 65535
      %v1957 = vshra.s32 %v1935, 16
      %v1958 = vcvt.s32.f32 %v1956
      %v1959 = vcvt.s32.f32 %v1957
      %1960 = vmin.xlane.f32.xlu0 %v1959
      %v1961 = vpop.xlane.xlu0 %1960
      %vm1962 = vcmp.eq.f32.partialorder %v1959, %v1961
      %v1963 = vsel %vm1962, %v1958, inf
      %1964 = vmin.xlane.f32.xlu0 %v1963
      %v1965 = vpop.xlane.xlu0 %1964
      %v1966 = vcvt.f32.s32 %v1965
      %v1967 = vcvt.f32.s32 %v1961
      %v1968 = vshll.u32 %v1967, 16
      %v1969 = vadd.s32 %v1968, %v1966
      %v1970 = vand.u32 %v1936, 65535
      %v1971 = vshra.s32 %v1936, 16
      %v1972 = vcvt.s32.f32 %v1970
      %v1973 = vcvt.s32.f32 %v1971
      %1974 = vmin.xlane.f32.xlu0 %v1973
      %v1975 = vpop.xlane.xlu0 %1974
      %vm1976 = vcmp.eq.f32.partialorder %v1973, %v1975
      %v1977 = vsel %vm1976, %v1972, inf
      %1978 = vmin.xlane.f32.xlu0 %v1977
      %v1979 = vpop.xlane.xlu0 %1978
      %v1980 = vcvt.f32.s32 %v1979
      %v1981 = vcvt.f32.s32 %v1975
      %v1982 = vshll.u32 %v1981, 16
      %v1983 = vadd.s32 %v1982, %v1980
      %v1984 = vand.u32 %v1937, 65535
      %v1985 = vshra.s32 %v1937, 16
      %v1986 = vcvt.s32.f32 %v1984
      %v1987 = vcvt.s32.f32 %v1985
      %1988 = vmin.xlane.f32.xlu0 %v1987
      %v1989 = vpop.xlane.xlu0 %1988
      %vm1990 = vcmp.eq.f32.partialorder %v1987, %v1989
      %v1991 = vsel %vm1990, %v1986, inf
      %1992 = vmin.xlane.f32.xlu0 %v1991
      %v1993 = vpop.xlane.xlu0 %1992
      %v1994 = vcvt.f32.s32 %v1993
      %v1995 = vcvt.f32.s32 %v1989
      %v1996 = vshll.u32 %v1995, 16
      %v1997 = vadd.s32 %v1996, %v1994
      %v1998 = vand.u32 %v1938, 65535
      %v1999 = vshra.s32 %v1938, 16
      %v2000 = vcvt.s32.f32 %v1998
      %v2001 = vcvt.s32.f32 %v1999
      %2002 = vmin.xlane.f32.xlu0 %v2001
      %v2003 = vpop.xlane.xlu0 %2002
      %vm2004 = vcmp.eq.f32.partialorder %v2001, %v2003
      %v2005 = vsel %vm2004, %v2000, inf
      %2006 = vmin.xlane.f32.xlu0 %v2005
      %v2007 = vpop.xlane.xlu0 %2006
      %v2008 = vcvt.f32.s32 %v2007
      %v2009 = vcvt.f32.s32 %v2003
      %v2010 = vshll.u32 %v2009, 16
      %v2011 = vadd.s32 %v2010, %v2008
      %v2012 = vand.u32 %v1939, 65535
      %v2013 = vshra.s32 %v1939, 16
      %v2014 = vcvt.s32.f32 %v2012
      %v2015 = vcvt.s32.f32 %v2013
      %2016 = vmin.xlane.f32.xlu0 %v2015
      %v2017 = vpop.xlane.xlu0 %2016
      %vm2018 = vcmp.eq.f32.partialorder %v2015, %v2017
      %v2019 = vsel %vm2018, %v2014, inf
      %2020 = vmin.xlane.f32.xlu0 %v2019
      %v2021 = vpop.xlane.xlu0 %2020
      %v2022 = vcvt.f32.s32 %v2021
      %v2023 = vcvt.f32.s32 %v2017
      %v2024 = vshll.u32 %v2023, 16
      %v2025 = vadd.s32 %v2024, %v2022
      %v2026 = vand.u32 %v1940, 65535
      %v2027 = vshra.s32 %v1940, 16
      %v2028 = vcvt.s32.f32 %v2026
      %v2029 = vcvt.s32.f32 %v2027
      %2030 = vmin.xlane.f32.xlu0 %v2029
      %v2031 = vpop.xlane.xlu0 %2030
      %vm2032 = vcmp.eq.f32.partialorder %v2029, %v2031
      %v2033 = vsel %vm2032, %v2028, inf
      %2034 = vmin.xlane.f32.xlu0 %v2033
      %v2035 = vpop.xlane.xlu0 %2034
      %v2036 = vcvt.f32.s32 %v2035
      %v2037 = vcvt.f32.s32 %v2031
      %v2038 = vshll.u32 %v2037, 16
      %v2039 = vadd.s32 %v2038, %v2036
      %v2040 = vand.u32 %v1941, 65535
      %v2041 = vshra.s32 %v1941, 16
      %v2042 = vcvt.s32.f32 %v2040
      %v2043 = vcvt.s32.f32 %v2041
      %2044 = vmin.xlane.f32.xlu0 %v2043
      %v2045 = vpop.xlane.xlu0 %2044
      %vm2046 = vcmp.eq.f32.partialorder %v2043, %v2045
      %v2047 = vsel %vm2046, %v2042, inf
      %2048 = vmin.xlane.f32.xlu0 %v2047
      %v2049 = vpop.xlane.xlu0 %2048
      %v2050 = vcvt.f32.s32 %v2049
      %v2051 = vcvt.f32.s32 %v2045
      %v2052 = vshll.u32 %v2051, 16
      %v2053 = vadd.s32 %v2052, %v2050
      %vm2054 = vcmp.gt.s32.totalorder %v398, %v1955
      %vm2055 = vcmp.gt.s32.totalorder %v399, %v1969
      %vm2056 = vcmp.gt.s32.totalorder %v400, %v1983
      %vm2057 = vcmp.gt.s32.totalorder %v401, %v1997
      %vm2058 = vcmp.gt.s32.totalorder %v402, %v2011
      %vm2059 = vcmp.gt.s32.totalorder %v403, %v2025
      %vm2060 = vcmp.gt.s32.totalorder %v404, %v2039
      %vm2061 = vcmp.gt.s32.totalorder %v405, %v2053
      %v2062 = vsel %vm2054, %v398, 128
      %v2063 = vsel %vm2055, %v399, 128
      %v2064 = vsel %vm2056, %v400, 128
      %v2065 = vsel %vm2057, %v401, 128
      %v2066 = vsel %vm2058, %v402, 128
      %v2067 = vsel %vm2059, %v403, 128
      %v2068 = vsel %vm2060, %v404, 128
      %v2069 = vsel %vm2061, %v405, 128
      %v2070 = vand.u32 %v2062, 65535
      %v2071 = vshra.s32 %v2062, 16
      %v2072 = vcvt.s32.f32 %v2070
      %v2073 = vcvt.s32.f32 %v2071
      %2074 = vmin.xlane.f32.xlu0 %v2073
      %v2075 = vpop.xlane.xlu0 %2074
      %vm2076 = vcmp.eq.f32.partialorder %v2073, %v2075
      %v2077 = vsel %vm2076, %v2072, inf
      %2078 = vmin.xlane.f32.xlu0 %v2077
      %v2079 = vpop.xlane.xlu0 %2078
      %v2080 = vcvt.f32.s32 %v2079
      %v2081 = vcvt.f32.s32 %v2075
      %v2082 = vshll.u32 %v2081, 16
      %v2083 = vadd.s32 %v2082, %v2080
      %v2084 = vand.u32 %v2063, 65535
      %v2085 = vshra.s32 %v2063, 16
      %v2086 = vcvt.s32.f32 %v2084
      %v2087 = vcvt.s32.f32 %v2085
      %2088 = vmin.xlane.f32.xlu0 %v2087
      %v2089 = vpop.xlane.xlu0 %2088
      %vm2090 = vcmp.eq.f32.partialorder %v2087, %v2089
      %v2091 = vsel %vm2090, %v2086, inf
      %2092 = vmin.xlane.f32.xlu0 %v2091
      %v2093 = vpop.xlane.xlu0 %2092
      %v2094 = vcvt.f32.s32 %v2093
      %v2095 = vcvt.f32.s32 %v2089
      %v2096 = vshll.u32 %v2095, 16
      %v2097 = vadd.s32 %v2096, %v2094
      %v2098 = vand.u32 %v2064, 65535
      %v2099 = vshra.s32 %v2064, 16
      %v2100 = vcvt.s32.f32 %v2098
      %v2101 = vcvt.s32.f32 %v2099
      %2102 = vmin.xlane.f32.xlu0 %v2101
      %v2103 = vpop.xlane.xlu0 %2102
      %vm2104 = vcmp.eq.f32.partialorder %v2101, %v2103
      %v2105 = vsel %vm2104, %v2100, inf
      %2106 = vmin.xlane.f32.xlu0 %v2105
      %v2107 = vpop.xlane.xlu0 %2106
      %v2108 = vcvt.f32.s32 %v2107
      %v2109 = vcvt.f32.s32 %v2103
      %v2110 = vshll.u32 %v2109, 16
      %v2111 = vadd.s32 %v2110, %v2108
      %v2112 = vand.u32 %v2065, 65535
      %v2113 = vshra.s32 %v2065, 16
      %v2114 = vcvt.s32.f32 %v2112
      %v2115 = vcvt.s32.f32 %v2113
      %2116 = vmin.xlane.f32.xlu0 %v2115
      %v2117 = vpop.xlane.xlu0 %2116
      %vm2118 = vcmp.eq.f32.partialorder %v2115, %v2117
      %v2119 = vsel %vm2118, %v2114, inf
      %2120 = vmin.xlane.f32.xlu0 %v2119
      %v2121 = vpop.xlane.xlu0 %2120
      %v2122 = vcvt.f32.s32 %v2121
      %v2123 = vcvt.f32.s32 %v2117
      %v2124 = vshll.u32 %v2123, 16
      %v2125 = vadd.s32 %v2124, %v2122
      %v2126 = vand.u32 %v2066, 65535
      %v2127 = vshra.s32 %v2066, 16
      %v2128 = vcvt.s32.f32 %v2126
      %v2129 = vcvt.s32.f32 %v2127
      %2130 = vmin.xlane.f32.xlu0 %v2129
      %v2131 = vpop.xlane.xlu0 %2130
      %vm2132 = vcmp.eq.f32.partialorder %v2129, %v2131
      %v2133 = vsel %vm2132, %v2128, inf
      %2134 = vmin.xlane.f32.xlu0 %v2133
      %v2135 = vpop.xlane.xlu0 %2134
      %v2136 = vcvt.f32.s32 %v2135
      %v2137 = vcvt.f32.s32 %v2131
      %v2138 = vshll.u32 %v2137, 16
      %v2139 = vadd.s32 %v2138, %v2136
      %v2140 = vand.u32 %v2067, 65535
      %v2141 = vshra.s32 %v2067, 16
      %v2142 = vcvt.s32.f32 %v2140
      %v2143 = vcvt.s32.f32 %v2141
      %2144 = vmin.xlane.f32.xlu0 %v2143
      %v2145 = vpop.xlane.xlu0 %2144
      %vm2146 = vcmp.eq.f32.partialorder %v2143, %v2145
      %v2147 = vsel %vm2146, %v2142, inf
      %2148 = vmin.xlane.f32.xlu0 %v2147
      %v2149 = vpop.xlane.xlu0 %2148
      %v2150 = vcvt.f32.s32 %v2149
      %v2151 = vcvt.f32.s32 %v2145
      %v2152 = vshll.u32 %v2151, 16
      %v2153 = vadd.s32 %v2152, %v2150
      %v2154 = vand.u32 %v2068, 65535
      %v2155 = vshra.s32 %v2068, 16
      %v2156 = vcvt.s32.f32 %v2154
      %v2157 = vcvt.s32.f32 %v2155
      %2158 = vmin.xlane.f32.xlu0 %v2157
      %v2159 = vpop.xlane.xlu0 %2158
      %vm2160 = vcmp.eq.f32.partialorder %v2157, %v2159
      %v2161 = vsel %vm2160, %v2156, inf
      %2162 = vmin.xlane.f32.xlu0 %v2161
      %v2163 = vpop.xlane.xlu0 %2162
      %v2164 = vcvt.f32.s32 %v2163
      %v2165 = vcvt.f32.s32 %v2159
      %v2166 = vshll.u32 %v2165, 16
      %v2167 = vadd.s32 %v2166, %v2164
      %v2168 = vand.u32 %v2069, 65535
      %v2169 = vshra.s32 %v2069, 16
      %v2170 = vcvt.s32.f32 %v2168
      %v2171 = vcvt.s32.f32 %v2169
      %2172 = vmin.xlane.f32.xlu0 %v2171
      %v2173 = vpop.xlane.xlu0 %2172
      %vm2174 = vcmp.eq.f32.partialorder %v2171, %v2173
      %v2175 = vsel %vm2174, %v2170, inf
      %2176 = vmin.xlane.f32.xlu0 %v2175
      %v2177 = vpop.xlane.xlu0 %2176
      %v2178 = vcvt.f32.s32 %v2177
      %v2179 = vcvt.f32.s32 %v2173
      %v2180 = vshll.u32 %v2179, 16
      %v2181 = vadd.s32 %v2180, %v2178
      %vm2182 = vcmp.gt.s32.totalorder %v398, %v2083
      %vm2183 = vcmp.gt.s32.totalorder %v399, %v2097
      %vm2184 = vcmp.gt.s32.totalorder %v400, %v2111
      %vm2185 = vcmp.gt.s32.totalorder %v401, %v2125
      %vm2186 = vcmp.gt.s32.totalorder %v402, %v2139
      %vm2187 = vcmp.gt.s32.totalorder %v403, %v2153
      %vm2188 = vcmp.gt.s32.totalorder %v404, %v2167
      %vm2189 = vcmp.gt.s32.totalorder %v405, %v2181
      %v2190 = vsel %vm2182, %v398, 128
      %v2191 = vsel %vm2183, %v399, 128
      %v2192 = vsel %vm2184, %v400, 128
      %v2193 = vsel %vm2185, %v401, 128
      %v2194 = vsel %vm2186, %v402, 128
      %v2195 = vsel %vm2187, %v403, 128
      %v2196 = vsel %vm2188, %v404, 128
      %v2197 = vsel %vm2189, %v405, 128
      %v2198 = vand.u32 %v2190, 65535
      %v2199 = vshra.s32 %v2190, 16
      %v2200 = vcvt.s32.f32 %v2198
      %v2201 = vcvt.s32.f32 %v2199
      %2202 = vmin.xlane.f32.xlu0 %v2201
      %v2203 = vpop.xlane.xlu0 %2202
      %vm2204 = vcmp.eq.f32.partialorder %v2201, %v2203
      %v2205 = vsel %vm2204, %v2200, inf
      %2206 = vmin.xlane.f32.xlu0 %v2205
      %v2207 = vpop.xlane.xlu0 %2206
      %v2208 = vcvt.f32.s32 %v2207
      %v2209 = vcvt.f32.s32 %v2203
      %v2210 = vshll.u32 %v2209, 16
      %v2211 = vadd.s32 %v2210, %v2208
      %v2212 = vand.u32 %v2191, 65535
      %v2213 = vshra.s32 %v2191, 16
      %v2214 = vcvt.s32.f32 %v2212
      %v2215 = vcvt.s32.f32 %v2213
      %2216 = vmin.xlane.f32.xlu0 %v2215
      %v2217 = vpop.xlane.xlu0 %2216
      %vm2218 = vcmp.eq.f32.partialorder %v2215, %v2217
      %v2219 = vsel %vm2218, %v2214, inf
      %2220 = vmin.xlane.f32.xlu0 %v2219
      %v2221 = vpop.xlane.xlu0 %2220
      %v2222 = vcvt.f32.s32 %v2221
      %v2223 = vcvt.f32.s32 %v2217
      %v2224 = vshll.u32 %v2223, 16
      %v2225 = vadd.s32 %v2224, %v2222
      %v2226 = vand.u32 %v2192, 65535
      %v2227 = vshra.s32 %v2192, 16
      %v2228 = vcvt.s32.f32 %v2226
      %v2229 = vcvt.s32.f32 %v2227
      %2230 = vmin.xlane.f32.xlu0 %v2229
      %v2231 = vpop.xlane.xlu0 %2230
      %vm2232 = vcmp.eq.f32.partialorder %v2229, %v2231
      %v2233 = vsel %vm2232, %v2228, inf
      %2234 = vmin.xlane.f32.xlu0 %v2233
      %v2235 = vpop.xlane.xlu0 %2234
      %v2236 = vcvt.f32.s32 %v2235
      %v2237 = vcvt.f32.s32 %v2231
      %v2238 = vshll.u32 %v2237, 16
      %v2239 = vadd.s32 %v2238, %v2236
      %v2240 = vand.u32 %v2193, 65535
      %v2241 = vshra.s32 %v2193, 16
      %v2242 = vcvt.s32.f32 %v2240
      %v2243 = vcvt.s32.f32 %v2241
      %2244 = vmin.xlane.f32.xlu0 %v2243
      %v2245 = vpop.xlane.xlu0 %2244
      %vm2246 = vcmp.eq.f32.partialorder %v2243, %v2245
      %v2247 = vsel %vm2246, %v2242, inf
      %2248 = vmin.xlane.f32.xlu0 %v2247
      %v2249 = vpop.xlane.xlu0 %2248
      %v2250 = vcvt.f32.s32 %v2249
      %v2251 = vcvt.f32.s32 %v2245
      %v2252 = vshll.u32 %v2251, 16
      %v2253 = vadd.s32 %v2252, %v2250
      %v2254 = vand.u32 %v2194, 65535
      %v2255 = vshra.s32 %v2194, 16
      %v2256 = vcvt.s32.f32 %v2254
      %v2257 = vcvt.s32.f32 %v2255
      %2258 = vmin.xlane.f32.xlu0 %v2257
      %v2259 = vpop.xlane.xlu0 %2258
      %vm2260 = vcmp.eq.f32.partialorder %v2257, %v2259
      %v2261 = vsel %vm2260, %v2256, inf
      %2262 = vmin.xlane.f32.xlu0 %v2261
      %v2263 = vpop.xlane.xlu0 %2262
      %v2264 = vcvt.f32.s32 %v2263
      %v2265 = vcvt.f32.s32 %v2259
      %v2266 = vshll.u32 %v2265, 16
      %v2267 = vadd.s32 %v2266, %v2264
      %v2268 = vand.u32 %v2195, 65535
      %v2269 = vshra.s32 %v2195, 16
      %v2270 = vcvt.s32.f32 %v2268
      %v2271 = vcvt.s32.f32 %v2269
      %2272 = vmin.xlane.f32.xlu0 %v2271
      %v2273 = vpop.xlane.xlu0 %2272
      %vm2274 = vcmp.eq.f32.partialorder %v2271, %v2273
      %v2275 = vsel %vm2274, %v2270, inf
      %2276 = vmin.xlane.f32.xlu0 %v2275
      %v2277 = vpop.xlane.xlu0 %2276
      %v2278 = vcvt.f32.s32 %v2277
      %v2279 = vcvt.f32.s32 %v2273
      %v2280 = vshll.u32 %v2279, 16
      %v2281 = vadd.s32 %v2280, %v2278
      %v2282 = vand.u32 %v2196, 65535
      %v2283 = vshra.s32 %v2196, 16
      %v2284 = vcvt.s32.f32 %v2282
      %v2285 = vcvt.s32.f32 %v2283
      %2286 = vmin.xlane.f32.xlu0 %v2285
      %v2287 = vpop.xlane.xlu0 %2286
      %vm2288 = vcmp.eq.f32.partialorder %v2285, %v2287
      %v2289 = vsel %vm2288, %v2284, inf
      %2290 = vmin.xlane.f32.xlu0 %v2289
      %v2291 = vpop.xlane.xlu0 %2290
      %v2292 = vcvt.f32.s32 %v2291
      %v2293 = vcvt.f32.s32 %v2287
      %v2294 = vshll.u32 %v2293, 16
      %v2295 = vadd.s32 %v2294, %v2292
      %v2296 = vand.u32 %v2197, 65535
      %v2297 = vshra.s32 %v2197, 16
      %v2298 = vcvt.s32.f32 %v2296
      %v2299 = vcvt.s32.f32 %v2297
      %2300 = vmin.xlane.f32.xlu0 %v2299
      %v2301 = vpop.xlane.xlu0 %2300
      %vm2302 = vcmp.eq.f32.partialorder %v2299, %v2301
      %v2303 = vsel %vm2302, %v2298, inf
      %2304 = vmin.xlane.f32.xlu0 %v2303
      %v2305 = vpop.xlane.xlu0 %2304
      %v2306 = vcvt.f32.s32 %v2305
      %v2307 = vcvt.f32.s32 %v2301
      %v2308 = vshll.u32 %v2307, 16
      %v2309 = vadd.s32 %v2308, %v2306
      %vm2310 = vcmp.gt.s32.totalorder %v398, %v2211
      %vm2311 = vcmp.gt.s32.totalorder %v399, %v2225
      %vm2312 = vcmp.gt.s32.totalorder %v400, %v2239
      %vm2313 = vcmp.gt.s32.totalorder %v401, %v2253
      %vm2314 = vcmp.gt.s32.totalorder %v402, %v2267
      %vm2315 = vcmp.gt.s32.totalorder %v403, %v2281
      %vm2316 = vcmp.gt.s32.totalorder %v404, %v2295
      %vm2317 = vcmp.gt.s32.totalorder %v405, %v2309
      %v2318 = vsel %vm2310, %v398, 128
      %v2319 = vsel %vm2311, %v399, 128
      %v2320 = vsel %vm2312, %v400, 128
      %v2321 = vsel %vm2313, %v401, 128
      %v2322 = vsel %vm2314, %v402, 128
      %v2323 = vsel %vm2315, %v403, 128
      %v2324 = vsel %vm2316, %v404, 128
      %v2325 = vsel %vm2317, %v405, 128
      %v2326 = vand.u32 %v2318, 65535
      %v2327 = vshra.s32 %v2318, 16
      %v2328 = vcvt.s32.f32 %v2326
      %v2329 = vcvt.s32.f32 %v2327
      %2330 = vmin.xlane.f32.xlu0 %v2329
      %v2331 = vpop.xlane.xlu0 %2330
      %vm2332 = vcmp.eq.f32.partialorder %v2329, %v2331
      %v2333 = vsel %vm2332, %v2328, inf
      %2334 = vmin.xlane.f32.xlu0 %v2333
      %v2335 = vpop.xlane.xlu0 %2334
      %v2336 = vcvt.f32.s32 %v2335
      %v2337 = vcvt.f32.s32 %v2331
      %v2338 = vshll.u32 %v2337, 16
      %v2339 = vadd.s32 %v2338, %v2336
      %v2340 = vand.u32 %v2319, 65535
      %v2341 = vshra.s32 %v2319, 16
      %v2342 = vcvt.s32.f32 %v2340
      %v2343 = vcvt.s32.f32 %v2341
      %2344 = vmin.xlane.f32.xlu0 %v2343
      %v2345 = vpop.xlane.xlu0 %2344
      %vm2346 = vcmp.eq.f32.partialorder %v2343, %v2345
      %v2347 = vsel %vm2346, %v2342, inf
      %2348 = vmin.xlane.f32.xlu0 %v2347
      %v2349 = vpop.xlane.xlu0 %2348
      %v2350 = vcvt.f32.s32 %v2349
      %v2351 = vcvt.f32.s32 %v2345
      %v2352 = vshll.u32 %v2351, 16
      %v2353 = vadd.s32 %v2352, %v2350
      %v2354 = vand.u32 %v2320, 65535
      %v2355 = vshra.s32 %v2320, 16
      %v2356 = vcvt.s32.f32 %v2354
      %v2357 = vcvt.s32.f32 %v2355
      %2358 = vmin.xlane.f32.xlu0 %v2357
      %v2359 = vpop.xlane.xlu0 %2358
      %vm2360 = vcmp.eq.f32.partialorder %v2357, %v2359
      %v2361 = vsel %vm2360, %v2356, inf
      %2362 = vmin.xlane.f32.xlu0 %v2361
      %v2363 = vpop.xlane.xlu0 %2362
      %v2364 = vcvt.f32.s32 %v2363
      %v2365 = vcvt.f32.s32 %v2359
      %v2366 = vshll.u32 %v2365, 16
      %v2367 = vadd.s32 %v2366, %v2364
      %v2368 = vand.u32 %v2321, 65535
      %v2369 = vshra.s32 %v2321, 16
      %v2370 = vcvt.s32.f32 %v2368
      %v2371 = vcvt.s32.f32 %v2369
      %2372 = vmin.xlane.f32.xlu0 %v2371
      %v2373 = vpop.xlane.xlu0 %2372
      %vm2374 = vcmp.eq.f32.partialorder %v2371, %v2373
      %v2375 = vsel %vm2374, %v2370, inf
      %2376 = vmin.xlane.f32.xlu0 %v2375
      %v2377 = vpop.xlane.xlu0 %2376
      %v2378 = vcvt.f32.s32 %v2377
      %v2379 = vcvt.f32.s32 %v2373
      %v2380 = vshll.u32 %v2379, 16
      %v2381 = vadd.s32 %v2380, %v2378
      %v2382 = vand.u32 %v2322, 65535
      %v2383 = vshra.s32 %v2322, 16
      %v2384 = vcvt.s32.f32 %v2382
      %v2385 = vcvt.s32.f32 %v2383
      %2386 = vmin.xlane.f32.xlu0 %v2385
      %v2387 = vpop.xlane.xlu0 %2386
      %vm2388 = vcmp.eq.f32.partialorder %v2385, %v2387
      %v2389 = vsel %vm2388, %v2384, inf
      %2390 = vmin.xlane.f32.xlu0 %v2389
      %v2391 = vpop.xlane.xlu0 %2390
      %v2392 = vcvt.f32.s32 %v2391
      %v2393 = vcvt.f32.s32 %v2387
      %v2394 = vshll.u32 %v2393, 16
      %v2395 = vadd.s32 %v2394, %v2392
      %v2396 = vand.u32 %v2323, 65535
      %v2397 = vshra.s32 %v2323, 16
      %v2398 = vcvt.s32.f32 %v2396
      %v2399 = vcvt.s32.f32 %v2397
      %2400 = vmin.xlane.f32.xlu0 %v2399
      %v2401 = vpop.xlane.xlu0 %2400
      %vm2402 = vcmp.eq.f32.partialorder %v2399, %v2401
      %v2403 = vsel %vm2402, %v2398, inf
      %2404 = vmin.xlane.f32.xlu0 %v2403
      %v2405 = vpop.xlane.xlu0 %2404
      %v2406 = vcvt.f32.s32 %v2405
      %v2407 = vcvt.f32.s32 %v2401
      %v2408 = vshll.u32 %v2407, 16
      %v2409 = vadd.s32 %v2408, %v2406
      %v2410 = vand.u32 %v2324, 65535
      %v2411 = vshra.s32 %v2324, 16
      %v2412 = vcvt.s32.f32 %v2410
      %v2413 = vcvt.s32.f32 %v2411
      %2414 = vmin.xlane.f32.xlu0 %v2413
      %v2415 = vpop.xlane.xlu0 %2414
      %vm2416 = vcmp.eq.f32.partialorder %v2413, %v2415
      %v2417 = vsel %vm2416, %v2412, inf
      %2418 = vmin.xlane.f32.xlu0 %v2417
      %v2419 = vpop.xlane.xlu0 %2418
      %v2420 = vcvt.f32.s32 %v2419
      %v2421 = vcvt.f32.s32 %v2415
      %v2422 = vshll.u32 %v2421, 16
      %v2423 = vadd.s32 %v2422, %v2420
      %v2424 = vand.u32 %v2325, 65535
      %v2425 = vshra.s32 %v2325, 16
      %v2426 = vcvt.s32.f32 %v2424
      %v2427 = vcvt.s32.f32 %v2425
      %2428 = vmin.xlane.f32.xlu0 %v2427
      %v2429 = vpop.xlane.xlu0 %2428
      %vm2430 = vcmp.eq.f32.partialorder %v2427, %v2429
      %v2431 = vsel %vm2430, %v2426, inf
      %2432 = vmin.xlane.f32.xlu0 %v2431
      %v2433 = vpop.xlane.xlu0 %2432
      %v2434 = vcvt.f32.s32 %v2433
      %v2435 = vcvt.f32.s32 %v2429
      %v2436 = vshll.u32 %v2435, 16
      %v2437 = vadd.s32 %v2436, %v2434
      %vm2438 = vcmp.ge.s32.totalorder %v419, 128
      %vm2439 = vcmp.ge.s32.totalorder %v433, 128
      %vm2440 = vcmp.ge.s32.totalorder %v447, 128
      %vm2441 = vcmp.ge.s32.totalorder %v461, 128
      %vm2442 = vcmp.ge.s32.totalorder %v475, 128
      %vm2443 = vcmp.ge.s32.totalorder %v489, 128
      %vm2444 = vcmp.ge.s32.totalorder %v503, 128
      %vm2445 = vcmp.ge.s32.totalorder %v517, 128
      %v2446 = vsel %vm2438, 0, %v419
      %v2447 = vsel %vm2439, 0, %v433
      %v2448 = vsel %vm2440, 0, %v447
      %v2449 = vsel %vm2441, 0, %v461
      %v2450 = vsel %vm2442, 0, %v475
      %v2451 = vsel %vm2443, 0, %v489
      %v2452 = vsel %vm2444, 0, %v503
      %v2453 = vsel %vm2445, 0, %v517
      %vm2454 = vcmp.ge.s32.totalorder %v547, 128
      %vm2455 = vcmp.ge.s32.totalorder %v561, 128
      %vm2456 = vcmp.ge.s32.totalorder %v575, 128
      %vm2457 = vcmp.ge.s32.totalorder %v589, 128
      %vm2458 = vcmp.ge.s32.totalorder %v603, 128
      %vm2459 = vcmp.ge.s32.totalorder %v617, 128
      %vm2460 = vcmp.ge.s32.totalorder %v631, 128
      %vm2461 = vcmp.ge.s32.totalorder %v645, 128
      %v2462 = vsel %vm2454, %v2446, %v547
      %v2463 = vsel %vm2455, %v2447, %v561
      %v2464 = vsel %vm2456, %v2448, %v575
      %v2465 = vsel %vm2457, %v2449, %v589
      %v2466 = vsel %vm2458, %v2450, %v603
      %v2467 = vsel %vm2459, %v2451, %v617
      %v2468 = vsel %vm2460, %v2452, %v631
      %v2469 = vsel %vm2461, %v2453, %v645
      %vm2470 = vcmp.ge.s32.totalorder %v675, 128
      %vm2471 = vcmp.ge.s32.totalorder %v689, 128
      %vm2472 = vcmp.ge.s32.totalorder %v703, 128
      %vm2473 = vcmp.ge.s32.totalorder %v717, 128
      %vm2474 = vcmp.ge.s32.totalorder %v731, 128
      %vm2475 = vcmp.ge.s32.totalorder %v745, 128
      %vm2476 = vcmp.ge.s32.totalorder %v759, 128
      %vm2477 = vcmp.ge.s32.totalorder %v773, 128
      %v2478 = vsel %vm2470, %v2446, %v675
      %v2479 = vsel %vm2471, %v2447, %v689
      %v2480 = vsel %vm2472, %v2448, %v703
      %v2481 = vsel %vm2473, %v2449, %v717
      %v2482 = vsel %vm2474, %v2450, %v731
      %v2483 = vsel %vm2475, %v2451, %v745
      %v2484 = vsel %vm2476, %v2452, %v759
      %v2485 = vsel %vm2477, %v2453, %v773
      %vm2486 = vcmp.ge.s32.totalorder %v803, 128
      %vm2487 = vcmp.ge.s32.totalorder %v817, 128
      %vm2488 = vcmp.ge.s32.totalorder %v831, 128
      %vm2489 = vcmp.ge.s32.totalorder %v845, 128
      %vm2490 = vcmp.ge.s32.totalorder %v859, 128
      %vm2491 = vcmp.ge.s32.totalorder %v873, 128
      %vm2492 = vcmp.ge.s32.totalorder %v887, 128
      %vm2493 = vcmp.ge.s32.totalorder %v901, 128
      %v2494 = vsel %vm2486, %v2446, %v803
      %v2495 = vsel %vm2487, %v2447, %v817
      %v2496 = vsel %vm2488, %v2448, %v831
      %v2497 = vsel %vm2489, %v2449, %v845
      %v2498 = vsel %vm2490, %v2450, %v859
      %v2499 = vsel %vm2491, %v2451, %v873
      %v2500 = vsel %vm2492, %v2452, %v887
      %v2501 = vsel %vm2493, %v2453, %v901
      %vm2502 = vcmp.ge.s32.totalorder %v931, 128
      %vm2503 = vcmp.ge.s32.totalorder %v945, 128
      %vm2504 = vcmp.ge.s32.totalorder %v959, 128
      %vm2505 = vcmp.ge.s32.totalorder %v973, 128
      %vm2506 = vcmp.ge.s32.totalorder %v987, 128
      %vm2507 = vcmp.ge.s32.totalorder %v1001, 128
      %vm2508 = vcmp.ge.s32.totalorder %v1015, 128
      %vm2509 = vcmp.ge.s32.totalorder %v1029, 128
      %v2510 = vsel %vm2502, %v2446, %v931
      %v2511 = vsel %vm2503, %v2447, %v945
      %v2512 = vsel %vm2504, %v2448, %v959
      %v2513 = vsel %vm2505, %v2449, %v973
      %v2514 = vsel %vm2506, %v2450, %v987
      %v2515 = vsel %vm2507, %v2451, %v1001
      %v2516 = vsel %vm2508, %v2452, %v1015
      %v2517 = vsel %vm2509, %v2453, %v1029
      %vm2518 = vcmp.ge.s32.totalorder %v1059, 128
      %vm2519 = vcmp.ge.s32.totalorder %v1073, 128
      %vm2520 = vcmp.ge.s32.totalorder %v1087, 128
      %vm2521 = vcmp.ge.s32.totalorder %v1101, 128
      %vm2522 = vcmp.ge.s32.totalorder %v1115, 128
      %vm2523 = vcmp.ge.s32.totalorder %v1129, 128
      %vm2524 = vcmp.ge.s32.totalorder %v1143, 128
      %vm2525 = vcmp.ge.s32.totalorder %v1157, 128
      %v2526 = vsel %vm2518, %v2446, %v1059
      %v2527 = vsel %vm2519, %v2447, %v1073
      %v2528 = vsel %vm2520, %v2448, %v1087
      %v2529 = vsel %vm2521, %v2449, %v1101
      %v2530 = vsel %vm2522, %v2450, %v1115
      %v2531 = vsel %vm2523, %v2451, %v1129
      %v2532 = vsel %vm2524, %v2452, %v1143
      %v2533 = vsel %vm2525, %v2453, %v1157
      %vm2534 = vcmp.ge.s32.totalorder %v1187, 128
      %vm2535 = vcmp.ge.s32.totalorder %v1201, 128
      %vm2536 = vcmp.ge.s32.totalorder %v1215, 128
      %vm2537 = vcmp.ge.s32.totalorder %v1229, 128
      %vm2538 = vcmp.ge.s32.totalorder %v1243, 128
      %vm2539 = vcmp.ge.s32.totalorder %v1257, 128
      %vm2540 = vcmp.ge.s32.totalorder %v1271, 128
      %vm2541 = vcmp.ge.s32.totalorder %v1285, 128
      %v2542 = vsel %vm2534, %v2446, %v1187
      %v2543 = vsel %vm2535, %v2447, %v1201
      %v2544 = vsel %vm2536, %v2448, %v1215
      %v2545 = vsel %vm2537, %v2449, %v1229
      %v2546 = vsel %vm2538, %v2450, %v1243
      %v2547 = vsel %vm2539, %v2451, %v1257
      %v2548 = vsel %vm2540, %v2452, %v1271
      %v2549 = vsel %vm2541, %v2453, %v1285
      %vm2550 = vcmp.ge.s32.totalorder %v1315, 128
      %vm2551 = vcmp.ge.s32.totalorder %v1329, 128
      %vm2552 = vcmp.ge.s32.totalorder %v1343, 128
      %vm2553 = vcmp.ge.s32.totalorder %v1357, 128
      %vm2554 = vcmp.ge.s32.totalorder %v1371, 128
      %vm2555 = vcmp.ge.s32.totalorder %v1385, 128
      %vm2556 = vcmp.ge.s32.totalorder %v1399, 128
      %vm2557 = vcmp.ge.s32.totalorder %v1413, 128
      %v2558 = vsel %vm2550, %v2446, %v1315
      %v2559 = vsel %vm2551, %v2447, %v1329
      %v2560 = vsel %vm2552, %v2448, %v1343
      %v2561 = vsel %vm2553, %v2449, %v1357
      %v2562 = vsel %vm2554, %v2450, %v1371
      %v2563 = vsel %vm2555, %v2451, %v1385
      %v2564 = vsel %vm2556, %v2452, %v1399
      %v2565 = vsel %vm2557, %v2453, %v1413
      %vm2566 = vcmp.ge.s32.totalorder %v1443, 128
      %vm2567 = vcmp.ge.s32.totalorder %v1457, 128
      %vm2568 = vcmp.ge.s32.totalorder %v1471, 128
      %vm2569 = vcmp.ge.s32.totalorder %v1485, 128
      %vm2570 = vcmp.ge.s32.totalorder %v1499, 128
      %vm2571 = vcmp.ge.s32.totalorder %v1513, 128
      %vm2572 = vcmp.ge.s32.totalorder %v1527, 128
      %vm2573 = vcmp.ge.s32.totalorder %v1541, 128
      %v2574 = vsel %vm2566, %v2446, %v1443
      %v2575 = vsel %vm2567, %v2447, %v1457
      %v2576 = vsel %vm2568, %v2448, %v1471
      %v2577 = vsel %vm2569, %v2449, %v1485
      %v2578 = vsel %vm2570, %v2450, %v1499
      %v2579 = vsel %vm2571, %v2451, %v1513
      %v2580 = vsel %vm2572, %v2452, %v1527
      %v2581 = vsel %vm2573, %v2453, %v1541
      %vm2582 = vcmp.ge.s32.totalorder %v1571, 128
      %vm2583 = vcmp.ge.s32.totalorder %v1585, 128
      %vm2584 = vcmp.ge.s32.totalorder %v1599, 128
      %vm2585 = vcmp.ge.s32.totalorder %v1613, 128
      %vm2586 = vcmp.ge.s32.totalorder %v1627, 128
      %vm2587 = vcmp.ge.s32.totalorder %v1641, 128
      %vm2588 = vcmp.ge.s32.totalorder %v1655, 128
      %vm2589 = vcmp.ge.s32.totalorder %v1669, 128
      %v2590 = vsel %vm2582, %v2446, %v1571
      %v2591 = vsel %vm2583, %v2447, %v1585
      %v2592 = vsel %vm2584, %v2448, %v1599
      %v2593 = vsel %vm2585, %v2449, %v1613
      %v2594 = vsel %vm2586, %v2450, %v1627
      %v2595 = vsel %vm2587, %v2451, %v1641
      %v2596 = vsel %vm2588, %v2452, %v1655
      %v2597 = vsel %vm2589, %v2453, %v1669
      %vm2598 = vcmp.ge.s32.totalorder %v1699, 128
      %vm2599 = vcmp.ge.s32.totalorder %v1713, 128
      %vm2600 = vcmp.ge.s32.totalorder %v1727, 128
      %vm2601 = vcmp.ge.s32.totalorder %v1741, 128
      %vm2602 = vcmp.ge.s32.totalorder %v1755, 128
      %vm2603 = vcmp.ge.s32.totalorder %v1769, 128
      %vm2604 = vcmp.ge.s32.totalorder %v1783, 128
      %vm2605 = vcmp.ge.s32.totalorder %v1797, 128
      %v2606 = vsel %vm2598, %v2446, %v1699
      %v2607 = vsel %vm2599, %v2447, %v1713
      %v2608 = vsel %vm2600, %v2448, %v1727
      %v2609 = vsel %vm2601, %v2449, %v1741
      %v2610 = vsel %vm2602, %v2450, %v1755
      %v2611 = vsel %vm2603, %v2451, %v1769
      %v2612 = vsel %vm2604, %v2452, %v1783
      %v2613 = vsel %vm2605, %v2453, %v1797
      %vm2614 = vcmp.ge.s32.totalorder %v1827, 128
      %vm2615 = vcmp.ge.s32.totalorder %v1841, 128
      %vm2616 = vcmp.ge.s32.totalorder %v1855, 128
      %vm2617 = vcmp.ge.s32.totalorder %v1869, 128
      %vm2618 = vcmp.ge.s32.totalorder %v1883, 128
      %vm2619 = vcmp.ge.s32.totalorder %v1897, 128
      %vm2620 = vcmp.ge.s32.totalorder %v1911, 128
      %vm2621 = vcmp.ge.s32.totalorder %v1925, 128
      %v2622 = vsel %vm2614, %v2446, %v1827
      %v2623 = vsel %vm2615, %v2447, %v1841
      %v2624 = vsel %vm2616, %v2448, %v1855
      %v2625 = vsel %vm2617, %v2449, %v1869
      %v2626 = vsel %vm2618, %v2450, %v1883
      %v2627 = vsel %vm2619, %v2451, %v1897
      %v2628 = vsel %vm2620, %v2452, %v1911
      %v2629 = vsel %vm2621, %v2453, %v1925
      %vm2630 = vcmp.ge.s32.totalorder %v1955, 128
      %vm2631 = vcmp.ge.s32.totalorder %v1969, 128
      %vm2632 = vcmp.ge.s32.totalorder %v1983, 128
      %vm2633 = vcmp.ge.s32.totalorder %v1997, 128
      %vm2634 = vcmp.ge.s32.totalorder %v2011, 128
      %vm2635 = vcmp.ge.s32.totalorder %v2025, 128
      %vm2636 = vcmp.ge.s32.totalorder %v2039, 128
      %vm2637 = vcmp.ge.s32.totalorder %v2053, 128
      %v2638 = vsel %vm2630, %v2446, %v1955
      %v2639 = vsel %vm2631, %v2447, %v1969
      %v2640 = vsel %vm2632, %v2448, %v1983
      %v2641 = vsel %vm2633, %v2449, %v1997
      %v2642 = vsel %vm2634, %v2450, %v2011
      %v2643 = vsel %vm2635, %v2451, %v2025
      %v2644 = vsel %vm2636, %v2452, %v2039
      %v2645 = vsel %vm2637, %v2453, %v2053
      %vm2646 = vcmp.ge.s32.totalorder %v2083, 128
      %vm2647 = vcmp.ge.s32.totalorder %v2097, 128
      %vm2648 = vcmp.ge.s32.totalorder %v2111, 128
      %vm2649 = vcmp.ge.s32.totalorder %v2125, 128
      %vm2650 = vcmp.ge.s32.totalorder %v2139, 128
      %vm2651 = vcmp.ge.s32.totalorder %v2153, 128
      %vm2652 = vcmp.ge.s32.totalorder %v2167, 128
      %vm2653 = vcmp.ge.s32.totalorder %v2181, 128
      %v2654 = vsel %vm2646, %v2446, %v2083
      %v2655 = vsel %vm2647, %v2447, %v2097
      %v2656 = vsel %vm2648, %v2448, %v2111
      %v2657 = vsel %vm2649, %v2449, %v2125
      %v2658 = vsel %vm2650, %v2450, %v2139
      %v2659 = vsel %vm2651, %v2451, %v2153
      %v2660 = vsel %vm2652, %v2452, %v2167
      %v2661 = vsel %vm2653, %v2453, %v2181
      %vm2662 = vcmp.ge.s32.totalorder %v2211, 128
      %vm2663 = vcmp.ge.s32.totalorder %v2225, 128
      %vm2664 = vcmp.ge.s32.totalorder %v2239, 128
      %vm2665 = vcmp.ge.s32.totalorder %v2253, 128
      %vm2666 = vcmp.ge.s32.totalorder %v2267, 128
      %vm2667 = vcmp.ge.s32.totalorder %v2281, 128
      %vm2668 = vcmp.ge.s32.totalorder %v2295, 128
      %vm2669 = vcmp.ge.s32.totalorder %v2309, 128
      %v2670 = vsel %vm2662, %v2446, %v2211
      %v2671 = vsel %vm2663, %v2447, %v2225
      %v2672 = vsel %vm2664, %v2448, %v2239
      %v2673 = vsel %vm2665, %v2449, %v2253
      %v2674 = vsel %vm2666, %v2450, %v2267
      %v2675 = vsel %vm2667, %v2451, %v2281
      %v2676 = vsel %vm2668, %v2452, %v2295
      %v2677 = vsel %vm2669, %v2453, %v2309
      %vm2678 = vcmp.ge.s32.totalorder %v2339, 128
      %vm2679 = vcmp.ge.s32.totalorder %v2353, 128
      %vm2680 = vcmp.ge.s32.totalorder %v2367, 128
      %vm2681 = vcmp.ge.s32.totalorder %v2381, 128
      %vm2682 = vcmp.ge.s32.totalorder %v2395, 128
      %vm2683 = vcmp.ge.s32.totalorder %v2409, 128
      %vm2684 = vcmp.ge.s32.totalorder %v2423, 128
      %vm2685 = vcmp.ge.s32.totalorder %v2437, 128
      %v2686 = vsel %vm2678, %v2446, %v2339
      %v2687 = vsel %vm2679, %v2447, %v2353
      %v2688 = vsel %vm2680, %v2448, %v2367
      %v2689 = vsel %vm2681, %v2449, %v2381
      %v2690 = vsel %vm2682, %v2450, %v2395
      %v2691 = vsel %vm2683, %v2451, %v2409
      %v2692 = vsel %vm2684, %v2452, %v2423
      %v2693 = vsel %vm2685, %v2453, %v2437
      %vm2694 = vcmask 7168
      %v2695 = vsel %vm2694, %v2446, %v2462
      %v2696 = vsel %vm2694, %v2447, %v2463
      %v2697 = vsel %vm2694, %v2448, %v2464
      %v2698 = vsel %vm2694, %v2449, %v2465
      %v2699 = vsel %vm2694, %v2450, %v2466
      %v2700 = vsel %vm2694, %v2451, %v2467
      %v2701 = vsel %vm2694, %v2452, %v2468
      %v2702 = vsel %vm2694, %v2453, %v2469
      %vm2703 = vcmask 15360
      %v2704 = vsel %vm2703, %v2695, %v2478
      %v2705 = vsel %vm2703, %v2696, %v2479
      %v2706 = vsel %vm2703, %v2697, %v2480
      %v2707 = vsel %vm2703, %v2698, %v2481
      %v2708 = vsel %vm2703, %v2699, %v2482
      %v2709 = vsel %vm2703, %v2700, %v2483
      %v2710 = vsel %vm2703, %v2701, %v2484
      %v2711 = vsel %vm2703, %v2702, %v2485
      %vm2712 = vcmask 23552
      %v2713 = vsel %vm2712, %v2704, %v2494
      %v2714 = vsel %vm2712, %v2705, %v2495
      %v2715 = vsel %vm2712, %v2706, %v2496
      %v2716 = vsel %vm2712, %v2707, %v2497
      %v2717 = vsel %vm2712, %v2708, %v2498
      %v2718 = vsel %vm2712, %v2709, %v2499
      %v2719 = vsel %vm2712, %v2710, %v2500
      %v2720 = vsel %vm2712, %v2711, %v2501
      %vm2721 = vcmask 31744
      %v2722 = vsel %vm2721, %v2713, %v2510
      %v2723 = vsel %vm2721, %v2714, %v2511
      %v2724 = vsel %vm2721, %v2715, %v2512
      %v2725 = vsel %vm2721, %v2716, %v2513
      %v2726 = vsel %vm2721, %v2717, %v2514
      %v2727 = vsel %vm2721, %v2718, %v2515
      %v2728 = vsel %vm2721, %v2719, %v2516
      %v2729 = vsel %vm2721, %v2720, %v2517
      %vm2730 = vcmask 39936
      %v2731 = vsel %vm2730, %v2722, %v2526
      %v2732 = vsel %vm2730, %v2723, %v2527
      %v2733 = vsel %vm2730, %v2724, %v2528
      %v2734 = vsel %vm2730, %v2725, %v2529
      %v2735 = vsel %vm2730, %v2726, %v2530
      %v2736 = vsel %vm2730, %v2727, %v2531
      %v2737 = vsel %vm2730, %v2728, %v2532
      %v2738 = vsel %vm2730, %v2729, %v2533
      %vm2739 = vcmask 48128
      %v2740 = vsel %vm2739, %v2731, %v2542
      %v2741 = vsel %vm2739, %v2732, %v2543
      %v2742 = vsel %vm2739, %v2733, %v2544
      %v2743 = vsel %vm2739, %v2734, %v2545
      %v2744 = vsel %vm2739, %v2735, %v2546
      %v2745 = vsel %vm2739, %v2736, %v2547
      %v2746 = vsel %vm2739, %v2737, %v2548
      %v2747 = vsel %vm2739, %v2738, %v2549
      %vm2748 = vcmask 56320
      %v2749 = vsel %vm2748, %v2740, %v2558
      %v2750 = vsel %vm2748, %v2741, %v2559
      %v2751 = vsel %vm2748, %v2742, %v2560
      %v2752 = vsel %vm2748, %v2743, %v2561
      %v2753 = vsel %vm2748, %v2744, %v2562
      %v2754 = vsel %vm2748, %v2745, %v2563
      %v2755 = vsel %vm2748, %v2746, %v2564
      %v2756 = vsel %vm2748, %v2747, %v2565
      %vm2757 = vcmask 64512
      %v2758 = vsel %vm2757, %v2749, %v2574
      %v2759 = vsel %vm2757, %v2750, %v2575
      %v2760 = vsel %vm2757, %v2751, %v2576
      %v2761 = vsel %vm2757, %v2752, %v2577
      %v2762 = vsel %vm2757, %v2753, %v2578
      %v2763 = vsel %vm2757, %v2754, %v2579
      %v2764 = vsel %vm2757, %v2755, %v2580
      %v2765 = vsel %vm2757, %v2756, %v2581
      %vm2766 = vcmask 72704
      %v2767 = vsel %vm2766, %v2758, %v2590
      %v2768 = vsel %vm2766, %v2759, %v2591
      %v2769 = vsel %vm2766, %v2760, %v2592
      %v2770 = vsel %vm2766, %v2761, %v2593
      %v2771 = vsel %vm2766, %v2762, %v2594
      %v2772 = vsel %vm2766, %v2763, %v2595
      %v2773 = vsel %vm2766, %v2764, %v2596
      %v2774 = vsel %vm2766, %v2765, %v2597
      %vm2775 = vcmask 80896
      %v2776 = vsel %vm2775, %v2767, %v2606
      %v2777 = vsel %vm2775, %v2768, %v2607
      %v2778 = vsel %vm2775, %v2769, %v2608
      %v2779 = vsel %vm2775, %v2770, %v2609
      %v2780 = vsel %vm2775, %v2771, %v2610
      %v2781 = vsel %vm2775, %v2772, %v2611
      %v2782 = vsel %vm2775, %v2773, %v2612
      %v2783 = vsel %vm2775, %v2774, %v2613
      %vm2784 = vcmask 89088
      %v2785 = vsel %vm2784, %v2776, %v2622
      %v2786 = vsel %vm2784, %v2777, %v2623
      %v2787 = vsel %vm2784, %v2778, %v2624
      %v2788 = vsel %vm2784, %v2779, %v2625
      %v2789 = vsel %vm2784, %v2780, %v2626
      %v2790 = vsel %vm2784, %v2781, %v2627
      %v2791 = vsel %vm2784, %v2782, %v2628
      %v2792 = vsel %vm2784, %v2783, %v2629
      %vm2793 = vcmask 97280
      %v2794 = vsel %vm2793, %v2785, %v2638
      %v2795 = vsel %vm2793, %v2786, %v2639
      %v2796 = vsel %vm2793, %v2787, %v2640
      %v2797 = vsel %vm2793, %v2788, %v2641
      %v2798 = vsel %vm2793, %v2789, %v2642
      %v2799 = vsel %vm2793, %v2790, %v2643
      %v2800 = vsel %vm2793, %v2791, %v2644
      %v2801 = vsel %vm2793, %v2792, %v2645
      %vm2802 = vcmask 105472
      %v2803 = vsel %vm2802, %v2794, %v2654
      %v2804 = vsel %vm2802, %v2795, %v2655
      %v2805 = vsel %vm2802, %v2796, %v2656
      %v2806 = vsel %vm2802, %v2797, %v2657
      %v2807 = vsel %vm2802, %v2798, %v2658
      %v2808 = vsel %vm2802, %v2799, %v2659
      %v2809 = vsel %vm2802, %v2800, %v2660
      %v2810 = vsel %vm2802, %v2801, %v2661
      %vm2811 = vcmask 113664
      %v2812 = vsel %vm2811, %v2803, %v2670
      %v2813 = vsel %vm2811, %v2804, %v2671
      %v2814 = vsel %vm2811, %v2805, %v2672
      %v2815 = vsel %vm2811, %v2806, %v2673
      %v2816 = vsel %vm2811, %v2807, %v2674
      %v2817 = vsel %vm2811, %v2808, %v2675
      %v2818 = vsel %vm2811, %v2809, %v2676
      %v2819 = vsel %vm2811, %v2810, %v2677
      %vm2820 = vcmask 121856
      %v2821 = vsel %vm2820, %v2812, %v2686
      %v2822 = vsel %vm2820, %v2813, %v2687
      %v2823 = vsel %vm2820, %v2814, %v2688
      %v2824 = vsel %vm2820, %v2815, %v2689
      %v2825 = vsel %vm2820, %v2816, %v2690
      %v2826 = vsel %vm2820, %v2817, %v2691
      %v2827 = vsel %vm2820, %v2818, %v2692
      %v2828 = vsel %vm2820, %v2819, %v2693
      %vm2829 = vcmask 130048
      %2830 = vst.msk [vmem:[%s198] sm:$0xff] %vm2829, %v2821
      %2831 = vst.msk [vmem:[%s198 + $0x8] sm:$0xff] %vm2829, %v2822
      %2832 = vst.msk [vmem:[%s198 + $0x10] sm:$0xff] %vm2829, %v2823
      %2833 = vst.msk [vmem:[%s198 + $0x18] sm:$0xff] %vm2829, %v2824
      %2834 = vst.msk [vmem:[%s198 + $0x20] sm:$0xff] %vm2829, %v2825
      %2835 = vst.msk [vmem:[%s198 + $0x28] sm:$0xff] %vm2829, %v2826
      %2836 = vst.msk [vmem:[%s198 + $0x30] sm:$0xff] %vm2829, %v2827
      %2837 = vst.msk [vmem:[%s198 + $0x38] sm:$0xff] %vm2829, %v2828
      %s2838 = smul.u32 8, %s18
      %p2839 = scmp.lt.s32.totalorder %s17, 1
      %s2840 = scalar_select %p2839, %s17, 1
      %p2841 = scmp.lt.s32.totalorder %s2838, 7
      %s2842 = scalar_select %p2841, %s2838, 7
      %s2843 = smul.addr %s2840, 8
      %s2844 = sadd.s32 %s2842, %s2843
      %s2845 = smul.addr %s2844, 8
      %s2846 = scalar_lea.vmem %s2, %s2845
      // Predicated region
      $region29: #{forward.4} parent=27 // pred_check
        %p2847 = pneg %p99
      $region30: #{forward.4} parent=27 // pred_check_branch
        %2849 = sbr.rel (%p2847) target = $region32
      $region31: #{forward.4} parent=27 // pred_region
        %s2850 = smul.u32 8, %s18
      $region32: #{forward.4} parent=27 // pred_fallthru
        _
    $region28: #{forward.4} parent=5 // pred_fallthru
      _
    %p2851 = scmp.le.s32.totalorder 2, %s8
    // Predicated region
    $region33: #{forward.4} parent=5 // pred_check
      %p2852 = pneg %p2851
    $region34: #{forward.4} parent=5 // pred_check_branch
      %2854 = sbr.rel (%p2852) target = $region36
    $region35: #{forward.4} parent=5 // pred_region
      %s2855 = ssub.s32 %s8, 2
      // Predicated region
      $region37: #{forward.4} parent=35 // pred_check
        %p2856 = pneg %p105
      $region38: #{forward.4} parent=35 // pred_check_branch
        %2858 = sbr.rel (%p2856) target = $region40
      $region39: #{forward.4} parent=35 // pred_region
        %s2859 = smul.u32 8, %s20
        %p2860 = scmp.lt.s32.totalorder %s19, 1
        %s2861 = scalar_select %p2860, %s19, 1
        %p2862 = scmp.lt.s32.totalorder %s2859, 7
        %s2863 = scalar_select %p2862, %s2859, 7
        %s2864 = smul.addr %s2861, 8
        %s2865 = sadd.s32 %s2863, %s2864
        %s2866 = smul.addr %s2865, 8
        %s2867 = scalar_lea.vmem %s2, %s2866
      $region40: #{forward.4} parent=35 // pred_fallthru
        _
    $region36: #{forward.4} parent=5 // pred_fallthru
      _
  $region6: #{forward.4} parent=0 // loop_footer
    %s12 = sadd.s32 1, %s8
  $region7: #{forward.4} parent=0 // loop_footer_branch
    %7 = sbr.rel target = $region3
  $region8: #{forward.4} parent=0 // loop_exit
    _

// kernel: forward.5
$region0: #{forward.5}
  #allocation0 [shape = 'u32[]', space=smem, size = 0x4, offset = 0x4, fixed_abs, tag = 'smem constant byte address 0x4 - core index']
  #allocation1 [shape = 'u32[72,128]{1,0:T(1,128)}', space=vmem, size = 0x9000, scoped, tag = 'internal scratch']
  %s0 = inlined_call_operand.vmem [shape: bf16[2,64,16,45], index: 0, kind: input, shape index: {}]
  %s1 = inlined_call_operand.vmem [shape: bf16[45,64], index: 1, kind: input, shape index: {}]
  %s2 = inlined_call_operand.vmem [shape: f32[1,64], index: 2, kind: input, shape index: {}]
  %s3 = inlined_call_operand.vmem [shape: bf16[64,128], index: 3, kind: input, shape index: {}]
  %s4 = inlined_call_operand.vmem [shape: f32[1,128], index: 4, kind: input, shape index: {}]
  %s5 = inlined_call_operand.hbm [shape: f32[2,64,128], index: 5, kind: output, shape index: {}]
  %s6 = sld [smem:[#allocation0]]
  $region53: #{forward.5} parent=0
    _
  %s8 = ssub.s32 1, %s6
  %s9 = scalar_select 0, %s8, %s6
  $region1: #{forward.5} parent=0
    #allocation2 [shape = 'u8[65536]{0}', space=vmem, size = 0x10000, scoped, tag = 'output window, operand 0']
    #allocation3 [shape = 's32[2]{0}', space=sflag, size = 0x8, scoped, tag = 'scoped memory for forward.5']
    %10 = vsyncpa [#allocation3], 0
    %s11 = scalar_lea.sflag [#allocation3], 1
    %12 = vsyncpa %s11, 0
    loop: start=0, step=1, limit=4
    $region2: #{forward.5} parent=1 // loop_pre_header
      _
    $region3: #{forward.5} parent=1 // loop_header
      %s14 = sphi 0, %s18
      %p15 = scmp.ge.s32.totalorder %s14, 4
      %s21 = sphi 0, %s33
      %s22 = sphi 0, %s29
      %s23 = sphi 0, %s21
      %s24 = sphi 0, %s22
      %s25 = sphi 0, %s23
      %s26 = sphi 0, %s24
      %s38 = sphi 0, %s40
      %s41 = sphi 0, %s38
      %s42 = sphi 0, %s41
      %s58 = sphi 0, %s42
      %s62 = sphi 0, %s62
      %s64 = sphi 0, %s62
      %s65 = sphi 0, %s64
      %s79 = sphi 0, %s65
      %s83 = sphi 0, %s83
      %s85 = sphi 0, %s83
      %s86 = sphi 0, %s85
      %s100 = sphi 0, %s86
      %s104 = sphi 0, %s104
      %s106 = sphi 0, %s104
      %s107 = sphi 0, %s106
      %s121 = sphi 0, %s107
      %s125 = sphi 0, %s125
      %s127 = sphi 0, %s125
      %s128 = sphi 0, %s127
      %s142 = sphi 0, %s128
      %s150 = sphi 0, %s152
      %s153 = sphi 0, %s150
      %s154 = sphi 0, %s153
      %s170 = sphi 0, %s154
    $region4: #{forward.5} parent=1 // loop_header_branch
      %17 = sbr.rel (%p15) target = $region8
    $region5: #{forward.5} parent=1 // loop_body
      %s19 = ssub.s32 %s14, 1
      %s20 = ssub.s32 %s14, 2
      %s27 = sadd.s32 1, %s22
      %p28 = scmp.ge.s32.totalorder %s27, 1
      %s29 = scalar_select %p28, 0, %s27
      %s30 = sadd.s32 1, %s21
      %s31 = scalar_select %p28, %s30, %s21
      %p32 = scmp.ge.s32.totalorder %s31, 2
      %s33 = scalar_select %p32, 0, %s31
      %s34 = ssub.s32 %s21, %s33
      %s35 = ssub.s32 %s22, %s29
      %s36 = sor.u32 %s34, %s35
      %p37 = scmp.eq.s32.totalorder %s36, 0
      %s39 = sadd.s32 %s38, 1
      %s40 = scalar_select %p37, %s38, %s39
      %p43 = pneg %p37
      %p44 = scmp.eq.s32.totalorder %s14, 1
      %p45 = por %p43, %p44
      %p46 = scmp.ne.s32.totalorder %s38, %s41
      %p47 = scmp.eq.s32.totalorder %s14, 0
      %p48 = por %p46, %p47
      %p49 = scmp.ne.s32.totalorder %s38, %s41
      %p50 = scmp.eq.s32.totalorder %s19, 1
      %p51 = por %p49, %p50
      %p52 = scmp.ne.s32.totalorder %s41, %s42
      %p53 = scmp.eq.s32.totalorder %s19, 0
      %p54 = por %p52, %p53
      %p55 = scmp.ne.s32.totalorder %s41, %s42
      %p56 = scmp.eq.s32.totalorder %s20, 1
      %p57 = por %p55, %p56
      %p59 = scmp.ne.s32.totalorder %s42, %s58
      %p60 = scmp.eq.s32.totalorder %s20, 0
      %p61 = por %p59, %p60
      %s63 = sadd.s32 %s62, 1
      %p66 = scmp.eq.s32.totalorder %s14, 1
      %p67 = scmp.ne.s32.totalorder %s62, %s64
      %p68 = scmp.eq.s32.totalorder %s14, 0
      %p69 = por %p67, %p68
      %p70 = scmp.ne.s32.totalorder %s62, %s64
      %p71 = scmp.eq.s32.totalorder %s19, 1
      %p72 = por %p70, %p71
      %p73 = scmp.ne.s32.totalorder %s64, %s65
      %p74 = scmp.eq.s32.totalorder %s19, 0
      %p75 = por %p73, %p74
      %p76 = scmp.ne.s32.totalorder %s64, %s65
      %p77 = scmp.eq.s32.totalorder %s20, 1
      %p78 = por %p76, %p77
      %p80 = scmp.ne.s32.totalorder %s65, %s79
      %p81 = scmp.eq.s32.totalorder %s20, 0
      %p82 = por %p80, %p81
      %s84 = sadd.s32 %s83, 1
      %p87 = scmp.eq.s32.totalorder %s14, 1
      %p88 = scmp.ne.s32.totalorder %s83, %s85
      %p89 = scmp.eq.s32.totalorder %s14, 0
      %p90 = por %p88, %p89
      %p91 = scmp.ne.s32.totalorder %s83, %s85
      %p92 = scmp.eq.s32.totalorder %s19, 1
      %p93 = por %p91, %p92
      %p94 = scmp.ne.s32.totalorder %s85, %s86
      %p95 = scmp.eq.s32.totalorder %s19, 0
      %p96 = por %p94, %p95
      %p97 = scmp.ne.s32.totalorder %s85, %s86
      %p98 = scmp.eq.s32.totalorder %s20, 1
      %p99 = por %p97, %p98
      %p101 = scmp.ne.s32.totalorder %s86, %s100
      %p102 = scmp.eq.s32.totalorder %s20, 0
      %p103 = por %p101, %p102
      %s105 = sadd.s32 %s104, 1
      %p108 = scmp.eq.s32.totalorder %s14, 1
      %p109 = scmp.ne.s32.totalorder %s104, %s106
      %p110 = scmp.eq.s32.totalorder %s14, 0
      %p111 = por %p109, %p110
      %p112 = scmp.ne.s32.totalorder %s104, %s106
      %p113 = scmp.eq.s32.totalorder %s19, 1
      %p114 = por %p112, %p113
      %p115 = scmp.ne.s32.totalorder %s106, %s107
      %p116 = scmp.eq.s32.totalorder %s19, 0
      %p117 = por %p115, %p116
      %p118 = scmp.ne.s32.totalorder %s106, %s107
      %p119 = scmp.eq.s32.totalorder %s20, 1
      %p120 = por %p118, %p119
      %p122 = scmp.ne.s32.totalorder %s107, %s121
      %p123 = scmp.eq.s32.totalorder %s20, 0
      %p124 = por %p122, %p123
      %s126 = sadd.s32 %s125, 1
      %p129 = scmp.eq.s32.totalorder %s14, 1
      %p130 = scmp.ne.s32.totalorder %s125, %s127
      %p131 = scmp.eq.s32.totalorder %s14, 0
      %p132 = por %p130, %p131
      %p133 = scmp.ne.s32.totalorder %s125, %s127
      %p134 = scmp.eq.s32.totalorder %s19, 1
      %p135 = por %p133, %p134
      %p136 = scmp.ne.s32.totalorder %s127, %s128
      %p137 = scmp.eq.s32.totalorder %s19, 0
      %p138 = por %p136, %p137
      %p139 = scmp.ne.s32.totalorder %s127, %s128
      %p140 = scmp.eq.s32.totalorder %s20, 1
      %p141 = por %p139, %p140
      %p143 = scmp.ne.s32.totalorder %s128, %s142
      %p144 = scmp.eq.s32.totalorder %s20, 0
      %p145 = por %p143, %p144
      %s146 = ssub.s32 %s21, %s33
      %s147 = ssub.s32 %s22, %s29
      %s148 = sor.u32 %s146, %s147
      %p149 = scmp.eq.s32.totalorder %s148, 0
      %s151 = sadd.s32 %s150, 1
      %s152 = scalar_select %p149, %s150, %s151
      %p155 = pneg %p149
      %p156 = scmp.eq.s32.totalorder %s14, 1
      %p157 = por %p155, %p156
      %p158 = scmp.ne.s32.totalorder %s150, %s153
      %p159 = scmp.eq.s32.totalorder %s14, 0
      %p160 = por %p158, %p159
      %p161 = scmp.ne.s32.totalorder %s150, %s153
      %p162 = scmp.eq.s32.totalorder %s19, 1
      %p163 = por %p161, %p162
      %p164 = scmp.ne.s32.totalorder %s153, %s154
      %p165 = scmp.eq.s32.totalorder %s19, 0
      %p166 = por %p164, %p165
      %p167 = scmp.ne.s32.totalorder %s153, %s154
      %p168 = scmp.eq.s32.totalorder %s20, 1
      %p169 = por %p167, %p168
      %p171 = scmp.ne.s32.totalorder %s154, %s170
      %p172 = scmp.eq.s32.totalorder %s20, 0
      %p173 = por %p171, %p172
      %p174 = scmp.le.s32.totalorder 1, %s14
      %p175 = scmp.lt.s32.totalorder %s14, 3
      %p176 = pnand %p174, %p175
      %p177 = pneg %p176
      // Predicated region
      $region9: #{forward.5} parent=5 // pred_check
        _
      $region10: #{forward.5} parent=5 // pred_check_branch
        %179 = sbr.rel (%p176) target = $region12
      $region11: #{forward.5} parent=5 // pred_region
        %s180 = ssub.s32 %s14, 1
        // Predicated region
        $region13: #{forward.5} parent=11 // pred_check
          %p181 = pneg %p75
        $region14: #{forward.5} parent=11 // pred_check_branch
          %183 = sbr.rel (%p181) target = $region16
        $region15: #{forward.5} parent=11 // pred_region
          _
        $region16: #{forward.5} parent=11 // pred_fallthru
          _
        // Predicated region
        $region17: #{forward.5} parent=11 // pred_check
          %p184 = pneg %p96
        $region18: #{forward.5} parent=11 // pred_check_branch
          %186 = sbr.rel (%p184) target = $region20
        $region19: #{forward.5} parent=11 // pred_region
          _
        $region20: #{forward.5} parent=11 // pred_fallthru
          _
        // Predicated region
        $region21: #{forward.5} parent=11 // pred_check
          %p187 = pneg %p117
        $region22: #{forward.5} parent=11 // pred_check_branch
          %189 = sbr.rel (%p187) target = $region24
        $region23: #{forward.5} parent=11 // pred_region
          _
        $region24: #{forward.5} parent=11 // pred_fallthru
          _
        // Predicated region
        $region25: #{forward.5} parent=11 // pred_check
          %p190 = pneg %p138
        $region26: #{forward.5} parent=11 // pred_check_branch
          %192 = sbr.rel (%p190) target = $region28
        $region27: #{forward.5} parent=11 // pred_region
          _
        $region28: #{forward.5} parent=11 // pred_fallthru
          _
      $region12: #{forward.5} parent=5 // pred_fallthru
        _
      %p193 = scmp.lt.s32.totalorder %s14, 2
      // Predicated region
      $region29: #{forward.5} parent=5 // pred_check
        %p194 = pneg %p193
      $region30: #{forward.5} parent=5 // pred_check_branch
        %196 = sbr.rel (%p194) target = $region32
      $region31: #{forward.5} parent=5 // pred_region
        // Predicated region
        $region33: #{forward.5} parent=31 // pred_check
          %p197 = pneg %p48
        $region34: #{forward.5} parent=31 // pred_check_branch
          %199 = sbr.rel (%p197) target = $region36
        $region35: #{forward.5} parent=31 // pred_region
          %s200 = smul.u32 64, %s22
          %p201 = scmp.lt.s32.totalorder %s21, 1
          %s202 = scalar_select %p201, %s21, 1
          %p203 = scmp.lt.s32.totalorder %s200, 63
          %s204 = scalar_select %p203, %s200, 63
          %s205 = smul.addr %s204, 2
          %s206 = smul.addr %s202, 128
          %s207 = sadd.s32 %s205, %s206
          %s208 = smul.addr %s207, 4
          %s209 = scalar_lea.vmem %s0, %s208
          %s210 = smul.u32 64, %s22
        $region36: #{forward.5} parent=31 // pred_fallthru
          _
      $region32: #{forward.5} parent=5 // pred_fallthru
        _
      %p211 = scmp.le.s32.totalorder 1, %s14
      %p212 = scmp.lt.s32.totalorder %s14, 3
      %p213 = pnand %p211, %p212
      %p214 = pneg %p213
      // Predicated region
      $region37: #{forward.5} parent=5 // pred_check
        _
      $region38: #{forward.5} parent=5 // pred_check_branch
        %216 = sbr.rel (%p213) target = $region40
      $region39: #{forward.5} parent=5 // pred_region
        %s217 = ssub.s32 %s14, 1
        %s218 = smul.u32 64, %s24
        %p219 = scmp.lt.s32.totalorder %s23, 1
        %s220 = scalar_select %p219, %s23, 1
        %p221 = scmp.lt.s32.totalorder %s218, 63
        %s222 = scalar_select %p221, %s218, 63
        %s223 = smul.addr %s222, 2
        %s224 = smul.addr %s220, 128
        %s225 = sadd.s32 %s223, %s224
        %s226 = smul.addr %s225, 4
        %s227 = scalar_lea.vmem %s0, %s226
        %p228 = pneg %p54
        %p229 = pneg %p51
        %p230 = pneg %p75
        %p231 = pneg %p72
        %p232 = pneg %p96
        %p233 = pneg %p93
        %p234 = pneg %p117
        %p235 = pneg %p114
        %p236 = pneg %p138
        %p237 = pneg %p135
        %p238 = pneg %p166
        %p239 = pneg %p163
        %s240 = sand.u32 %s153, 1
        %s241 = scalar_lea.sflag [#allocation3], %s240
        %s242 = sand.u32 %s153, 1
        %s243 = smul.addr %s242, 64
        %s244 = scalar_lea.vmem [#allocation2], %s243
        %s245 = smul.u32 64, %s24
        %p246 = scmp.lt.s32.totalorder %s23, 1
        %s247 = scalar_select %p246, %s23, 1
        %p248 = scmp.lt.s32.totalorder %s245, 63
        %s249 = scalar_select %p248, %s245, 63
        %s250 = smul.addr %s249, 2
        %s251 = smul.addr %s247, 128
        %s252 = sadd.s32 %s250, %s251
        %s253 = smul.addr %s252, 4
        %s254 = scalar_lea.vmem %s0, %s253
        %s255 = smul.u32 64, %s24
        %s256 = smul.u32 8, %s24
        %v258 = vld [vmem:[%s254] sm:$0xf]
        %v259 = vld [vmem:[%s254 + $0x4] sm:$0xf]
        %v260 = vld [vmem:[%s254 + $0x8] sm:$0xf]
        %v261 = vld [vmem:[%s254 + $0xc] sm:$0xf]
        %v262 = vld [vmem:[%s254 + $0x10] sm:$0xf]
        %v263 = vld [vmem:[%s254 + $0x14] sm:$0xf]
        %v264 = vld [vmem:[%s254 + $0x18] sm:$0xf]
        %v265 = vld [vmem:[%s254 + $0x1c] sm:$0xf]
        %v266 = vld [vmem:[%s254 + $0x20] sm:$0xf]
        %v267 = vld [vmem:[%s254 + $0x24] sm:$0xf]
        %v268 = vld [vmem:[%s254 + $0x28] sm:$0xf]
        %v269 = vld [vmem:[%s254 + $0x2c] sm:$0xf]
        %v270 = vld [vmem:[%s254 + $0x30] sm:$0xf]
        %v271 = vld [vmem:[%s254 + $0x34] sm:$0xf]
        %v272 = vld [vmem:[%s254 + $0x38] sm:$0xf]
        %v273 = vld [vmem:[%s254 + $0x3c] sm:$0xf]
        %v274 = vld [vmem:[%s254 + $0x40] sm:$0xf]
        %v275 = vld [vmem:[%s254 + $0x44] sm:$0xf]
        %v276 = vld [vmem:[%s254 + $0x48] sm:$0xf]
        %v277 = vld [vmem:[%s254 + $0x4c] sm:$0xf]
        %v278 = vld [vmem:[%s254 + $0x50] sm:$0xf]
        %v279 = vld [vmem:[%s254 + $0x54] sm:$0xf]
        %v280 = vld [vmem:[%s254 + $0x58] sm:$0xf]
        %v281 = vld [vmem:[%s254 + $0x5c] sm:$0xf]
        %v282 = vld [vmem:[%s254 + $0x60] sm:$0xf]
        %v283 = vld [vmem:[%s254 + $0x64] sm:$0xf]
        %v284 = vld [vmem:[%s254 + $0x68] sm:$0xf]
        %v285 = vld [vmem:[%s254 + $0x6c] sm:$0xf]
        %v286 = vld [vmem:[%s254 + $0x70] sm:$0xf]
        %v287 = vld [vmem:[%s254 + $0x74] sm:$0xf]
        %v288 = vld [vmem:[%s254 + $0x78] sm:$0xf]
        %v289 = vld [vmem:[%s254 + $0x7c] sm:$0xf]
        %v290 = vld [vmem:[%s254 + $0x80] sm:$0xf]
        %v291 = vld [vmem:[%s254 + $0x84] sm:$0xf]
        %v292 = vld [vmem:[%s254 + $0x88] sm:$0xf]
        %v293 = vld [vmem:[%s254 + $0x8c] sm:$0xf]
        %v294 = vld [vmem:[%s254 + $0x90] sm:$0xf]
        %v295 = vld [vmem:[%s254 + $0x94] sm:$0xf]
        %v296 = vld [vmem:[%s254 + $0x98] sm:$0xf]
        %v297 = vld [vmem:[%s254 + $0x9c] sm:$0xf]
        %v298 = vld [vmem:[%s254 + $0xa0] sm:$0xf]
        %v299 = vld [vmem:[%s254 + $0xa4] sm:$0xf]
        %v300 = vld [vmem:[%s254 + $0xa8] sm:$0xf]
        %v301 = vld [vmem:[%s254 + $0xac] sm:$0xf]
        %v302 = vld [vmem:[%s254 + $0xb0] sm:$0xf]
        %v303 = vld [vmem:[%s254 + $0xb4] sm:$0xf]
        %v304 = vld [vmem:[%s254 + $0xb8] sm:$0xf]
        %v305 = vld [vmem:[%s254 + $0xbc] sm:$0xf]
        %v306 = vld [vmem:[%s254 + $0xc0] sm:$0xf]
        %v307 = vld [vmem:[%s254 + $0xc4] sm:$0xf]
        %v308 = vld [vmem:[%s254 + $0xc8] sm:$0xf]
        %v309 = vld [vmem:[%s254 + $0xcc] sm:$0xf]
        %v310 = vld [vmem:[%s254 + $0xd0] sm:$0xf]
        %v311 = vld [vmem:[%s254 + $0xd4] sm:$0xf]
        %v312 = vld [vmem:[%s254 + $0xd8] sm:$0xf]
        %v313 = vld [vmem:[%s254 + $0xdc] sm:$0xf]
        %v314 = vld [vmem:[%s254 + $0xe0] sm:$0xf]
        %v315 = vld [vmem:[%s254 + $0xe4] sm:$0xf]
        %v316 = vld [vmem:[%s254 + $0xe8] sm:$0xf]
        %v317 = vld [vmem:[%s254 + $0xec] sm:$0xf]
        %v318 = vld [vmem:[%s254 + $0xf0] sm:$0xf]
        %v319 = vld [vmem:[%s254 + $0xf4] sm:$0xf]
        %v320 = vld [vmem:[%s254 + $0xf8] sm:$0xf]
        %v321 = vld [vmem:[%s254 + $0xfc] sm:$0xf]
        %v322 = vld [vmem:[%s254 + $0x100] sm:$0xf]
        %v323 = vld [vmem:[%s254 + $0x104] sm:$0xf]
        %v324 = vld [vmem:[%s254 + $0x108] sm:$0xf]
        %v325 = vld [vmem:[%s254 + $0x10c] sm:$0xf]
        %v326 = vld [vmem:[%s254 + $0x110] sm:$0xf]
        %v327 = vld [vmem:[%s254 + $0x114] sm:$0xf]
        %v328 = vld [vmem:[%s254 + $0x118] sm:$0xf]
        %v329 = vld [vmem:[%s254 + $0x11c] sm:$0xf]
        %v330 = vld [vmem:[%s254 + $0x120] sm:$0xf]
        %v331 = vld [vmem:[%s254 + $0x124] sm:$0xf]
        %v332 = vld [vmem:[%s254 + $0x128] sm:$0xf]
        %v333 = vld [vmem:[%s254 + $0x12c] sm:$0xf]
        %v334 = vld [vmem:[%s254 + $0x130] sm:$0xf]
        %v335 = vld [vmem:[%s254 + $0x134] sm:$0xf]
        %v336 = vld [vmem:[%s254 + $0x138] sm:$0xf]
        %v337 = vld [vmem:[%s254 + $0x13c] sm:$0xf]
        %v338 = vld [vmem:[%s254 + $0x140] sm:$0xf]
        %v339 = vld [vmem:[%s254 + $0x144] sm:$0xf]
        %v340 = vld [vmem:[%s254 + $0x148] sm:$0xf]
        %v341 = vld [vmem:[%s254 + $0x14c] sm:$0xf]
        %v342 = vld [vmem:[%s254 + $0x150] sm:$0xf]
        %v343 = vld [vmem:[%s254 + $0x154] sm:$0xf]
        %v344 = vld [vmem:[%s254 + $0x158] sm:$0xf]
        %v345 = vld [vmem:[%s254 + $0x15c] sm:$0xf]
        %v346 = vld [vmem:[%s254 + $0x160] sm:$0xf]
        %v347 = vld [vmem:[%s254 + $0x164] sm:$0xf]
        %v348 = vld [vmem:[%s254 + $0x168] sm:$0xf]
        %v349 = vld [vmem:[%s254 + $0x16c] sm:$0xf]
        %v350 = vld [vmem:[%s254 + $0x170] sm:$0xf]
        %v351 = vld [vmem:[%s254 + $0x174] sm:$0xf]
        %v352 = vld [vmem:[%s254 + $0x178] sm:$0xf]
        %v353 = vld [vmem:[%s254 + $0x17c] sm:$0xf]
        %v354 = vld [vmem:[%s254 + $0x180] sm:$0xf]
        %v355 = vld [vmem:[%s254 + $0x184] sm:$0xf]
        %v356 = vld [vmem:[%s254 + $0x188] sm:$0xf]
        %v357 = vld [vmem:[%s254 + $0x18c] sm:$0xf]
        %v358 = vld [vmem:[%s254 + $0x190] sm:$0xf]
        %v359 = vld [vmem:[%s254 + $0x194] sm:$0xf]
        %v360 = vld [vmem:[%s254 + $0x198] sm:$0xf]
        %v361 = vld [vmem:[%s254 + $0x19c] sm:$0xf]
        %v362 = vld [vmem:[%s254 + $0x1a0] sm:$0xf]
        %v363 = vld [vmem:[%s254 + $0x1a4] sm:$0xf]
        %v364 = vld [vmem:[%s254 + $0x1a8] sm:$0xf]
        %v365 = vld [vmem:[%s254 + $0x1ac] sm:$0xf]
        %v366 = vld [vmem:[%s254 + $0x1b0] sm:$0xf]
        %v367 = vld [vmem:[%s254 + $0x1b4] sm:$0xf]
        %v368 = vld [vmem:[%s254 + $0x1b8] sm:$0xf]
        %v369 = vld [vmem:[%s254 + $0x1bc] sm:$0xf]
        %v370 = vld [vmem:[%s254 + $0x1c0] sm:$0xf]
        %v371 = vld [vmem:[%s254 + $0x1c4] sm:$0xf]
        %v372 = vld [vmem:[%s254 + $0x1c8] sm:$0xf]
        %v373 = vld [vmem:[%s254 + $0x1cc] sm:$0xf]
        %v374 = vld [vmem:[%s254 + $0x1d0] sm:$0xf]
        %v375 = vld [vmem:[%s254 + $0x1d4] sm:$0xf]
        %v376 = vld [vmem:[%s254 + $0x1d8] sm:$0xf]
        %v377 = vld [vmem:[%s254 + $0x1dc] sm:$0xf]
        %v378 = vld [vmem:[%s254 + $0x1e0] sm:$0xf]
        %v379 = vld [vmem:[%s254 + $0x1e4] sm:$0xf]
        %v380 = vld [vmem:[%s254 + $0x1e8] sm:$0xf]
        %v381 = vld [vmem:[%s254 + $0x1ec] sm:$0xf]
        %v382 = vld [vmem:[%s254 + $0x1f0] sm:$0xf]
        %v383 = vld [vmem:[%s254 + $0x1f4] sm:$0xf]
        %v384 = vld [vmem:[%s254 + $0x1f8] sm:$0xf]
        %v385 = vld [vmem:[%s254 + $0x1fc] sm:$0xf]
        %v386 = vld [vmem:[%s1] sm:$0xf]
        %v387 = vld [vmem:[%s1 + $0x4] sm:$0xf]
        %v388 = vld [vmem:[%s1 + $0x8] sm:$0xf]
        %v389 = vld [vmem:[%s1 + $0xc] sm:$0xf]
        %v390 = vld [vmem:[%s1 + $0x10] sm:$0xf]
        %v391 = vld [vmem:[%s1 + $0x14] sm:$0x7]
        %v392 = vld [vmem:[%s2] sm:$0x1]
        %v394 = vperm.slane %v392, 0
        %v524 = vunpack.c.l.b16 %v258
        %v525 = vunpack.c.l.b16 %v259
        %v526 = vunpack.c.l.b16 %v260
        %v527 = vunpack.c.l.b16 %v261
        %v528 = vunpack.c.l.b16 %v262
        %v529 = vunpack.c.l.b16 %v263
        %v530 = vunpack.c.l.b16 %v264
        %v531 = vunpack.c.l.b16 %v265
        %v532 = vunpack.c.l.b16 %v266
        %v533 = vunpack.c.l.b16 %v267
        %v534 = vunpack.c.l.b16 %v268
        %v535 = vunpack.c.l.b16 %v269
        %v536 = vunpack.c.l.b16 %v270
        %v537 = vunpack.c.l.b16 %v271
        %v538 = vunpack.c.l.b16 %v272
        %v539 = vunpack.c.l.b16 %v273
        %v540 = vunpack.c.l.b16 %v274
        %v541 = vunpack.c.l.b16 %v275
        %v542 = vunpack.c.l.b16 %v276
        %v543 = vunpack.c.l.b16 %v277
        %v544 = vunpack.c.l.b16 %v278
        %v545 = vunpack.c.l.b16 %v279
        %v546 = vunpack.c.l.b16 %v280
        %v547 = vunpack.c.l.b16 %v281
        %v548 = vunpack.c.l.b16 %v282
        %v549 = vunpack.c.l.b16 %v283
        %v550 = vunpack.c.l.b16 %v284
        %v551 = vunpack.c.l.b16 %v285
        %v552 = vunpack.c.l.b16 %v286
        %v553 = vunpack.c.l.b16 %v287
        %v554 = vunpack.c.l.b16 %v288
        %v555 = vunpack.c.l.b16 %v289
        %v556 = vunpack.c.l.b16 %v290
        %v557 = vunpack.c.l.b16 %v291
        %v558 = vunpack.c.l.b16 %v292
        %v559 = vunpack.c.l.b16 %v293
        %v560 = vunpack.c.l.b16 %v294
        %v561 = vunpack.c.l.b16 %v295
        %v562 = vunpack.c.l.b16 %v296
        %v563 = vunpack.c.l.b16 %v297
        %v564 = vunpack.c.l.b16 %v298
        %v565 = vunpack.c.l.b16 %v299
        %v566 = vunpack.c.l.b16 %v300
        %v567 = vunpack.c.l.b16 %v301
        %v568 = vunpack.c.l.b16 %v302
        %v569 = vunpack.c.l.b16 %v303
        %v570 = vunpack.c.l.b16 %v304
        %v571 = vunpack.c.l.b16 %v305
        %v572 = vunpack.c.l.b16 %v306
        %v573 = vunpack.c.l.b16 %v307
        %v574 = vunpack.c.l.b16 %v308
        %v575 = vunpack.c.l.b16 %v309
        %v576 = vunpack.c.l.b16 %v310
        %v577 = vunpack.c.l.b16 %v311
        %v578 = vunpack.c.l.b16 %v312
        %v579 = vunpack.c.l.b16 %v313
        %v580 = vunpack.c.l.b16 %v314
        %v581 = vunpack.c.l.b16 %v315
        %v582 = vunpack.c.l.b16 %v316
        %v583 = vunpack.c.l.b16 %v317
        %v584 = vunpack.c.l.b16 %v318
        %v585 = vunpack.c.l.b16 %v319
        %v586 = vunpack.c.l.b16 %v320
        %v587 = vunpack.c.l.b16 %v321
        %v588 = vunpack.c.l.b16 %v322
        %v589 = vunpack.c.l.b16 %v323
        %v590 = vunpack.c.l.b16 %v324
        %v591 = vunpack.c.l.b16 %v325
        %v592 = vunpack.c.l.b16 %v326
        %v593 = vunpack.c.l.b16 %v327
        %v594 = vunpack.c.l.b16 %v328
        %v595 = vunpack.c.l.b16 %v329
        %v596 = vunpack.c.l.b16 %v330
        %v597 = vunpack.c.l.b16 %v331
        %v598 = vunpack.c.l.b16 %v332
        %v599 = vunpack.c.l.b16 %v333
        %v600 = vunpack.c.l.b16 %v334
        %v601 = vunpack.c.l.b16 %v335
        %v602 = vunpack.c.l.b16 %v336
        %v603 = vunpack.c.l.b16 %v337
        %v604 = vunpack.c.l.b16 %v338
        %v605 = vunpack.c.l.b16 %v339
        %v606 = vunpack.c.l.b16 %v340
        %v607 = vunpack.c.l.b16 %v341
        %v608 = vunpack.c.l.b16 %v342
        %v609 = vunpack.c.l.b16 %v343
        %v610 = vunpack.c.l.b16 %v344
        %v611 = vunpack.c.l.b16 %v345
        %v612 = vunpack.c.l.b16 %v346
        %v613 = vunpack.c.l.b16 %v347
        %v614 = vunpack.c.l.b16 %v348
        %v615 = vunpack.c.l.b16 %v349
        %v616 = vunpack.c.l.b16 %v350
        %v617 = vunpack.c.l.b16 %v351
        %v618 = vunpack.c.l.b16 %v352
        %v619 = vunpack.c.l.b16 %v353
        %v620 = vunpack.c.l.b16 %v354
        %v621 = vunpack.c.l.b16 %v355
        %v622 = vunpack.c.l.b16 %v356
        %v623 = vunpack.c.l.b16 %v357
        %v624 = vunpack.c.l.b16 %v358
        %v625 = vunpack.c.l.b16 %v359
        %v626 = vunpack.c.l.b16 %v360
        %v627 = vunpack.c.l.b16 %v361
        %v628 = vunpack.c.l.b16 %v362
        %v629 = vunpack.c.l.b16 %v363
        %v630 = vunpack.c.l.b16 %v364
        %v631 = vunpack.c.l.b16 %v365
        %v632 = vunpack.c.l.b16 %v366
        %v633 = vunpack.c.l.b16 %v367
        %v634 = vunpack.c.l.b16 %v368
        %v635 = vunpack.c.l.b16 %v369
        %v636 = vunpack.c.l.b16 %v370
        %v637 = vunpack.c.l.b16 %v371
        %v638 = vunpack.c.l.b16 %v372
        %v639 = vunpack.c.l.b16 %v373
        %v640 = vunpack.c.l.b16 %v374
        %v641 = vunpack.c.l.b16 %v375
        %v642 = vunpack.c.l.b16 %v376
        %v643 = vunpack.c.l.b16 %v377
        %v644 = vunpack.c.l.b16 %v378
        %v645 = vunpack.c.l.b16 %v379
        %v646 = vunpack.c.l.b16 %v380
        %v647 = vunpack.c.l.b16 %v381
        %v648 = vunpack.c.l.b16 %v382
        %v649 = vunpack.c.l.b16 %v383
        %v650 = vunpack.c.l.b16 %v384
        %v651 = vunpack.c.l.b16 %v385
        %v652 = vpack.c.b16 %v525, %v524
        %v653 = vpack.c.b16 %v527, %v526
        %v654 = vpack.c.b16 %v529, %v528
        %v655 = vpack.c.b16 %v531, %v530
        %v656 = vpack.c.b16 %v533, %v532
        %v657 = vpack.c.b16 %v535, %v534
        %v658 = vpack.c.b16 %v537, %v536
        %v659 = vpack.c.b16 %v539, %v538
        %v660 = vpack.c.b16 %v541, %v540
        %v661 = vpack.c.b16 %v543, %v542
        %v662 = vpack.c.b16 %v545, %v544
        %v663 = vpack.c.b16 %v547, %v546
        %v664 = vpack.c.b16 %v549, %v548
        %v665 = vpack.c.b16 %v551, %v550
        %v666 = vpack.c.b16 %v553, %v552
        %v667 = vpack.c.b16 %v555, %v554
        %v668 = vpack.c.b16 %v557, %v556
        %v669 = vpack.c.b16 %v559, %v558
        %v670 = vpack.c.b16 %v561, %v560
        %v671 = vpack.c.b16 %v563, %v562
        %v672 = vpack.c.b16 %v565, %v564
        %v673 = vpack.c.b16 %v567, %v566
        %v674 = vpack.c.b16 %v569, %v568
        %v675 = vpack.c.b16 %v571, %v570
        %v676 = vpack.c.b16 %v573, %v572
        %v677 = vpack.c.b16 %v575, %v574
        %v678 = vpack.c.b16 %v577, %v576
        %v679 = vpack.c.b16 %v579, %v578
        %v680 = vpack.c.b16 %v581, %v580
        %v681 = vpack.c.b16 %v583, %v582
        %v682 = vpack.c.b16 %v585, %v584
        %v683 = vpack.c.b16 %v587, %v586
        %v684 = vpack.c.b16 %v589, %v588
        %v685 = vpack.c.b16 %v591, %v590
        %v686 = vpack.c.b16 %v593, %v592
        %v687 = vpack.c.b16 %v595, %v594
        %v688 = vpack.c.b16 %v597, %v596
        %v689 = vpack.c.b16 %v599, %v598
        %v690 = vpack.c.b16 %v601, %v600
        %v691 = vpack.c.b16 %v603, %v602
        %v692 = vpack.c.b16 %v605, %v604
        %v693 = vpack.c.b16 %v607, %v606
        %v694 = vpack.c.b16 %v609, %v608
        %v695 = vpack.c.b16 %v611, %v610
        %v696 = vpack.c.b16 %v613, %v612
        %v697 = vpack.c.b16 %v615, %v614
        %v698 = vpack.c.b16 %v617, %v616
        %v699 = vpack.c.b16 %v619, %v618
        %v700 = vpack.c.b16 %v621, %v620
        %v701 = vpack.c.b16 %v623, %v622
        %v702 = vpack.c.b16 %v625, %v624
        %v703 = vpack.c.b16 %v627, %v626
        %v704 = vpack.c.b16 %v629, %v628
        %v705 = vpack.c.b16 %v631, %v630
        %v706 = vpack.c.b16 %v633, %v632
        %v707 = vpack.c.b16 %v635, %v634
        %v708 = vpack.c.b16 %v637, %v636
        %v709 = vpack.c.b16 %v639, %v638
        %v710 = vpack.c.b16 %v641, %v640
        %v711 = vpack.c.b16 %v643, %v642
        %v712 = vpack.c.b16 %v645, %v644
        %v713 = vpack.c.b16 %v647, %v646
        %v714 = vpack.c.b16 %v649, %v648
        %v715 = vpack.c.b16 %v651, %v650
        %v722 = vunpack.c.l.b16 %v386
        %v723 = vunpack.c.l.b16 %v387
        %v724 = vunpack.c.l.b16 %v388
        %v725 = vunpack.c.l.b16 %v389
        %v726 = vunpack.c.l.b16 %v390
        %v727 = vunpack.c.l.b16 %v391
        %v728 = vpack.c.b16 %v723, %v722
        %v729 = vpack.c.b16 %v725, %v724
        %v730 = vpack.c.b16 %v727, %v726
        %vm733 = vcmask 367616
        %v735 = vsel %vm733, %v652, 0
        %v738 = vsel %vm733, %v653, 0
        %v741 = vsel %vm733, %v654, 0
        %v744 = vsel %vm733, %v655, 0
        %v747 = vsel %vm733, %v656, 0
        %v750 = vsel %vm733, %v657, 0
        %v753 = vsel %vm733, %v658, 0
        %v756 = vsel %vm733, %v659, 0
        %v759 = vsel %vm733, %v660, 0
        %v762 = vsel %vm733, %v661, 0
        %v765 = vsel %vm733, %v662, 0
        %v768 = vsel %vm733, %v663, 0
        %v771 = vsel %vm733, %v664, 0
        %v774 = vsel %vm733, %v665, 0
        %v777 = vsel %vm733, %v666, 0
        %v780 = vsel %vm733, %v667, 0
        %v783 = vsel %vm733, %v668, 0
        %v786 = vsel %vm733, %v669, 0
        %v789 = vsel %vm733, %v670, 0
        %v792 = vsel %vm733, %v671, 0
        %v795 = vsel %vm733, %v672, 0
        %v798 = vsel %vm733, %v673, 0
        %v801 = vsel %vm733, %v674, 0
        %v804 = vsel %vm733, %v675, 0
        %v807 = vsel %vm733, %v676, 0
        %v810 = vsel %vm733, %v677, 0
        %v813 = vsel %vm733, %v678, 0
        %v816 = vsel %vm733, %v679, 0
        %v819 = vsel %vm733, %v680, 0
        %v822 = vsel %vm733, %v681, 0
        %v825 = vsel %vm733, %v682, 0
        %v828 = vsel %vm733, %v683, 0
        %v831 = vsel %vm733, %v684, 0
        %v834 = vsel %vm733, %v685, 0
        %v837 = vsel %vm733, %v686, 0
        %v840 = vsel %vm733, %v687, 0
        %v843 = vsel %vm733, %v688, 0
        %v846 = vsel %vm733, %v689, 0
        %v849 = vsel %vm733, %v690, 0
        %v852 = vsel %vm733, %v691, 0
        %v855 = vsel %vm733, %v692, 0
        %v858 = vsel %vm733, %v693, 0
        %v861 = vsel %vm733, %v694, 0
        %v864 = vsel %vm733, %v695, 0
        %v867 = vsel %vm733, %v696, 0
        %v870 = vsel %vm733, %v697, 0
        %v873 = vsel %vm733, %v698, 0
        %v876 = vsel %vm733, %v699, 0
        %v879 = vsel %vm733, %v700, 0
        %v882 = vsel %vm733, %v701, 0
        %v885 = vsel %vm733, %v702, 0
        %v888 = vsel %vm733, %v703, 0
        %v891 = vsel %vm733, %v704, 0
        %v894 = vsel %vm733, %v705, 0
        %v897 = vsel %vm733, %v706, 0
        %v900 = vsel %vm733, %v707, 0
        %v903 = vsel %vm733, %v708, 0
        %v906 = vsel %vm733, %v709, 0
        %v909 = vsel %vm733, %v710, 0
        %v912 = vsel %vm733, %v711, 0
        %v915 = vsel %vm733, %v712, 0
        %v918 = vsel %vm733, %v713, 0
        %v921 = vsel %vm733, %v714, 0
        %v924 = vsel %vm733, %v715, 0
        %vm926 = vcmask 1045504
        %vm927 = vcmask 1046528
        %v928 = vsel %vm926, 4294967295, 65535
        %v929 = vsel %vm927, %v928, 0
        %v931 = vand.u32 %v730, %v929
        %933 = vmatpush.bf16.msra.mxu0 0
        %934 = vmatpush.bf16.msra.mxu0 0
        %935 = vmatpush.bf16.msra.mxu0 0
        %936 = vmatpush.bf16.msra.mxu0 0
        %937 = vmatpush.bf16.msra.mxu0 0
        %938 = vmatpush.bf16.msra.mxu0 %v931
        %939 = vmatpush.bf16.msra.mxu0 %v729
        %940 = vmatpush.bf16.msra.mxu0 %v728
        %941 = vmatmul.bf16.gmra.mxu0 %v735
        %v942 = vpop.f32.mrf.mxu0
        %v943 = vadd.f32 %v394, %v942
        %v944 = vpop.f32.mrf.mxu0
        %v945 = vadd.f32 %v394, %v944
        %946 = vmatmul.bf16.gmra.mxu0 %v738
        %v947 = vpop.f32.mrf.mxu0
        %v948 = vadd.f32 %v394, %v947
        %v949 = vpop.f32.mrf.mxu0
        %v950 = vadd.f32 %v394, %v949
        %951 = vmatmul.bf16.gmra.mxu0 %v741
        %v952 = vpop.f32.mrf.mxu0
        %v953 = vadd.f32 %v394, %v952
        %v954 = vpop.f32.mrf.mxu0
        %v955 = vadd.f32 %v394, %v954
        %956 = vmatmul.bf16.gmra.mxu0 %v744
        %v957 = vpop.f32.mrf.mxu0
        %v958 = vadd.f32 %v394, %v957
        %v959 = vpop.f32.mrf.mxu0
        %v960 = vadd.f32 %v394, %v959
        %961 = vmatmul.bf16.gmra.mxu0 %v747
        %v962 = vpop.f32.mrf.mxu0
        %v963 = vadd.f32 %v394, %v962
        %v964 = vpop.f32.mrf.mxu0
        %v965 = vadd.f32 %v394, %v964
        %966 = vmatmul.bf16.gmra.mxu0 %v750
        %v967 = vpop.f32.mrf.mxu0
        %v968 = vadd.f32 %v394, %v967
        %v969 = vpop.f32.mrf.mxu0
        %v970 = vadd.f32 %v394, %v969
        %971 = vmatmul.bf16.gmra.mxu0 %v753
        %v972 = vpop.f32.mrf.mxu0
        %v973 = vadd.f32 %v394, %v972
        %v974 = vpop.f32.mrf.mxu0
        %v975 = vadd.f32 %v394, %v974
        %976 = vmatmul.bf16.gmra.mxu0 %v756
        %v977 = vpop.f32.mrf.mxu0
        %v978 = vadd.f32 %v394, %v977
        %v979 = vpop.f32.mrf.mxu0
        %v980 = vadd.f32 %v394, %v979
        %981 = vmatmul.bf16.gmra.mxu0 %v759
        %v982 = vpop.f32.mrf.mxu0
        %v983 = vadd.f32 %v394, %v982
        %v984 = vpop.f32.mrf.mxu0
        %v985 = vadd.f32 %v394, %v984
        %986 = vmatmul.bf16.gmra.mxu0 %v762
        %v987 = vpop.f32.mrf.mxu0
        %v988 = vadd.f32 %v394, %v987
        %v989 = vpop.f32.mrf.mxu0
        %v990 = vadd.f32 %v394, %v989
        %991 = vmatmul.bf16.gmra.mxu0 %v765
        %v992 = vpop.f32.mrf.mxu0
        %v993 = vadd.f32 %v394, %v992
        %v994 = vpop.f32.mrf.mxu0
        %v995 = vadd.f32 %v394, %v994
        %996 = vmatmul.bf16.gmra.mxu0 %v768
        %v997 = vpop.f32.mrf.mxu0
        %v998 = vadd.f32 %v394, %v997
        %v999 = vpop.f32.mrf.mxu0
        %v1000 = vadd.f32 %v394, %v999
        %1001 = vmatmul.bf16.gmra.mxu0 %v771
        %v1002 = vpop.f32.mrf.mxu0
        %v1003 = vadd.f32 %v394, %v1002
        %v1004 = vpop.f32.mrf.mxu0
        %v1005 = vadd.f32 %v394, %v1004
        %1006 = vmatmul.bf16.gmra.mxu0 %v774
        %v1007 = vpop.f32.mrf.mxu0
        %v1008 = vadd.f32 %v394, %v1007
        %v1009 = vpop.f32.mrf.mxu0
        %v1010 = vadd.f32 %v394, %v1009
        %1011 = vmatmul.bf16.gmra.mxu0 %v777
        %v1012 = vpop.f32.mrf.mxu0
        %v1013 = vadd.f32 %v394, %v1012
        %v1014 = vpop.f32.mrf.mxu0
        %v1015 = vadd.f32 %v394, %v1014
        %1016 = vmatmul.bf16.gmra.mxu0 %v780
        %v1017 = vpop.f32.mrf.mxu0
        %v1018 = vadd.f32 %v394, %v1017
        %v1019 = vpop.f32.mrf.mxu0
        %v1020 = vadd.f32 %v394, %v1019
        %1021 = vmatmul.bf16.gmra.mxu0 %v783
        %v1022 = vpop.f32.mrf.mxu0
        %v1023 = vadd.f32 %v394, %v1022
        %v1024 = vpop.f32.mrf.mxu0
        %v1025 = vadd.f32 %v394, %v1024
        %1026 = vmatmul.bf16.gmra.mxu0 %v786
        %v1027 = vpop.f32.mrf.mxu0
        %v1028 = vadd.f32 %v394, %v1027
        %v1029 = vpop.f32.mrf.mxu0
        %v1030 = vadd.f32 %v394, %v1029
        %1031 = vmatmul.bf16.gmra.mxu0 %v789
        %v1032 = vpop.f32.mrf.mxu0
        %v1033 = vadd.f32 %v394, %v1032
        %v1034 = vpop.f32.mrf.mxu0
        %v1035 = vadd.f32 %v394, %v1034
        %1036 = vmatmul.bf16.gmra.mxu0 %v792
        %v1037 = vpop.f32.mrf.mxu0
        %v1038 = vadd.f32 %v394, %v1037
        %v1039 = vpop.f32.mrf.mxu0
        %v1040 = vadd.f32 %v394, %v1039
        %1041 = vmatmul.bf16.gmra.mxu0 %v795
        %v1042 = vpop.f32.mrf.mxu0
        %v1043 = vadd.f32 %v394, %v1042
        %v1044 = vpop.f32.mrf.mxu0
        %v1045 = vadd.f32 %v394, %v1044
        %1046 = vmatmul.bf16.gmra.mxu0 %v798
        %v1047 = vpop.f32.mrf.mxu0
        %v1048 = vadd.f32 %v394, %v1047
        %v1049 = vpop.f32.mrf.mxu0
        %v1050 = vadd.f32 %v394, %v1049
        %1051 = vmatmul.bf16.gmra.mxu0 %v801
        %v1052 = vpop.f32.mrf.mxu0
        %v1053 = vadd.f32 %v394, %v1052
        %v1054 = vpop.f32.mrf.mxu0
        %v1055 = vadd.f32 %v394, %v1054
        %1056 = vmatmul.bf16.gmra.mxu0 %v804
        %v1057 = vpop.f32.mrf.mxu0
        %v1058 = vadd.f32 %v394, %v1057
        %v1059 = vpop.f32.mrf.mxu0
        %v1060 = vadd.f32 %v394, %v1059
        %1061 = vmatmul.bf16.gmra.mxu0 %v807
        %v1062 = vpop.f32.mrf.mxu0
        %v1063 = vadd.f32 %v394, %v1062
        %v1064 = vpop.f32.mrf.mxu0
        %v1065 = vadd.f32 %v394, %v1064
        %1066 = vmatmul.bf16.gmra.mxu0 %v810
        %v1067 = vpop.f32.mrf.mxu0
        %v1068 = vadd.f32 %v394, %v1067
        %v1069 = vpop.f32.mrf.mxu0
        %v1070 = vadd.f32 %v394, %v1069
        %1071 = vmatmul.bf16.gmra.mxu0 %v813
        %v1072 = vpop.f32.mrf.mxu0
        %v1073 = vadd.f32 %v394, %v1072
        %v1074 = vpop.f32.mrf.mxu0
        %v1075 = vadd.f32 %v394, %v1074
        %1076 = vmatmul.bf16.gmra.mxu0 %v816
        %v1077 = vpop.f32.mrf.mxu0
        %v1078 = vadd.f32 %v394, %v1077
        %v1079 = vpop.f32.mrf.mxu0
        %v1080 = vadd.f32 %v394, %v1079
        %1081 = vmatmul.bf16.gmra.mxu0 %v819
        %v1082 = vpop.f32.mrf.mxu0
        %v1083 = vadd.f32 %v394, %v1082
        %v1084 = vpop.f32.mrf.mxu0
        %v1085 = vadd.f32 %v394, %v1084
        %1086 = vmatmul.bf16.gmra.mxu0 %v822
        %v1087 = vpop.f32.mrf.mxu0
        %v1088 = vadd.f32 %v394, %v1087
        %v1089 = vpop.f32.mrf.mxu0
        %v1090 = vadd.f32 %v394, %v1089
        %1091 = vmatmul.bf16.gmra.mxu0 %v825
        %v1092 = vpop.f32.mrf.mxu0
        %v1093 = vadd.f32 %v394, %v1092
        %v1094 = vpop.f32.mrf.mxu0
        %v1095 = vadd.f32 %v394, %v1094
        %1096 = vmatmul.bf16.gmra.mxu0 %v828
        %v1097 = vpop.f32.mrf.mxu0
        %v1098 = vadd.f32 %v394, %v1097
        %v1099 = vpop.f32.mrf.mxu0
        %v1100 = vadd.f32 %v394, %v1099
        %1101 = vmatmul.bf16.gmra.mxu0 %v831
        %v1102 = vpop.f32.mrf.mxu0
        %v1103 = vadd.f32 %v394, %v1102
        %v1104 = vpop.f32.mrf.mxu0
        %v1105 = vadd.f32 %v394, %v1104
        %1106 = vmatmul.bf16.gmra.mxu0 %v834
        %v1107 = vpop.f32.mrf.mxu0
        %v1108 = vadd.f32 %v394, %v1107
        %v1109 = vpop.f32.mrf.mxu0
        %v1110 = vadd.f32 %v394, %v1109
        %1111 = vmatmul.bf16.gmra.mxu0 %v837
        %v1112 = vpop.f32.mrf.mxu0
        %v1113 = vadd.f32 %v394, %v1112
        %v1114 = vpop.f32.mrf.mxu0
        %v1115 = vadd.f32 %v394, %v1114
        %1116 = vmatmul.bf16.gmra.mxu0 %v840
        %v1117 = vpop.f32.mrf.mxu0
        %v1118 = vadd.f32 %v394, %v1117
        %v1119 = vpop.f32.mrf.mxu0
        %v1120 = vadd.f32 %v394, %v1119
        %1121 = vmatmul.bf16.gmra.mxu0 %v843
        %v1122 = vpop.f32.mrf.mxu0
        %v1123 = vadd.f32 %v394, %v1122
        %v1124 = vpop.f32.mrf.mxu0
        %v1125 = vadd.f32 %v394, %v1124
        %1126 = vmatmul.bf16.gmra.mxu0 %v846
        %v1127 = vpop.f32.mrf.mxu0
        %v1128 = vadd.f32 %v394, %v1127
        %v1129 = vpop.f32.mrf.mxu0
        %v1130 = vadd.f32 %v394, %v1129
        %1131 = vmatmul.bf16.gmra.mxu0 %v849
        %v1132 = vpop.f32.mrf.mxu0
        %v1133 = vadd.f32 %v394, %v1132
        %v1134 = vpop.f32.mrf.mxu0
        %v1135 = vadd.f32 %v394, %v1134
        %1136 = vmatmul.bf16.gmra.mxu0 %v852
        %v1137 = vpop.f32.mrf.mxu0
        %v1138 = vadd.f32 %v394, %v1137
        %v1139 = vpop.f32.mrf.mxu0
        %v1140 = vadd.f32 %v394, %v1139
        %1141 = vmatmul.bf16.gmra.mxu0 %v855
        %v1142 = vpop.f32.mrf.mxu0
        %v1143 = vadd.f32 %v394, %v1142
        %v1144 = vpop.f32.mrf.mxu0
        %v1145 = vadd.f32 %v394, %v1144
        %1146 = vmatmul.bf16.gmra.mxu0 %v858
        %v1147 = vpop.f32.mrf.mxu0
        %v1148 = vadd.f32 %v394, %v1147
        %v1149 = vpop.f32.mrf.mxu0
        %v1150 = vadd.f32 %v394, %v1149
        %1151 = vmatmul.bf16.gmra.mxu0 %v861
        %v1152 = vpop.f32.mrf.mxu0
        %v1153 = vadd.f32 %v394, %v1152
        %v1154 = vpop.f32.mrf.mxu0
        %v1155 = vadd.f32 %v394, %v1154
        %1156 = vmatmul.bf16.gmra.mxu0 %v864
        %v1157 = vpop.f32.mrf.mxu0
        %v1158 = vadd.f32 %v394, %v1157
        %v1159 = vpop.f32.mrf.mxu0
        %v1160 = vadd.f32 %v394, %v1159
        %1161 = vmatmul.bf16.gmra.mxu0 %v867
        %v1162 = vpop.f32.mrf.mxu0
        %v1163 = vadd.f32 %v394, %v1162
        %v1164 = vpop.f32.mrf.mxu0
        %v1165 = vadd.f32 %v394, %v1164
        %1166 = vmatmul.bf16.gmra.mxu0 %v870
        %v1167 = vpop.f32.mrf.mxu0
        %v1168 = vadd.f32 %v394, %v1167
        %v1169 = vpop.f32.mrf.mxu0
        %v1170 = vadd.f32 %v394, %v1169
        %1171 = vmatmul.bf16.gmra.mxu0 %v873
        %v1172 = vpop.f32.mrf.mxu0
        %v1173 = vadd.f32 %v394, %v1172
        %v1174 = vpop.f32.mrf.mxu0
        %v1175 = vadd.f32 %v394, %v1174
        %1176 = vmatmul.bf16.gmra.mxu0 %v876
        %v1177 = vpop.f32.mrf.mxu0
        %v1178 = vadd.f32 %v394, %v1177
        %v1179 = vpop.f32.mrf.mxu0
        %v1180 = vadd.f32 %v394, %v1179
        %1181 = vmatmul.bf16.gmra.mxu0 %v879
        %v1182 = vpop.f32.mrf.mxu0
        %v1183 = vadd.f32 %v394, %v1182
        %v1184 = vpop.f32.mrf.mxu0
        %v1185 = vadd.f32 %v394, %v1184
        %1186 = vmatmul.bf16.gmra.mxu0 %v882
        %v1187 = vpop.f32.mrf.mxu0
        %v1188 = vadd.f32 %v394, %v1187
        %v1189 = vpop.f32.mrf.mxu0
        %v1190 = vadd.f32 %v394, %v1189
        %1191 = vmatmul.bf16.gmra.mxu0 %v885
        %v1192 = vpop.f32.mrf.mxu0
        %v1193 = vadd.f32 %v394, %v1192
        %v1194 = vpop.f32.mrf.mxu0
        %v1195 = vadd.f32 %v394, %v1194
        %1196 = vmatmul.bf16.gmra.mxu0 %v888
        %v1197 = vpop.f32.mrf.mxu0
        %v1198 = vadd.f32 %v394, %v1197
        %v1199 = vpop.f32.mrf.mxu0
        %v1200 = vadd.f32 %v394, %v1199
        %1201 = vmatmul.bf16.gmra.mxu0 %v891
        %v1202 = vpop.f32.mrf.mxu0
        %v1203 = vadd.f32 %v394, %v1202
        %v1204 = vpop.f32.mrf.mxu0
        %v1205 = vadd.f32 %v394, %v1204
        %1206 = vmatmul.bf16.gmra.mxu0 %v894
        %v1207 = vpop.f32.mrf.mxu0
        %v1208 = vadd.f32 %v394, %v1207
        %v1209 = vpop.f32.mrf.mxu0
        %v1210 = vadd.f32 %v394, %v1209
        %1211 = vmatmul.bf16.gmra.mxu0 %v897
        %v1212 = vpop.f32.mrf.mxu0
        %v1213 = vadd.f32 %v394, %v1212
        %v1214 = vpop.f32.mrf.mxu0
        %v1215 = vadd.f32 %v394, %v1214
        %1216 = vmatmul.bf16.gmra.mxu0 %v900
        %v1217 = vpop.f32.mrf.mxu0
        %v1218 = vadd.f32 %v394, %v1217
        %v1219 = vpop.f32.mrf.mxu0
        %v1220 = vadd.f32 %v394, %v1219
        %1221 = vmatmul.bf16.gmra.mxu0 %v903
        %v1222 = vpop.f32.mrf.mxu0
        %v1223 = vadd.f32 %v394, %v1222
        %v1224 = vpop.f32.mrf.mxu0
        %v1225 = vadd.f32 %v394, %v1224
        %1226 = vmatmul.bf16.gmra.mxu0 %v906
        %v1227 = vpop.f32.mrf.mxu0
        %v1228 = vadd.f32 %v394, %v1227
        %v1229 = vpop.f32.mrf.mxu0
        %v1230 = vadd.f32 %v394, %v1229
        %1231 = vmatmul.bf16.gmra.mxu0 %v909
        %v1232 = vpop.f32.mrf.mxu0
        %v1233 = vadd.f32 %v394, %v1232
        %v1234 = vpop.f32.mrf.mxu0
        %v1235 = vadd.f32 %v394, %v1234
        %1236 = vmatmul.bf16.gmra.mxu0 %v912
        %v1237 = vpop.f32.mrf.mxu0
        %v1238 = vadd.f32 %v394, %v1237
        %v1239 = vpop.f32.mrf.mxu0
        %v1240 = vadd.f32 %v394, %v1239
        %1241 = vmatmul.bf16.gmra.mxu0 %v915
        %v1242 = vpop.f32.mrf.mxu0
        %v1243 = vadd.f32 %v394, %v1242
        %v1244 = vpop.f32.mrf.mxu0
        %v1245 = vadd.f32 %v394, %v1244
        %1246 = vmatmul.bf16.gmra.mxu0 %v918
        %v1247 = vpop.f32.mrf.mxu0
        %v1248 = vadd.f32 %v394, %v1247
        %v1249 = vpop.f32.mrf.mxu0
        %v1250 = vadd.f32 %v394, %v1249
        %1251 = vmatmul.bf16.gmra.mxu0 %v921
        %v1252 = vpop.f32.mrf.mxu0
        %v1253 = vadd.f32 %v394, %v1252
        %v1254 = vpop.f32.mrf.mxu0
        %v1255 = vadd.f32 %v394, %v1254
        %1256 = vmatmul.bf16.gmra.mxu0 %v924
        %v1257 = vpop.f32.mrf.mxu0
        %v1258 = vadd.f32 %v394, %v1257
        %v1259 = vpop.f32.mrf.mxu0
        %v1260 = vadd.f32 %v394, %v1259
        %1261 = vdwg.mxu0
        %v1262 = vmax.f32 %v943, 0.0
        %v1263 = vmax.f32 %v945, 0.0
        %v1264 = vmax.f32 %v948, 0.0
        %v1265 = vmax.f32 %v950, 0.0
        %v1266 = vmax.f32 %v953, 0.0
        %v1267 = vmax.f32 %v955, 0.0
        %v1268 = vmax.f32 %v958, 0.0
        %v1269 = vmax.f32 %v960, 0.0
        %v1270 = vmax.f32 %v963, 0.0
        %v1271 = vmax.f32 %v965, 0.0
        %v1272 = vmax.f32 %v968, 0.0
        %v1273 = vmax.f32 %v970, 0.0
        %v1274 = vmax.f32 %v973, 0.0
        %v1275 = vmax.f32 %v975, 0.0
        %v1276 = vmax.f32 %v978, 0.0
        %v1277 = vmax.f32 %v980, 0.0
        %v1278 = vmax.f32 %v983, 0.0
        %v1279 = vmax.f32 %v985, 0.0
        %v1280 = vmax.f32 %v988, 0.0
        %v1281 = vmax.f32 %v990, 0.0
        %v1282 = vmax.f32 %v993, 0.0
        %v1283 = vmax.f32 %v995, 0.0
        %v1284 = vmax.f32 %v998, 0.0
        %v1285 = vmax.f32 %v1000, 0.0
        %v1286 = vmax.f32 %v1003, 0.0
        %v1287 = vmax.f32 %v1005, 0.0
        %v1288 = vmax.f32 %v1008, 0.0
        %v1289 = vmax.f32 %v1010, 0.0
        %v1290 = vmax.f32 %v1013, 0.0
        %v1291 = vmax.f32 %v1015, 0.0
        %v1292 = vmax.f32 %v1018, 0.0
        %v1293 = vmax.f32 %v1020, 0.0
        %v1294 = vmax.f32 %v1023, 0.0
        %v1295 = vmax.f32 %v1025, 0.0
        %v1296 = vmax.f32 %v1028, 0.0
        %v1297 = vmax.f32 %v1030, 0.0
        %v1298 = vmax.f32 %v1033, 0.0
        %v1299 = vmax.f32 %v1035, 0.0
        %v1300 = vmax.f32 %v1038, 0.0
        %v1301 = vmax.f32 %v1040, 0.0
        %v1302 = vmax.f32 %v1043, 0.0
        %v1303 = vmax.f32 %v1045, 0.0
        %v1304 = vmax.f32 %v1048, 0.0
        %v1305 = vmax.f32 %v1050, 0.0
        %v1306 = vmax.f32 %v1053, 0.0
        %v1307 = vmax.f32 %v1055, 0.0
        %v1308 = vmax.f32 %v1058, 0.0
        %v1309 = vmax.f32 %v1060, 0.0
        %v1310 = vmax.f32 %v1063, 0.0
        %v1311 = vmax.f32 %v1065, 0.0
        %v1312 = vmax.f32 %v1068, 0.0
        %v1313 = vmax.f32 %v1070, 0.0
        %v1314 = vmax.f32 %v1073, 0.0
        %v1315 = vmax.f32 %v1075, 0.0
        %v1316 = vmax.f32 %v1078, 0.0
        %v1317 = vmax.f32 %v1080, 0.0
        %v1318 = vmax.f32 %v1083, 0.0
        %v1319 = vmax.f32 %v1085, 0.0
        %v1320 = vmax.f32 %v1088, 0.0
        %v1321 = vmax.f32 %v1090, 0.0
        %v1322 = vmax.f32 %v1093, 0.0
        %v1323 = vmax.f32 %v1095, 0.0
        %v1324 = vmax.f32 %v1098, 0.0
        %v1325 = vmax.f32 %v1100, 0.0
        %v1326 = vmax.f32 %v1103, 0.0
        %v1327 = vmax.f32 %v1105, 0.0
        %v1328 = vmax.f32 %v1108, 0.0
        %v1329 = vmax.f32 %v1110, 0.0
        %v1330 = vmax.f32 %v1113, 0.0
        %v1331 = vmax.f32 %v1115, 0.0
        %v1332 = vmax.f32 %v1118, 0.0
        %v1333 = vmax.f32 %v1120, 0.0
        %v1334 = vmax.f32 %v1123, 0.0
        %v1335 = vmax.f32 %v1125, 0.0
        %v1336 = vmax.f32 %v1128, 0.0
        %v1337 = vmax.f32 %v1130, 0.0
        %v1338 = vmax.f32 %v1133, 0.0
        %v1339 = vmax.f32 %v1135, 0.0
        %v1340 = vmax.f32 %v1138, 0.0
        %v1341 = vmax.f32 %v1140, 0.0
        %v1342 = vmax.f32 %v1143, 0.0
        %v1343 = vmax.f32 %v1145, 0.0
        %v1344 = vmax.f32 %v1148, 0.0
        %v1345 = vmax.f32 %v1150, 0.0
        %v1346 = vmax.f32 %v1153, 0.0
        %v1347 = vmax.f32 %v1155, 0.0
        %v1348 = vmax.f32 %v1158, 0.0
        %v1349 = vmax.f32 %v1160, 0.0
        %v1350 = vmax.f32 %v1163, 0.0
        %v1351 = vmax.f32 %v1165, 0.0
        %v1352 = vmax.f32 %v1168, 0.0
        %v1353 = vmax.f32 %v1170, 0.0
        %v1354 = vmax.f32 %v1173, 0.0
        %v1355 = vmax.f32 %v1175, 0.0
        %v1356 = vmax.f32 %v1178, 0.0
        %v1357 = vmax.f32 %v1180, 0.0
        %v1358 = vmax.f32 %v1183, 0.0
        %v1359 = vmax.f32 %v1185, 0.0
        %v1360 = vmax.f32 %v1188, 0.0
        %v1361 = vmax.f32 %v1190, 0.0
        %v1362 = vmax.f32 %v1193, 0.0
        %v1363 = vmax.f32 %v1195, 0.0
        %v1364 = vmax.f32 %v1198, 0.0
        %v1365 = vmax.f32 %v1200, 0.0
        %v1366 = vmax.f32 %v1203, 0.0
        %v1367 = vmax.f32 %v1205, 0.0
        %v1368 = vmax.f32 %v1208, 0.0
        %v1369 = vmax.f32 %v1210, 0.0
        %v1370 = vmax.f32 %v1213, 0.0
        %v1371 = vmax.f32 %v1215, 0.0
        %v1372 = vmax.f32 %v1218, 0.0
        %v1373 = vmax.f32 %v1220, 0.0
        %v1374 = vmax.f32 %v1223, 0.0
        %v1375 = vmax.f32 %v1225, 0.0
        %v1376 = vmax.f32 %v1228, 0.0
        %v1377 = vmax.f32 %v1230, 0.0
        %v1378 = vmax.f32 %v1233, 0.0
        %v1379 = vmax.f32 %v1235, 0.0
        %v1380 = vmax.f32 %v1238, 0.0
        %v1381 = vmax.f32 %v1240, 0.0
        %v1382 = vmax.f32 %v1243, 0.0
        %v1383 = vmax.f32 %v1245, 0.0
        %v1384 = vmax.f32 %v1248, 0.0
        %v1385 = vmax.f32 %v1250, 0.0
        %v1386 = vmax.f32 %v1253, 0.0
        %v1387 = vmax.f32 %v1255, 0.0
        %v1388 = vmax.f32 %v1258, 0.0
        %v1389 = vmax.f32 %v1260, 0.0
        %v1390 = vpack.c.bf16 %v1263, %v1262
        %v1391 = vpack.c.bf16 %v1265, %v1264
        %v1392 = vpack.c.bf16 %v1267, %v1266
        %v1393 = vpack.c.bf16 %v1269, %v1268
        %v1394 = vpack.c.bf16 %v1271, %v1270
        %v1395 = vpack.c.bf16 %v1273, %v1272
        %v1396 = vpack.c.bf16 %v1275, %v1274
        %v1397 = vpack.c.bf16 %v1277, %v1276
        %v1398 = vpack.c.bf16 %v1279, %v1278
        %v1399 = vpack.c.bf16 %v1281, %v1280
        %v1400 = vpack.c.bf16 %v1283, %v1282
        %v1401 = vpack.c.bf16 %v1285, %v1284
        %v1402 = vpack.c.bf16 %v1287, %v1286
        %v1403 = vpack.c.bf16 %v1289, %v1288
        %v1404 = vpack.c.bf16 %v1291, %v1290
        %v1405 = vpack.c.bf16 %v1293, %v1292
        %v1406 = vpack.c.bf16 %v1295, %v1294
        %v1407 = vpack.c.bf16 %v1297, %v1296
        %v1408 = vpack.c.bf16 %v1299, %v1298
        %v1409 = vpack.c.bf16 %v1301, %v1300
        %v1410 = vpack.c.bf16 %v1303, %v1302
        %v1411 = vpack.c.bf16 %v1305, %v1304
        %v1412 = vpack.c.bf16 %v1307, %v1306
        %v1413 = vpack.c.bf16 %v1309, %v1308
        %v1414 = vpack.c.bf16 %v1311, %v1310
        %v1415 = vpack.c.bf16 %v1313, %v1312
        %v1416 = vpack.c.bf16 %v1315, %v1314
        %v1417 = vpack.c.bf16 %v1317, %v1316
        %v1418 = vpack.c.bf16 %v1319, %v1318
        %v1419 = vpack.c.bf16 %v1321, %v1320
        %v1420 = vpack.c.bf16 %v1323, %v1322
        %v1421 = vpack.c.bf16 %v1325, %v1324
        %v1422 = vpack.c.bf16 %v1327, %v1326
        %v1423 = vpack.c.bf16 %v1329, %v1328
        %v1424 = vpack.c.bf16 %v1331, %v1330
        %v1425 = vpack.c.bf16 %v1333, %v1332
        %v1426 = vpack.c.bf16 %v1335, %v1334
        %v1427 = vpack.c.bf16 %v1337, %v1336
        %v1428 = vpack.c.bf16 %v1339, %v1338
        %v1429 = vpack.c.bf16 %v1341, %v1340
        %v1430 = vpack.c.bf16 %v1343, %v1342
        %v1431 = vpack.c.bf16 %v1345, %v1344
        %v1432 = vpack.c.bf16 %v1347, %v1346
        %v1433 = vpack.c.bf16 %v1349, %v1348
        %v1434 = vpack.c.bf16 %v1351, %v1350
        %v1435 = vpack.c.bf16 %v1353, %v1352
        %v1436 = vpack.c.bf16 %v1355, %v1354
        %v1437 = vpack.c.bf16 %v1357, %v1356
        %v1438 = vpack.c.bf16 %v1359, %v1358
        %v1439 = vpack.c.bf16 %v1361, %v1360
        %v1440 = vpack.c.bf16 %v1363, %v1362
        %v1441 = vpack.c.bf16 %v1365, %v1364
        %v1442 = vpack.c.bf16 %v1367, %v1366
        %v1443 = vpack.c.bf16 %v1369, %v1368
        %v1444 = vpack.c.bf16 %v1371, %v1370
        %v1445 = vpack.c.bf16 %v1373, %v1372
        %v1446 = vpack.c.bf16 %v1375, %v1374
        %v1447 = vpack.c.bf16 %v1377, %v1376
        %v1448 = vpack.c.bf16 %v1379, %v1378
        %v1449 = vpack.c.bf16 %v1381, %v1380
        %v1450 = vpack.c.bf16 %v1383, %v1382
        %v1451 = vpack.c.bf16 %v1385, %v1384
        %v1452 = vpack.c.bf16 %v1387, %v1386
        %v1453 = vpack.c.bf16 %v1389, %v1388
        %v1454 = vld [vmem:[%s3] sm:$0xf]
        %v1455 = vld [vmem:[%s3 + $0x4] sm:$0xf]
        %v1456 = vld [vmem:[%s3 + $0x8] sm:$0xf]
        %v1457 = vld [vmem:[%s3 + $0xc] sm:$0xf]
        %v1458 = vld [vmem:[%s3 + $0x10] sm:$0xf]
        %v1459 = vld [vmem:[%s3 + $0x14] sm:$0xf]
        %v1460 = vld [vmem:[%s3 + $0x18] sm:$0xf]
        %v1461 = vld [vmem:[%s3 + $0x1c] sm:$0xf]
        %v1462 = vld [vmem:[%s4] sm:$0x1]
        %v1464 = vperm.slane %v1462, 0
        %v1474 = vunpack.c.l.b16 %v1454
        %v1475 = vunpack.c.l.b16 %v1455
        %v1476 = vunpack.c.l.b16 %v1456
        %v1477 = vunpack.c.l.b16 %v1457
        %v1478 = vunpack.c.l.b16 %v1458
        %v1479 = vunpack.c.l.b16 %v1459
        %v1480 = vunpack.c.l.b16 %v1460
        %v1481 = vunpack.c.l.b16 %v1461
        %v1482 = vpack.c.b16 %v1475, %v1474
        %v1483 = vpack.c.b16 %v1477, %v1476
        %v1484 = vpack.c.b16 %v1479, %v1478
        %v1485 = vpack.c.b16 %v1481, %v1480
        %vm1490 = vcmask 523264
        %v1492 = vsel %vm1490, %v1390, 0
        %v1495 = vsel %vm1490, %v1391, 0
        %v1498 = vsel %vm1490, %v1392, 0
        %v1501 = vsel %vm1490, %v1393, 0
        %v1504 = vsel %vm1490, %v1394, 0
        %v1507 = vsel %vm1490, %v1395, 0
        %v1510 = vsel %vm1490, %v1396, 0
        %v1513 = vsel %vm1490, %v1397, 0
        %v1516 = vsel %vm1490, %v1398, 0
        %v1519 = vsel %vm1490, %v1399, 0
        %v1522 = vsel %vm1490, %v1400, 0
        %v1525 = vsel %vm1490, %v1401, 0
        %v1528 = vsel %vm1490, %v1402, 0
        %v1531 = vsel %vm1490, %v1403, 0
        %v1534 = vsel %vm1490, %v1404, 0
        %v1537 = vsel %vm1490, %v1405, 0
        %v1540 = vsel %vm1490, %v1406, 0
        %v1543 = vsel %vm1490, %v1407, 0
        %v1546 = vsel %vm1490, %v1408, 0
        %v1549 = vsel %vm1490, %v1409, 0
        %v1552 = vsel %vm1490, %v1410, 0
        %v1555 = vsel %vm1490, %v1411, 0
        %v1558 = vsel %vm1490, %v1412, 0
        %v1561 = vsel %vm1490, %v1413, 0
        %v1564 = vsel %vm1490, %v1414, 0
        %v1567 = vsel %vm1490, %v1415, 0
        %v1570 = vsel %vm1490, %v1416, 0
        %v1573 = vsel %vm1490, %v1417, 0
        %v1576 = vsel %vm1490, %v1418, 0
        %v1579 = vsel %vm1490, %v1419, 0
        %v1582 = vsel %vm1490, %v1420, 0
        %v1585 = vsel %vm1490, %v1421, 0
        %v1588 = vsel %vm1490, %v1422, 0
        %v1591 = vsel %vm1490, %v1423, 0
        %v1594 = vsel %vm1490, %v1424, 0
        %v1597 = vsel %vm1490, %v1425, 0
        %v1600 = vsel %vm1490, %v1426, 0
        %v1603 = vsel %vm1490, %v1427, 0
        %v1606 = vsel %vm1490, %v1428, 0
        %v1609 = vsel %vm1490, %v1429, 0
        %v1612 = vsel %vm1490, %v1430, 0
        %v1615 = vsel %vm1490, %v1431, 0
        %v1618 = vsel %vm1490, %v1432, 0
        %v1621 = vsel %vm1490, %v1433, 0
        %v1624 = vsel %vm1490, %v1434, 0
        %v1627 = vsel %vm1490, %v1435, 0
        %v1630 = vsel %vm1490, %v1436, 0
        %v1633 = vsel %vm1490, %v1437, 0
        %v1636 = vsel %vm1490, %v1438, 0
        %v1639 = vsel %vm1490, %v1439, 0
        %v1642 = vsel %vm1490, %v1440, 0
        %v1645 = vsel %vm1490, %v1441, 0
        %v1648 = vsel %vm1490, %v1442, 0
        %v1651 = vsel %vm1490, %v1443, 0
        %v1654 = vsel %vm1490, %v1444, 0
        %v1657 = vsel %vm1490, %v1445, 0
        %v1660 = vsel %vm1490, %v1446, 0
        %v1663 = vsel %vm1490, %v1447, 0
        %v1666 = vsel %vm1490, %v1448, 0
        %v1669 = vsel %vm1490, %v1449, 0
        %v1672 = vsel %vm1490, %v1450, 0
        %v1675 = vsel %vm1490, %v1451, 0
        %v1678 = vsel %vm1490, %v1452, 0
        %v1681 = vsel %vm1490, %v1453, 0
        %1683 = vmatpush.bf16.msra.mxu0 0
        %1684 = vmatpush.bf16.msra.mxu0 0
        %1685 = vmatpush.bf16.msra.mxu0 0
        %1686 = vmatpush.bf16.msra.mxu0 0
        %1687 = vmatpush.bf16.msra.mxu0 %v1485
        %1688 = vmatpush.bf16.msra.mxu0 %v1484
        %1689 = vmatpush.bf16.msra.mxu0 %v1483
        %1690 = vmatpush.bf16.msra.mxu0 %v1482
        %1691 = vmatmul.bf16.gmra.mxu0 %v1492
        %v1692 = vpop.f32.mrf.mxu0
        %v1693 = vadd.f32 %v1464, %v1692
        %v1694 = vpop.f32.mrf.mxu0
        %v1695 = vadd.f32 %v1464, %v1694
        %1696 = vmatmul.bf16.gmra.mxu0 %v1495
        %v1697 = vpop.f32.mrf.mxu0
        %v1698 = vadd.f32 %v1464, %v1697
        %v1699 = vpop.f32.mrf.mxu0
        %v1700 = vadd.f32 %v1464, %v1699
        %1701 = vmatmul.bf16.gmra.mxu0 %v1498
        %v1702 = vpop.f32.mrf.mxu0
        %v1703 = vadd.f32 %v1464, %v1702
        %v1704 = vpop.f32.mrf.mxu0
        %v1705 = vadd.f32 %v1464, %v1704
        %1706 = vmatmul.bf16.gmra.mxu0 %v1501
        %v1707 = vpop.f32.mrf.mxu0
        %v1708 = vadd.f32 %v1464, %v1707
        %v1709 = vpop.f32.mrf.mxu0
        %v1710 = vadd.f32 %v1464, %v1709
        %1711 = vmatmul.bf16.gmra.mxu0 %v1504
        %v1712 = vpop.f32.mrf.mxu0
        %v1713 = vadd.f32 %v1464, %v1712
        %v1714 = vpop.f32.mrf.mxu0
        %v1715 = vadd.f32 %v1464, %v1714
        %1716 = vmatmul.bf16.gmra.mxu0 %v1507
        %v1717 = vpop.f32.mrf.mxu0
        %v1718 = vadd.f32 %v1464, %v1717
        %v1719 = vpop.f32.mrf.mxu0
        %v1720 = vadd.f32 %v1464, %v1719
        %1721 = vmatmul.bf16.gmra.mxu0 %v1510
        %v1722 = vpop.f32.mrf.mxu0
        %v1723 = vadd.f32 %v1464, %v1722
        %v1724 = vpop.f32.mrf.mxu0
        %v1725 = vadd.f32 %v1464, %v1724
        %1726 = vmatmul.bf16.gmra.mxu0 %v1513
        %v1727 = vpop.f32.mrf.mxu0
        %v1728 = vadd.f32 %v1464, %v1727
        %v1729 = vpop.f32.mrf.mxu0
        %v1730 = vadd.f32 %v1464, %v1729
        %1731 = vmatmul.bf16.gmra.mxu0 %v1516
        %v1732 = vpop.f32.mrf.mxu0
        %v1733 = vadd.f32 %v1464, %v1732
        %v1734 = vpop.f32.mrf.mxu0
        %v1735 = vadd.f32 %v1464, %v1734
        %1736 = vmatmul.bf16.gmra.mxu0 %v1519
        %v1737 = vpop.f32.mrf.mxu0
        %v1738 = vadd.f32 %v1464, %v1737
        %v1739 = vpop.f32.mrf.mxu0
        %v1740 = vadd.f32 %v1464, %v1739
        %1741 = vmatmul.bf16.gmra.mxu0 %v1522
        %v1742 = vpop.f32.mrf.mxu0
        %v1743 = vadd.f32 %v1464, %v1742
        %v1744 = vpop.f32.mrf.mxu0
        %v1745 = vadd.f32 %v1464, %v1744
        %1746 = vmatmul.bf16.gmra.mxu0 %v1525
        %v1747 = vpop.f32.mrf.mxu0
        %v1748 = vadd.f32 %v1464, %v1747
        %v1749 = vpop.f32.mrf.mxu0
        %v1750 = vadd.f32 %v1464, %v1749
        %1751 = vmatmul.bf16.gmra.mxu0 %v1528
        %v1752 = vpop.f32.mrf.mxu0
        %v1753 = vadd.f32 %v1464, %v1752
        %v1754 = vpop.f32.mrf.mxu0
        %v1755 = vadd.f32 %v1464, %v1754
        %1756 = vmatmul.bf16.gmra.mxu0 %v1531
        %v1757 = vpop.f32.mrf.mxu0
        %v1758 = vadd.f32 %v1464, %v1757
        %v1759 = vpop.f32.mrf.mxu0
        %v1760 = vadd.f32 %v1464, %v1759
        %1761 = vmatmul.bf16.gmra.mxu0 %v1534
        %v1762 = vpop.f32.mrf.mxu0
        %v1763 = vadd.f32 %v1464, %v1762
        %v1764 = vpop.f32.mrf.mxu0
        %v1765 = vadd.f32 %v1464, %v1764
        %1766 = vmatmul.bf16.gmra.mxu0 %v1537
        %v1767 = vpop.f32.mrf.mxu0
        %v1768 = vadd.f32 %v1464, %v1767
        %v1769 = vpop.f32.mrf.mxu0
        %v1770 = vadd.f32 %v1464, %v1769
        %1771 = vmatmul.bf16.gmra.mxu0 %v1540
        %v1772 = vpop.f32.mrf.mxu0
        %v1773 = vadd.f32 %v1464, %v1772
        %v1774 = vpop.f32.mrf.mxu0
        %v1775 = vadd.f32 %v1464, %v1774
        %1776 = vmatmul.bf16.gmra.mxu0 %v1543
        %v1777 = vpop.f32.mrf.mxu0
        %v1778 = vadd.f32 %v1464, %v1777
        %v1779 = vpop.f32.mrf.mxu0
        %v1780 = vadd.f32 %v1464, %v1779
        %1781 = vmatmul.bf16.gmra.mxu0 %v1546
        %v1782 = vpop.f32.mrf.mxu0
        %v1783 = vadd.f32 %v1464, %v1782
        %v1784 = vpop.f32.mrf.mxu0
        %v1785 = vadd.f32 %v1464, %v1784
        %1786 = vmatmul.bf16.gmra.mxu0 %v1549
        %v1787 = vpop.f32.mrf.mxu0
        %v1788 = vadd.f32 %v1464, %v1787
        %v1789 = vpop.f32.mrf.mxu0
        %v1790 = vadd.f32 %v1464, %v1789
        %1791 = vmatmul.bf16.gmra.mxu0 %v1552
        %v1792 = vpop.f32.mrf.mxu0
        %v1793 = vadd.f32 %v1464, %v1792
        %v1794 = vpop.f32.mrf.mxu0
        %v1795 = vadd.f32 %v1464, %v1794
        %1796 = vmatmul.bf16.gmra.mxu0 %v1555
        %v1797 = vpop.f32.mrf.mxu0
        %v1798 = vadd.f32 %v1464, %v1797
        %v1799 = vpop.f32.mrf.mxu0
        %v1800 = vadd.f32 %v1464, %v1799
        %1801 = vmatmul.bf16.gmra.mxu0 %v1558
        %v1802 = vpop.f32.mrf.mxu0
        %v1803 = vadd.f32 %v1464, %v1802
        %v1804 = vpop.f32.mrf.mxu0
        %v1805 = vadd.f32 %v1464, %v1804
        %1806 = vmatmul.bf16.gmra.mxu0 %v1561
        %v1807 = vpop.f32.mrf.mxu0
        %v1808 = vadd.f32 %v1464, %v1807
        %v1809 = vpop.f32.mrf.mxu0
        %v1810 = vadd.f32 %v1464, %v1809
        %1811 = vmatmul.bf16.gmra.mxu0 %v1564
        %v1812 = vpop.f32.mrf.mxu0
        %v1813 = vadd.f32 %v1464, %v1812
        %v1814 = vpop.f32.mrf.mxu0
        %v1815 = vadd.f32 %v1464, %v1814
        %1816 = vmatmul.bf16.gmra.mxu0 %v1567
        %v1817 = vpop.f32.mrf.mxu0
        %v1818 = vadd.f32 %v1464, %v1817
        %v1819 = vpop.f32.mrf.mxu0
        %v1820 = vadd.f32 %v1464, %v1819
        %1821 = vmatmul.bf16.gmra.mxu0 %v1570
        %v1822 = vpop.f32.mrf.mxu0
        %v1823 = vadd.f32 %v1464, %v1822
        %v1824 = vpop.f32.mrf.mxu0
        %v1825 = vadd.f32 %v1464, %v1824
        %1826 = vmatmul.bf16.gmra.mxu0 %v1573
        %v1827 = vpop.f32.mrf.mxu0
        %v1828 = vadd.f32 %v1464, %v1827
        %v1829 = vpop.f32.mrf.mxu0
        %v1830 = vadd.f32 %v1464, %v1829
        %1831 = vmatmul.bf16.gmra.mxu0 %v1576
        %v1832 = vpop.f32.mrf.mxu0
        %v1833 = vadd.f32 %v1464, %v1832
        %v1834 = vpop.f32.mrf.mxu0
        %v1835 = vadd.f32 %v1464, %v1834
        %1836 = vmatmul.bf16.gmra.mxu0 %v1579
        %v1837 = vpop.f32.mrf.mxu0
        %v1838 = vadd.f32 %v1464, %v1837
        %v1839 = vpop.f32.mrf.mxu0
        %v1840 = vadd.f32 %v1464, %v1839
        %1841 = vmatmul.bf16.gmra.mxu0 %v1582
        %v1842 = vpop.f32.mrf.mxu0
        %v1843 = vadd.f32 %v1464, %v1842
        %v1844 = vpop.f32.mrf.mxu0
        %v1845 = vadd.f32 %v1464, %v1844
        %1846 = vmatmul.bf16.gmra.mxu0 %v1585
        %v1847 = vpop.f32.mrf.mxu0
        %v1848 = vadd.f32 %v1464, %v1847
        %v1849 = vpop.f32.mrf.mxu0
        %v1850 = vadd.f32 %v1464, %v1849
        %1851 = vmatmul.bf16.gmra.mxu0 %v1588
        %v1852 = vpop.f32.mrf.mxu0
        %v1853 = vadd.f32 %v1464, %v1852
        %v1854 = vpop.f32.mrf.mxu0
        %v1855 = vadd.f32 %v1464, %v1854
        %1856 = vmatmul.bf16.gmra.mxu0 %v1591
        %v1857 = vpop.f32.mrf.mxu0
        %v1858 = vadd.f32 %v1464, %v1857
        %v1859 = vpop.f32.mrf.mxu0
        %v1860 = vadd.f32 %v1464, %v1859
        %1861 = vmatmul.bf16.gmra.mxu0 %v1594
        %v1862 = vpop.f32.mrf.mxu0
        %v1863 = vadd.f32 %v1464, %v1862
        %v1864 = vpop.f32.mrf.mxu0
        %v1865 = vadd.f32 %v1464, %v1864
        %1866 = vmatmul.bf16.gmra.mxu0 %v1597
        %v1867 = vpop.f32.mrf.mxu0
        %v1868 = vadd.f32 %v1464, %v1867
        %v1869 = vpop.f32.mrf.mxu0
        %v1870 = vadd.f32 %v1464, %v1869
        %1871 = vmatmul.bf16.gmra.mxu0 %v1600
        %v1872 = vpop.f32.mrf.mxu0
        %v1873 = vadd.f32 %v1464, %v1872
        %v1874 = vpop.f32.mrf.mxu0
        %v1875 = vadd.f32 %v1464, %v1874
        %1876 = vmatmul.bf16.gmra.mxu0 %v1603
        %v1877 = vpop.f32.mrf.mxu0
        %v1878 = vadd.f32 %v1464, %v1877
        %v1879 = vpop.f32.mrf.mxu0
        %v1880 = vadd.f32 %v1464, %v1879
        %1881 = vmatmul.bf16.gmra.mxu0 %v1606
        %v1882 = vpop.f32.mrf.mxu0
        %v1883 = vadd.f32 %v1464, %v1882
        %v1884 = vpop.f32.mrf.mxu0
        %v1885 = vadd.f32 %v1464, %v1884
        %1886 = vmatmul.bf16.gmra.mxu0 %v1609
        %v1887 = vpop.f32.mrf.mxu0
        %v1888 = vadd.f32 %v1464, %v1887
        %v1889 = vpop.f32.mrf.mxu0
        %v1890 = vadd.f32 %v1464, %v1889
        %1891 = vmatmul.bf16.gmra.mxu0 %v1612
        %v1892 = vpop.f32.mrf.mxu0
        %v1893 = vadd.f32 %v1464, %v1892
        %v1894 = vpop.f32.mrf.mxu0
        %v1895 = vadd.f32 %v1464, %v1894
        %1896 = vmatmul.bf16.gmra.mxu0 %v1615
        %v1897 = vpop.f32.mrf.mxu0
        %v1898 = vadd.f32 %v1464, %v1897
        %v1899 = vpop.f32.mrf.mxu0
        %v1900 = vadd.f32 %v1464, %v1899
        %1901 = vmatmul.bf16.gmra.mxu0 %v1618
        %v1902 = vpop.f32.mrf.mxu0
        %v1903 = vadd.f32 %v1464, %v1902
        %v1904 = vpop.f32.mrf.mxu0
        %v1905 = vadd.f32 %v1464, %v1904
        %1906 = vmatmul.bf16.gmra.mxu0 %v1621
        %v1907 = vpop.f32.mrf.mxu0
        %v1908 = vadd.f32 %v1464, %v1907
        %v1909 = vpop.f32.mrf.mxu0
        %v1910 = vadd.f32 %v1464, %v1909
        %1911 = vmatmul.bf16.gmra.mxu0 %v1624
        %v1912 = vpop.f32.mrf.mxu0
        %v1913 = vadd.f32 %v1464, %v1912
        %v1914 = vpop.f32.mrf.mxu0
        %v1915 = vadd.f32 %v1464, %v1914
        %1916 = vmatmul.bf16.gmra.mxu0 %v1627
        %v1917 = vpop.f32.mrf.mxu0
        %v1918 = vadd.f32 %v1464, %v1917
        %v1919 = vpop.f32.mrf.mxu0
        %v1920 = vadd.f32 %v1464, %v1919
        %1921 = vmatmul.bf16.gmra.mxu0 %v1630
        %v1922 = vpop.f32.mrf.mxu0
        %v1923 = vadd.f32 %v1464, %v1922
        %v1924 = vpop.f32.mrf.mxu0
        %v1925 = vadd.f32 %v1464, %v1924
        %1926 = vmatmul.bf16.gmra.mxu0 %v1633
        %v1927 = vpop.f32.mrf.mxu0
        %v1928 = vadd.f32 %v1464, %v1927
        %v1929 = vpop.f32.mrf.mxu0
        %v1930 = vadd.f32 %v1464, %v1929
        %1931 = vmatmul.bf16.gmra.mxu0 %v1636
        %v1932 = vpop.f32.mrf.mxu0
        %v1933 = vadd.f32 %v1464, %v1932
        %v1934 = vpop.f32.mrf.mxu0
        %v1935 = vadd.f32 %v1464, %v1934
        %1936 = vmatmul.bf16.gmra.mxu0 %v1639
        %v1937 = vpop.f32.mrf.mxu0
        %v1938 = vadd.f32 %v1464, %v1937
        %v1939 = vpop.f32.mrf.mxu0
        %v1940 = vadd.f32 %v1464, %v1939
        %1941 = vmatmul.bf16.gmra.mxu0 %v1642
        %v1942 = vpop.f32.mrf.mxu0
        %v1943 = vadd.f32 %v1464, %v1942
        %v1944 = vpop.f32.mrf.mxu0
        %v1945 = vadd.f32 %v1464, %v1944
        %1946 = vmatmul.bf16.gmra.mxu0 %v1645
        %v1947 = vpop.f32.mrf.mxu0
        %v1948 = vadd.f32 %v1464, %v1947
        %v1949 = vpop.f32.mrf.mxu0
        %v1950 = vadd.f32 %v1464, %v1949
        %1951 = vmatmul.bf16.gmra.mxu0 %v1648
        %v1952 = vpop.f32.mrf.mxu0
        %v1953 = vadd.f32 %v1464, %v1952
        %v1954 = vpop.f32.mrf.mxu0
        %v1955 = vadd.f32 %v1464, %v1954
        %1956 = vmatmul.bf16.gmra.mxu0 %v1651
        %v1957 = vpop.f32.mrf.mxu0
        %v1958 = vadd.f32 %v1464, %v1957
        %v1959 = vpop.f32.mrf.mxu0
        %v1960 = vadd.f32 %v1464, %v1959
        %1961 = vmatmul.bf16.gmra.mxu0 %v1654
        %v1962 = vpop.f32.mrf.mxu0
        %v1963 = vadd.f32 %v1464, %v1962
        %v1964 = vpop.f32.mrf.mxu0
        %v1965 = vadd.f32 %v1464, %v1964
        %1966 = vmatmul.bf16.gmra.mxu0 %v1657
        %v1967 = vpop.f32.mrf.mxu0
        %v1968 = vadd.f32 %v1464, %v1967
        %v1969 = vpop.f32.mrf.mxu0
        %v1970 = vadd.f32 %v1464, %v1969
        %1971 = vmatmul.bf16.gmra.mxu0 %v1660
        %v1972 = vpop.f32.mrf.mxu0
        %v1973 = vadd.f32 %v1464, %v1972
        %v1974 = vpop.f32.mrf.mxu0
        %v1975 = vadd.f32 %v1464, %v1974
        %1976 = vmatmul.bf16.gmra.mxu0 %v1663
        %v1977 = vpop.f32.mrf.mxu0
        %v1978 = vadd.f32 %v1464, %v1977
        %v1979 = vpop.f32.mrf.mxu0
        %v1980 = vadd.f32 %v1464, %v1979
        %1981 = vmatmul.bf16.gmra.mxu0 %v1666
        %v1982 = vpop.f32.mrf.mxu0
        %v1983 = vadd.f32 %v1464, %v1982
        %v1984 = vpop.f32.mrf.mxu0
        %v1985 = vadd.f32 %v1464, %v1984
        %1986 = vmatmul.bf16.gmra.mxu0 %v1669
        %v1987 = vpop.f32.mrf.mxu0
        %v1988 = vadd.f32 %v1464, %v1987
        %v1989 = vpop.f32.mrf.mxu0
        %v1990 = vadd.f32 %v1464, %v1989
        %1991 = vmatmul.bf16.gmra.mxu0 %v1672
        %v1992 = vpop.f32.mrf.mxu0
        %v1993 = vadd.f32 %v1464, %v1992
        %v1994 = vpop.f32.mrf.mxu0
        %v1995 = vadd.f32 %v1464, %v1994
        %1996 = vmatmul.bf16.gmra.mxu0 %v1675
        %v1997 = vpop.f32.mrf.mxu0
        %v1998 = vadd.f32 %v1464, %v1997
        %v1999 = vpop.f32.mrf.mxu0
        %v2000 = vadd.f32 %v1464, %v1999
        %2001 = vmatmul.bf16.gmra.mxu0 %v1678
        %v2002 = vpop.f32.mrf.mxu0
        %v2003 = vadd.f32 %v1464, %v2002
        %v2004 = vpop.f32.mrf.mxu0
        %v2005 = vadd.f32 %v1464, %v2004
        %2006 = vmatmul.bf16.gmra.mxu0 %v1681
        %v2007 = vpop.f32.mrf.mxu0
        %v2008 = vadd.f32 %v1464, %v2007
        %v2009 = vpop.f32.mrf.mxu0
        %v2010 = vadd.f32 %v1464, %v2009
        %2011 = vdwg.mxu0
        %v2012 = vmax.f32 %v1693, 0.0
        %v2013 = vmax.f32 %v1695, 0.0
        %v2014 = vmax.f32 %v1698, 0.0
        %v2015 = vmax.f32 %v1700, 0.0
        %v2016 = vmax.f32 %v1703, 0.0
        %v2017 = vmax.f32 %v1705, 0.0
        %v2018 = vmax.f32 %v1708, 0.0
        %v2019 = vmax.f32 %v1710, 0.0
        %v2020 = vmax.f32 %v1713, 0.0
        %v2021 = vmax.f32 %v1715, 0.0
        %v2022 = vmax.f32 %v1718, 0.0
        %v2023 = vmax.f32 %v1720, 0.0
        %v2024 = vmax.f32 %v1723, 0.0
        %v2025 = vmax.f32 %v1725, 0.0
        %v2026 = vmax.f32 %v1728, 0.0
        %v2027 = vmax.f32 %v1730, 0.0
        %v2028 = vmax.f32 %v1733, 0.0
        %v2029 = vmax.f32 %v1735, 0.0
        %v2030 = vmax.f32 %v1738, 0.0
        %v2031 = vmax.f32 %v1740, 0.0
        %v2032 = vmax.f32 %v1743, 0.0
        %v2033 = vmax.f32 %v1745, 0.0
        %v2034 = vmax.f32 %v1748, 0.0
        %v2035 = vmax.f32 %v1750, 0.0
        %v2036 = vmax.f32 %v1753, 0.0
        %v2037 = vmax.f32 %v1755, 0.0
        %v2038 = vmax.f32 %v1758, 0.0
        %v2039 = vmax.f32 %v1760, 0.0
        %v2040 = vmax.f32 %v1763, 0.0
        %v2041 = vmax.f32 %v1765, 0.0
        %v2042 = vmax.f32 %v1768, 0.0
        %v2043 = vmax.f32 %v1770, 0.0
        %v2044 = vmax.f32 %v1773, 0.0
        %v2045 = vmax.f32 %v1775, 0.0
        %v2046 = vmax.f32 %v1778, 0.0
        %v2047 = vmax.f32 %v1780, 0.0
        %v2048 = vmax.f32 %v1783, 0.0
        %v2049 = vmax.f32 %v1785, 0.0
        %v2050 = vmax.f32 %v1788, 0.0
        %v2051 = vmax.f32 %v1790, 0.0
        %v2052 = vmax.f32 %v1793, 0.0
        %v2053 = vmax.f32 %v1795, 0.0
        %v2054 = vmax.f32 %v1798, 0.0
        %v2055 = vmax.f32 %v1800, 0.0
        %v2056 = vmax.f32 %v1803, 0.0
        %v2057 = vmax.f32 %v1805, 0.0
        %v2058 = vmax.f32 %v1808, 0.0
        %v2059 = vmax.f32 %v1810, 0.0
        %v2060 = vmax.f32 %v1813, 0.0
        %v2061 = vmax.f32 %v1815, 0.0
        %v2062 = vmax.f32 %v1818, 0.0
        %v2063 = vmax.f32 %v1820, 0.0
        %v2064 = vmax.f32 %v1823, 0.0
        %v2065 = vmax.f32 %v1825, 0.0
        %v2066 = vmax.f32 %v1828, 0.0
        %v2067 = vmax.f32 %v1830, 0.0
        %v2068 = vmax.f32 %v1833, 0.0
        %v2069 = vmax.f32 %v1835, 0.0
        %v2070 = vmax.f32 %v1838, 0.0
        %v2071 = vmax.f32 %v1840, 0.0
        %v2072 = vmax.f32 %v1843, 0.0
        %v2073 = vmax.f32 %v1845, 0.0
        %v2074 = vmax.f32 %v1848, 0.0
        %v2075 = vmax.f32 %v1850, 0.0
        %v2076 = vmax.f32 %v1853, 0.0
        %v2077 = vmax.f32 %v1855, 0.0
        %v2078 = vmax.f32 %v1858, 0.0
        %v2079 = vmax.f32 %v1860, 0.0
        %v2080 = vmax.f32 %v1863, 0.0
        %v2081 = vmax.f32 %v1865, 0.0
        %v2082 = vmax.f32 %v1868, 0.0
        %v2083 = vmax.f32 %v1870, 0.0
        %v2084 = vmax.f32 %v1873, 0.0
        %v2085 = vmax.f32 %v1875, 0.0
        %v2086 = vmax.f32 %v1878, 0.0
        %v2087 = vmax.f32 %v1880, 0.0
        %v2088 = vmax.f32 %v1883, 0.0
        %v2089 = vmax.f32 %v1885, 0.0
        %v2090 = vmax.f32 %v1888, 0.0
        %v2091 = vmax.f32 %v1890, 0.0
        %v2092 = vmax.f32 %v1893, 0.0
        %v2093 = vmax.f32 %v1895, 0.0
        %v2094 = vmax.f32 %v1898, 0.0
        %v2095 = vmax.f32 %v1900, 0.0
        %v2096 = vmax.f32 %v1903, 0.0
        %v2097 = vmax.f32 %v1905, 0.0
        %v2098 = vmax.f32 %v1908, 0.0
        %v2099 = vmax.f32 %v1910, 0.0
        %v2100 = vmax.f32 %v1913, 0.0
        %v2101 = vmax.f32 %v1915, 0.0
        %v2102 = vmax.f32 %v1918, 0.0
        %v2103 = vmax.f32 %v1920, 0.0
        %v2104 = vmax.f32 %v1923, 0.0
        %v2105 = vmax.f32 %v1925, 0.0
        %v2106 = vmax.f32 %v1928, 0.0
        %v2107 = vmax.f32 %v1930, 0.0
        %v2108 = vmax.f32 %v1933, 0.0
        %v2109 = vmax.f32 %v1935, 0.0
        %v2110 = vmax.f32 %v1938, 0.0
        %v2111 = vmax.f32 %v1940, 0.0
        %v2112 = vmax.f32 %v1943, 0.0
        %v2113 = vmax.f32 %v1945, 0.0
        %v2114 = vmax.f32 %v1948, 0.0
        %v2115 = vmax.f32 %v1950, 0.0
        %v2116 = vmax.f32 %v1953, 0.0
        %v2117 = vmax.f32 %v1955, 0.0
        %v2118 = vmax.f32 %v1958, 0.0
        %v2119 = vmax.f32 %v1960, 0.0
        %v2120 = vmax.f32 %v1963, 0.0
        %v2121 = vmax.f32 %v1965, 0.0
        %v2122 = vmax.f32 %v1968, 0.0
        %v2123 = vmax.f32 %v1970, 0.0
        %v2124 = vmax.f32 %v1973, 0.0
        %v2125 = vmax.f32 %v1975, 0.0
        %v2126 = vmax.f32 %v1978, 0.0
        %v2127 = vmax.f32 %v1980, 0.0
        %v2128 = vmax.f32 %v1983, 0.0
        %v2129 = vmax.f32 %v1985, 0.0
        %v2130 = vmax.f32 %v1988, 0.0
        %v2131 = vmax.f32 %v1990, 0.0
        %v2132 = vmax.f32 %v1993, 0.0
        %v2133 = vmax.f32 %v1995, 0.0
        %v2134 = vmax.f32 %v1998, 0.0
        %v2135 = vmax.f32 %v2000, 0.0
        %v2136 = vmax.f32 %v2003, 0.0
        %v2137 = vmax.f32 %v2005, 0.0
        %v2138 = vmax.f32 %v2008, 0.0
        %v2139 = vmax.f32 %v2010, 0.0
        %v2140 = vmax.f32 %v2012, %v2013
        %v2141 = vrot.slane %v2140, 4
        %v2142 = vmax.f32 %v2140, %v2141
        %v2143 = vrot.slane %v2142, 2
        %v2144 = vmax.f32 %v2142, %v2143
        %v2145 = vrot.slane %v2144, 1
        %v2146 = vmax.f32 %v2144, %v2145
        %v2147 = vmax.f32 %v2014, %v2015
        %v2148 = vrot.slane %v2147, 4
        %v2149 = vmax.f32 %v2147, %v2148
        %v2150 = vrot.slane %v2149, 2
        %v2151 = vmax.f32 %v2149, %v2150
        %v2152 = vrot.slane %v2151, 1
        %v2153 = vmax.f32 %v2151, %v2152
        %v2154 = vmax.f32 %v2016, %v2017
        %v2155 = vrot.slane %v2154, 4
        %v2156 = vmax.f32 %v2154, %v2155
        %v2157 = vrot.slane %v2156, 2
        %v2158 = vmax.f32 %v2156, %v2157
        %v2159 = vrot.slane %v2158, 1
        %v2160 = vmax.f32 %v2158, %v2159
        %v2161 = vmax.f32 %v2018, %v2019
        %v2162 = vrot.slane %v2161, 4
        %v2163 = vmax.f32 %v2161, %v2162
        %v2164 = vrot.slane %v2163, 2
        %v2165 = vmax.f32 %v2163, %v2164
        %v2166 = vrot.slane %v2165, 1
        %v2167 = vmax.f32 %v2165, %v2166
        %v2168 = vmax.f32 %v2020, %v2021
        %v2169 = vrot.slane %v2168, 4
        %v2170 = vmax.f32 %v2168, %v2169
        %v2171 = vrot.slane %v2170, 2
        %v2172 = vmax.f32 %v2170, %v2171
        %v2173 = vrot.slane %v2172, 1
        %v2174 = vmax.f32 %v2172, %v2173
        %v2175 = vmax.f32 %v2022, %v2023
        %v2176 = vrot.slane %v2175, 4
        %v2177 = vmax.f32 %v2175, %v2176
        %v2178 = vrot.slane %v2177, 2
        %v2179 = vmax.f32 %v2177, %v2178
        %v2180 = vrot.slane %v2179, 1
        %v2181 = vmax.f32 %v2179, %v2180
        %v2182 = vmax.f32 %v2024, %v2025
        %v2183 = vrot.slane %v2182, 4
        %v2184 = vmax.f32 %v2182, %v2183
        %v2185 = vrot.slane %v2184, 2
        %v2186 = vmax.f32 %v2184, %v2185
        %v2187 = vrot.slane %v2186, 1
        %v2188 = vmax.f32 %v2186, %v2187
        %v2189 = vmax.f32 %v2026, %v2027
        %v2190 = vrot.slane %v2189, 4
        %v2191 = vmax.f32 %v2189, %v2190
        %v2192 = vrot.slane %v2191, 2
        %v2193 = vmax.f32 %v2191, %v2192
        %v2194 = vrot.slane %v2193, 1
        %v2195 = vmax.f32 %v2193, %v2194
        %v2196 = vmax.f32 %v2028, %v2029
        %v2197 = vrot.slane %v2196, 4
        %v2198 = vmax.f32 %v2196, %v2197
        %v2199 = vrot.slane %v2198, 2
        %v2200 = vmax.f32 %v2198, %v2199
        %v2201 = vrot.slane %v2200, 1
        %v2202 = vmax.f32 %v2200, %v2201
        %v2203 = vmax.f32 %v2030, %v2031
        %v2204 = vrot.slane %v2203, 4
        %v2205 = vmax.f32 %v2203, %v2204
        %v2206 = vrot.slane %v2205, 2
        %v2207 = vmax.f32 %v2205, %v2206
        %v2208 = vrot.slane %v2207, 1
        %v2209 = vmax.f32 %v2207, %v2208
        %v2210 = vmax.f32 %v2032, %v2033
        %v2211 = vrot.slane %v2210, 4
        %v2212 = vmax.f32 %v2210, %v2211
        %v2213 = vrot.slane %v2212, 2
        %v2214 = vmax.f32 %v2212, %v2213
        %v2215 = vrot.slane %v2214, 1
        %v2216 = vmax.f32 %v2214, %v2215
        %v2217 = vmax.f32 %v2034, %v2035
        %v2218 = vrot.slane %v2217, 4
        %v2219 = vmax.f32 %v2217, %v2218
        %v2220 = vrot.slane %v2219, 2
        %v2221 = vmax.f32 %v2219, %v2220
        %v2222 = vrot.slane %v2221, 1
        %v2223 = vmax.f32 %v2221, %v2222
        %v2224 = vmax.f32 %v2036, %v2037
        %v2225 = vrot.slane %v2224, 4
        %v2226 = vmax.f32 %v2224, %v2225
        %v2227 = vrot.slane %v2226, 2
        %v2228 = vmax.f32 %v2226, %v2227
        %v2229 = vrot.slane %v2228, 1
        %v2230 = vmax.f32 %v2228, %v2229
        %v2231 = vmax.f32 %v2038, %v2039
        %v2232 = vrot.slane %v2231, 4
        %v2233 = vmax.f32 %v2231, %v2232
        %v2234 = vrot.slane %v2233, 2
        %v2235 = vmax.f32 %v2233, %v2234
        %v2236 = vrot.slane %v2235, 1
        %v2237 = vmax.f32 %v2235, %v2236
        %v2238 = vmax.f32 %v2040, %v2041
        %v2239 = vrot.slane %v2238, 4
        %v2240 = vmax.f32 %v2238, %v2239
        %v2241 = vrot.slane %v2240, 2
        %v2242 = vmax.f32 %v2240, %v2241
        %v2243 = vrot.slane %v2242, 1
        %v2244 = vmax.f32 %v2242, %v2243
        %v2245 = vmax.f32 %v2042, %v2043
        %v2246 = vrot.slane %v2245, 4
        %v2247 = vmax.f32 %v2245, %v2246
        %v2248 = vrot.slane %v2247, 2
        %v2249 = vmax.f32 %v2247, %v2248
        %v2250 = vrot.slane %v2249, 1
        %v2251 = vmax.f32 %v2249, %v2250
        %v2252 = vmax.f32 %v2044, %v2045
        %v2253 = vrot.slane %v2252, 4
        %v2254 = vmax.f32 %v2252, %v2253
        %v2255 = vrot.slane %v2254, 2
        %v2256 = vmax.f32 %v2254, %v2255
        %v2257 = vrot.slane %v2256, 1
        %v2258 = vmax.f32 %v2256, %v2257
        %v2259 = vmax.f32 %v2046, %v2047
        %v2260 = vrot.slane %v2259, 4
        %v2261 = vmax.f32 %v2259, %v2260
        %v2262 = vrot.slane %v2261, 2
        %v2263 = vmax.f32 %v2261, %v2262
        %v2264 = vrot.slane %v2263, 1
        %v2265 = vmax.f32 %v2263, %v2264
        %v2266 = vmax.f32 %v2048, %v2049
        %v2267 = vrot.slane %v2266, 4
        %v2268 = vmax.f32 %v2266, %v2267
        %v2269 = vrot.slane %v2268, 2
        %v2270 = vmax.f32 %v2268, %v2269
        %v2271 = vrot.slane %v2270, 1
        %v2272 = vmax.f32 %v2270, %v2271
        %v2273 = vmax.f32 %v2050, %v2051
        %v2274 = vrot.slane %v2273, 4
        %v2275 = vmax.f32 %v2273, %v2274
        %v2276 = vrot.slane %v2275, 2
        %v2277 = vmax.f32 %v2275, %v2276
        %v2278 = vrot.slane %v2277, 1
        %v2279 = vmax.f32 %v2277, %v2278
        %v2280 = vmax.f32 %v2052, %v2053
        %v2281 = vrot.slane %v2280, 4
        %v2282 = vmax.f32 %v2280, %v2281
        %v2283 = vrot.slane %v2282, 2
        %v2284 = vmax.f32 %v2282, %v2283
        %v2285 = vrot.slane %v2284, 1
        %v2286 = vmax.f32 %v2284, %v2285
        %v2287 = vmax.f32 %v2054, %v2055
        %v2288 = vrot.slane %v2287, 4
        %v2289 = vmax.f32 %v2287, %v2288
        %v2290 = vrot.slane %v2289, 2
        %v2291 = vmax.f32 %v2289, %v2290
        %v2292 = vrot.slane %v2291, 1
        %v2293 = vmax.f32 %v2291, %v2292
        %v2294 = vmax.f32 %v2056, %v2057
        %v2295 = vrot.slane %v2294, 4
        %v2296 = vmax.f32 %v2294, %v2295
        %v2297 = vrot.slane %v2296, 2
        %v2298 = vmax.f32 %v2296, %v2297
        %v2299 = vrot.slane %v2298, 1
        %v2300 = vmax.f32 %v2298, %v2299
        %v2301 = vmax.f32 %v2058, %v2059
        %v2302 = vrot.slane %v2301, 4
        %v2303 = vmax.f32 %v2301, %v2302
        %v2304 = vrot.slane %v2303, 2
        %v2305 = vmax.f32 %v2303, %v2304
        %v2306 = vrot.slane %v2305, 1
        %v2307 = vmax.f32 %v2305, %v2306
        %v2308 = vmax.f32 %v2060, %v2061
        %v2309 = vrot.slane %v2308, 4
        %v2310 = vmax.f32 %v2308, %v2309
        %v2311 = vrot.slane %v2310, 2
        %v2312 = vmax.f32 %v2310, %v2311
        %v2313 = vrot.slane %v2312, 1
        %v2314 = vmax.f32 %v2312, %v2313
        %v2315 = vmax.f32 %v2062, %v2063
        %v2316 = vrot.slane %v2315, 4
        %v2317 = vmax.f32 %v2315, %v2316
        %v2318 = vrot.slane %v2317, 2
        %v2319 = vmax.f32 %v2317, %v2318
        %v2320 = vrot.slane %v2319, 1
        %v2321 = vmax.f32 %v2319, %v2320
        %v2322 = vmax.f32 %v2064, %v2065
        %v2323 = vrot.slane %v2322, 4
        %v2324 = vmax.f32 %v2322, %v2323
        %v2325 = vrot.slane %v2324, 2
        %v2326 = vmax.f32 %v2324, %v2325
        %v2327 = vrot.slane %v2326, 1
        %v2328 = vmax.f32 %v2326, %v2327
        %v2329 = vmax.f32 %v2066, %v2067
        %v2330 = vrot.slane %v2329, 4
        %v2331 = vmax.f32 %v2329, %v2330
        %v2332 = vrot.slane %v2331, 2
        %v2333 = vmax.f32 %v2331, %v2332
        %v2334 = vrot.slane %v2333, 1
        %v2335 = vmax.f32 %v2333, %v2334
        %v2336 = vmax.f32 %v2068, %v2069
        %v2337 = vrot.slane %v2336, 4
        %v2338 = vmax.f32 %v2336, %v2337
        %v2339 = vrot.slane %v2338, 2
        %v2340 = vmax.f32 %v2338, %v2339
        %v2341 = vrot.slane %v2340, 1
        %v2342 = vmax.f32 %v2340, %v2341
        %v2343 = vmax.f32 %v2070, %v2071
        %v2344 = vrot.slane %v2343, 4
        %v2345 = vmax.f32 %v2343, %v2344
        %v2346 = vrot.slane %v2345, 2
        %v2347 = vmax.f32 %v2345, %v2346
        %v2348 = vrot.slane %v2347, 1
        %v2349 = vmax.f32 %v2347, %v2348
        %v2350 = vmax.f32 %v2072, %v2073
        %v2351 = vrot.slane %v2350, 4
        %v2352 = vmax.f32 %v2350, %v2351
        %v2353 = vrot.slane %v2352, 2
        %v2354 = vmax.f32 %v2352, %v2353
        %v2355 = vrot.slane %v2354, 1
        %v2356 = vmax.f32 %v2354, %v2355
        %v2357 = vmax.f32 %v2074, %v2075
        %v2358 = vrot.slane %v2357, 4
        %v2359 = vmax.f32 %v2357, %v2358
        %v2360 = vrot.slane %v2359, 2
        %v2361 = vmax.f32 %v2359, %v2360
        %v2362 = vrot.slane %v2361, 1
        %v2363 = vmax.f32 %v2361, %v2362
        %v2364 = vmax.f32 %v2076, %v2077
        %v2365 = vrot.slane %v2364, 4
        %v2366 = vmax.f32 %v2364, %v2365
        %v2367 = vrot.slane %v2366, 2
        %v2368 = vmax.f32 %v2366, %v2367
        %v2369 = vrot.slane %v2368, 1
        %v2370 = vmax.f32 %v2368, %v2369
        %v2371 = vmax.f32 %v2078, %v2079
        %v2372 = vrot.slane %v2371, 4
        %v2373 = vmax.f32 %v2371, %v2372
        %v2374 = vrot.slane %v2373, 2
        %v2375 = vmax.f32 %v2373, %v2374
        %v2376 = vrot.slane %v2375, 1
        %v2377 = vmax.f32 %v2375, %v2376
        %v2378 = vmax.f32 %v2080, %v2081
        %v2379 = vrot.slane %v2378, 4
        %v2380 = vmax.f32 %v2378, %v2379
        %v2381 = vrot.slane %v2380, 2
        %v2382 = vmax.f32 %v2380, %v2381
        %v2383 = vrot.slane %v2382, 1
        %v2384 = vmax.f32 %v2382, %v2383
        %v2385 = vmax.f32 %v2082, %v2083
        %v2386 = vrot.slane %v2385, 4
        %v2387 = vmax.f32 %v2385, %v2386
        %v2388 = vrot.slane %v2387, 2
        %v2389 = vmax.f32 %v2387, %v2388
        %v2390 = vrot.slane %v2389, 1
        %v2391 = vmax.f32 %v2389, %v2390
        %v2392 = vmax.f32 %v2084, %v2085
        %v2393 = vrot.slane %v2392, 4
        %v2394 = vmax.f32 %v2392, %v2393
        %v2395 = vrot.slane %v2394, 2
        %v2396 = vmax.f32 %v2394, %v2395
        %v2397 = vrot.slane %v2396, 1
        %v2398 = vmax.f32 %v2396, %v2397
        %v2399 = vmax.f32 %v2086, %v2087
        %v2400 = vrot.slane %v2399, 4
        %v2401 = vmax.f32 %v2399, %v2400
        %v2402 = vrot.slane %v2401, 2
        %v2403 = vmax.f32 %v2401, %v2402
        %v2404 = vrot.slane %v2403, 1
        %v2405 = vmax.f32 %v2403, %v2404
        %v2406 = vmax.f32 %v2088, %v2089
        %v2407 = vrot.slane %v2406, 4
        %v2408 = vmax.f32 %v2406, %v2407
        %v2409 = vrot.slane %v2408, 2
        %v2410 = vmax.f32 %v2408, %v2409
        %v2411 = vrot.slane %v2410, 1
        %v2412 = vmax.f32 %v2410, %v2411
        %v2413 = vmax.f32 %v2090, %v2091
        %v2414 = vrot.slane %v2413, 4
        %v2415 = vmax.f32 %v2413, %v2414
        %v2416 = vrot.slane %v2415, 2
        %v2417 = vmax.f32 %v2415, %v2416
        %v2418 = vrot.slane %v2417, 1
        %v2419 = vmax.f32 %v2417, %v2418
        %v2420 = vmax.f32 %v2092, %v2093
        %v2421 = vrot.slane %v2420, 4
        %v2422 = vmax.f32 %v2420, %v2421
        %v2423 = vrot.slane %v2422, 2
        %v2424 = vmax.f32 %v2422, %v2423
        %v2425 = vrot.slane %v2424, 1
        %v2426 = vmax.f32 %v2424, %v2425
        %v2427 = vmax.f32 %v2094, %v2095
        %v2428 = vrot.slane %v2427, 4
        %v2429 = vmax.f32 %v2427, %v2428
        %v2430 = vrot.slane %v2429, 2
        %v2431 = vmax.f32 %v2429, %v2430
        %v2432 = vrot.slane %v2431, 1
        %v2433 = vmax.f32 %v2431, %v2432
        %v2434 = vmax.f32 %v2096, %v2097
        %v2435 = vrot.slane %v2434, 4
        %v2436 = vmax.f32 %v2434, %v2435
        %v2437 = vrot.slane %v2436, 2
        %v2438 = vmax.f32 %v2436, %v2437
        %v2439 = vrot.slane %v2438, 1
        %v2440 = vmax.f32 %v2438, %v2439
        %v2441 = vmax.f32 %v2098, %v2099
        %v2442 = vrot.slane %v2441, 4
        %v2443 = vmax.f32 %v2441, %v2442
        %v2444 = vrot.slane %v2443, 2
        %v2445 = vmax.f32 %v2443, %v2444
        %v2446 = vrot.slane %v2445, 1
        %v2447 = vmax.f32 %v2445, %v2446
        %v2448 = vmax.f32 %v2100, %v2101
        %v2449 = vrot.slane %v2448, 4
        %v2450 = vmax.f32 %v2448, %v2449
        %v2451 = vrot.slane %v2450, 2
        %v2452 = vmax.f32 %v2450, %v2451
        %v2453 = vrot.slane %v2452, 1
        %v2454 = vmax.f32 %v2452, %v2453
        %v2455 = vmax.f32 %v2102, %v2103
        %v2456 = vrot.slane %v2455, 4
        %v2457 = vmax.f32 %v2455, %v2456
        %v2458 = vrot.slane %v2457, 2
        %v2459 = vmax.f32 %v2457, %v2458
        %v2460 = vrot.slane %v2459, 1
        %v2461 = vmax.f32 %v2459, %v2460
        %v2462 = vmax.f32 %v2104, %v2105
        %v2463 = vrot.slane %v2462, 4
        %v2464 = vmax.f32 %v2462, %v2463
        %v2465 = vrot.slane %v2464, 2
        %v2466 = vmax.f32 %v2464, %v2465
        %v2467 = vrot.slane %v2466, 1
        %v2468 = vmax.f32 %v2466, %v2467
        %v2469 = vmax.f32 %v2106, %v2107
        %v2470 = vrot.slane %v2469, 4
        %v2471 = vmax.f32 %v2469, %v2470
        %v2472 = vrot.slane %v2471, 2
        %v2473 = vmax.f32 %v2471, %v2472
        %v2474 = vrot.slane %v2473, 1
        %v2475 = vmax.f32 %v2473, %v2474
        %v2476 = vmax.f32 %v2108, %v2109
        %v2477 = vrot.slane %v2476, 4
        %v2478 = vmax.f32 %v2476, %v2477
        %v2479 = vrot.slane %v2478, 2
        %v2480 = vmax.f32 %v2478, %v2479
        %v2481 = vrot.slane %v2480, 1
        %v2482 = vmax.f32 %v2480, %v2481
        %v2483 = vmax.f32 %v2110, %v2111
        %v2484 = vrot.slane %v2483, 4
        %v2485 = vmax.f32 %v2483, %v2484
        %v2486 = vrot.slane %v2485, 2
        %v2487 = vmax.f32 %v2485, %v2486
        %v2488 = vrot.slane %v2487, 1
        %v2489 = vmax.f32 %v2487, %v2488
        %v2490 = vmax.f32 %v2112, %v2113
        %v2491 = vrot.slane %v2490, 4
        %v2492 = vmax.f32 %v2490, %v2491
        %v2493 = vrot.slane %v2492, 2
        %v2494 = vmax.f32 %v2492, %v2493
        %v2495 = vrot.slane %v2494, 1
        %v2496 = vmax.f32 %v2494, %v2495
        %v2497 = vmax.f32 %v2114, %v2115
        %v2498 = vrot.slane %v2497, 4
        %v2499 = vmax.f32 %v2497, %v2498
        %v2500 = vrot.slane %v2499, 2
        %v2501 = vmax.f32 %v2499, %v2500
        %v2502 = vrot.slane %v2501, 1
        %v2503 = vmax.f32 %v2501, %v2502
        %v2504 = vmax.f32 %v2116, %v2117
        %v2505 = vrot.slane %v2504, 4
        %v2506 = vmax.f32 %v2504, %v2505
        %v2507 = vrot.slane %v2506, 2
        %v2508 = vmax.f32 %v2506, %v2507
        %v2509 = vrot.slane %v2508, 1
        %v2510 = vmax.f32 %v2508, %v2509
        %v2511 = vmax.f32 %v2118, %v2119
        %v2512 = vrot.slane %v2511, 4
        %v2513 = vmax.f32 %v2511, %v2512
        %v2514 = vrot.slane %v2513, 2
        %v2515 = vmax.f32 %v2513, %v2514
        %v2516 = vrot.slane %v2515, 1
        %v2517 = vmax.f32 %v2515, %v2516
        %v2518 = vmax.f32 %v2120, %v2121
        %v2519 = vrot.slane %v2518, 4
        %v2520 = vmax.f32 %v2518, %v2519
        %v2521 = vrot.slane %v2520, 2
        %v2522 = vmax.f32 %v2520, %v2521
        %v2523 = vrot.slane %v2522, 1
        %v2524 = vmax.f32 %v2522, %v2523
        %v2525 = vmax.f32 %v2122, %v2123
        %v2526 = vrot.slane %v2525, 4
        %v2527 = vmax.f32 %v2525, %v2526
        %v2528 = vrot.slane %v2527, 2
        %v2529 = vmax.f32 %v2527, %v2528
        %v2530 = vrot.slane %v2529, 1
        %v2531 = vmax.f32 %v2529, %v2530
        %v2532 = vmax.f32 %v2124, %v2125
        %v2533 = vrot.slane %v2532, 4
        %v2534 = vmax.f32 %v2532, %v2533
        %v2535 = vrot.slane %v2534, 2
        %v2536 = vmax.f32 %v2534, %v2535
        %v2537 = vrot.slane %v2536, 1
        %v2538 = vmax.f32 %v2536, %v2537
        %v2539 = vmax.f32 %v2126, %v2127
        %v2540 = vrot.slane %v2539, 4
        %v2541 = vmax.f32 %v2539, %v2540
        %v2542 = vrot.slane %v2541, 2
        %v2543 = vmax.f32 %v2541, %v2542
        %v2544 = vrot.slane %v2543, 1
        %v2545 = vmax.f32 %v2543, %v2544
        %v2546 = vmax.f32 %v2128, %v2129
        %v2547 = vrot.slane %v2546, 4
        %v2548 = vmax.f32 %v2546, %v2547
        %v2549 = vrot.slane %v2548, 2
        %v2550 = vmax.f32 %v2548, %v2549
        %v2551 = vrot.slane %v2550, 1
        %v2552 = vmax.f32 %v2550, %v2551
        %v2553 = vmax.f32 %v2130, %v2131
        %v2554 = vrot.slane %v2553, 4
        %v2555 = vmax.f32 %v2553, %v2554
        %v2556 = vrot.slane %v2555, 2
        %v2557 = vmax.f32 %v2555, %v2556
        %v2558 = vrot.slane %v2557, 1
        %v2559 = vmax.f32 %v2557, %v2558
        %v2560 = vmax.f32 %v2132, %v2133
        %v2561 = vrot.slane %v2560, 4
        %v2562 = vmax.f32 %v2560, %v2561
        %v2563 = vrot.slane %v2562, 2
        %v2564 = vmax.f32 %v2562, %v2563
        %v2565 = vrot.slane %v2564, 1
        %v2566 = vmax.f32 %v2564, %v2565
        %v2567 = vmax.f32 %v2134, %v2135
        %v2568 = vrot.slane %v2567, 4
        %v2569 = vmax.f32 %v2567, %v2568
        %v2570 = vrot.slane %v2569, 2
        %v2571 = vmax.f32 %v2569, %v2570
        %v2572 = vrot.slane %v2571, 1
        %v2573 = vmax.f32 %v2571, %v2572
        %v2574 = vmax.f32 %v2136, %v2137
        %v2575 = vrot.slane %v2574, 4
        %v2576 = vmax.f32 %v2574, %v2575
        %v2577 = vrot.slane %v2576, 2
        %v2578 = vmax.f32 %v2576, %v2577
        %v2579 = vrot.slane %v2578, 1
        %v2580 = vmax.f32 %v2578, %v2579
        %v2581 = vmax.f32 %v2138, %v2139
        %v2582 = vrot.slane %v2581, 4
        %v2583 = vmax.f32 %v2581, %v2582
        %v2584 = vrot.slane %v2583, 2
        %v2585 = vmax.f32 %v2583, %v2584
        %v2586 = vrot.slane %v2585, 1
        %v2587 = vmax.f32 %v2585, %v2586
        %vm2652 = vcmask 1041409
        %v2653 = vsel %vm2652, %v2153, %v2146
        %vm2654 = vcmask 1042434
        %v2655 = vsel %vm2654, %v2160, %v2653
        %vm2656 = vcmask 1043459
        %v2657 = vsel %vm2656, %v2167, %v2655
        %vm2658 = vcmask 1044484
        %v2659 = vsel %vm2658, %v2174, %v2657
        %vm2660 = vcmask 1045509
        %v2661 = vsel %vm2660, %v2181, %v2659
        %vm2662 = vcmask 1046534
        %v2663 = vsel %vm2662, %v2188, %v2661
        %vm2664 = vcmask 1047559
        %v2665 = vsel %vm2664, %v2195, %v2663
        %v2666 = vsel %vm2652, %v2209, %v2202
        %v2667 = vsel %vm2654, %v2216, %v2666
        %v2668 = vsel %vm2656, %v2223, %v2667
        %v2669 = vsel %vm2658, %v2230, %v2668
        %v2670 = vsel %vm2660, %v2237, %v2669
        %v2671 = vsel %vm2662, %v2244, %v2670
        %v2672 = vsel %vm2664, %v2251, %v2671
        %v2673 = vsel %vm2652, %v2265, %v2258
        %v2674 = vsel %vm2654, %v2272, %v2673
        %v2675 = vsel %vm2656, %v2279, %v2674
        %v2676 = vsel %vm2658, %v2286, %v2675
        %v2677 = vsel %vm2660, %v2293, %v2676
        %v2678 = vsel %vm2662, %v2300, %v2677
        %v2679 = vsel %vm2664, %v2307, %v2678
        %v2680 = vsel %vm2652, %v2321, %v2314
        %v2681 = vsel %vm2654, %v2328, %v2680
        %v2682 = vsel %vm2656, %v2335, %v2681
        %v2683 = vsel %vm2658, %v2342, %v2682
        %v2684 = vsel %vm2660, %v2349, %v2683
        %v2685 = vsel %vm2662, %v2356, %v2684
        %v2686 = vsel %vm2664, %v2363, %v2685
        %v2687 = vsel %vm2652, %v2377, %v2370
        %v2688 = vsel %vm2654, %v2384, %v2687
        %v2689 = vsel %vm2656, %v2391, %v2688
        %v2690 = vsel %vm2658, %v2398, %v2689
        %v2691 = vsel %vm2660, %v2405, %v2690
        %v2692 = vsel %vm2662, %v2412, %v2691
        %v2693 = vsel %vm2664, %v2419, %v2692
        %v2694 = vsel %vm2652, %v2433, %v2426
        %v2695 = vsel %vm2654, %v2440, %v2694
        %v2696 = vsel %vm2656, %v2447, %v2695
        %v2697 = vsel %vm2658, %v2454, %v2696
        %v2698 = vsel %vm2660, %v2461, %v2697
        %v2699 = vsel %vm2662, %v2468, %v2698
        %v2700 = vsel %vm2664, %v2475, %v2699
        %v2701 = vsel %vm2652, %v2489, %v2482
        %v2702 = vsel %vm2654, %v2496, %v2701
        %v2703 = vsel %vm2656, %v2503, %v2702
        %v2704 = vsel %vm2658, %v2510, %v2703
        %v2705 = vsel %vm2660, %v2517, %v2704
        %v2706 = vsel %vm2662, %v2524, %v2705
        %v2707 = vsel %vm2664, %v2531, %v2706
        %v2708 = vsel %vm2652, %v2545, %v2538
        %v2709 = vsel %vm2654, %v2552, %v2708
        %v2710 = vsel %vm2656, %v2559, %v2709
        %v2711 = vsel %vm2658, %v2566, %v2710
        %v2712 = vsel %vm2660, %v2573, %v2711
        %v2713 = vsel %vm2662, %v2580, %v2712
        %v2714 = vsel %vm2664, %v2587, %v2713
        %2723 = vst [vmem:[%s244] sm:$0xff] %v2665
        %2724 = vst [vmem:[%s244 + $0x8] sm:$0xff] %v2672
        %2725 = vst [vmem:[%s244 + $0x10] sm:$0xff] %v2679
        %2726 = vst [vmem:[%s244 + $0x18] sm:$0xff] %v2686
        %2727 = vst [vmem:[%s244 + $0x20] sm:$0xff] %v2693
        %2728 = vst [vmem:[%s244 + $0x28] sm:$0xff] %v2700
        %2729 = vst [vmem:[%s244 + $0x30] sm:$0xff] %v2707
        %2730 = vst [vmem:[%s244 + $0x38] sm:$0xff] %v2714
        %s2731 = sand.u32 %s153, 1
        %s2732 = scalar_lea.sflag [#allocation3], %s2731
        %s2733 = sand.u32 %s153, 1
        %s2734 = smul.addr %s2733, 64
        %s2735 = scalar_lea.vmem [#allocation2], %s2734
        // Predicated region
        $region41: #{forward.5} parent=39 // pred_check
          %p2736 = pneg %p163
        $region42: #{forward.5} parent=39 // pred_check_branch
          %2738 = sbr.rel (%p2736) target = $region44
        $region43: #{forward.5} parent=39 // pred_region
          %s2739 = smul.u32 8, %s24
          %2741 = vsyncadd %s2732, 0
          %s2742 = smul.addr %s23, 8
          %s2743 = sadd.s32 %s2739, %s2742
          %s2744 = smul.addr %s2743, 8
          %s2745 = scalar_lea.hbm %s5, %s2744
          %s2746 = sshll.u32 %s2735, 4
          %s2747 = int_to_ptr.vmem [resolvable:$true] %s2746
          %s2748 = sshll.u32 %s2745, 4
          %s2749 = int_to_ptr.hbm [resolvable:$true] %s2748
          %2754 = dma.vmem_to_hbm [thread:$0]  %s2747, 1024, %s2749, %s2732, 128, 128, 8
        $region44: #{forward.5} parent=39 // pred_fallthru
          _
      $region40: #{forward.5} parent=5 // pred_fallthru
        _
      %p2755 = scmp.le.s32.totalorder 2, %s14
      // Predicated region
      $region45: #{forward.5} parent=5 // pred_check
        %p2756 = pneg %p2755
      $region46: #{forward.5} parent=5 // pred_check_branch
        %2758 = sbr.rel (%p2756) target = $region48
      $region47: #{forward.5} parent=5 // pred_region
        %s2759 = ssub.s32 %s14, 2
        // Predicated region
        $region49: #{forward.5} parent=47 // pred_check
          %p2760 = pneg %p169
        $region50: #{forward.5} parent=47 // pred_check_branch
          %2762 = sbr.rel (%p2760) target = $region52
        $region51: #{forward.5} parent=47 // pred_region
          %s2763 = sand.u32 %s154, 1
          %s2764 = scalar_lea.sflag [#allocation3], %s2763
          %s2765 = sand.u32 %s154, 1
          %s2766 = smul.addr %s2765, 64
          %s2767 = scalar_lea.vmem [#allocation2], %s2766
          %2769 = dma.done %s2764, 1024
        $region52: #{forward.5} parent=47 // pred_fallthru
          _
      $region48: #{forward.5} parent=5 // pred_fallthru
        _
    $region6: #{forward.5} parent=1 // loop_footer
      %s18 = sadd.s32 1, %s14
    $region7: #{forward.5} parent=1 // loop_footer_branch
      %13 = sbr.rel target = $region3
    $region8: #{forward.5} parent=1 // loop_exit
      _
    %2770 = vsyncpa [#allocation3], 1
    %s2771 = scalar_lea.sflag [#allocation3], 1
    %2772 = vsyncpa %s2771, 1

</llo_original>
